<compile_context>
chip_gen: v7x
topology: tpu7x:2x2x1
jax: 0.10.0
libtpu: 0.0.40
codegen_flags: <defaults>
</compile_context>

<pallas_src>
import functools

import jax
import jax.numpy as jnp
from jax.experimental import pallas as pl
from jax.experimental.pallas import tpu as pltpu

BN_EPS = 1e-5
LANES = 128
VMEM_LIMIT = 48 * 1024 * 1024   # explicit scoped-VMEM budget (headroom under v7x's 64 MiB)


def _round_up(x, m):
    return (x + m - 1) // m * m


# ---------------------------------------------------------------------------
# Shared in-kernel pieces
# ---------------------------------------------------------------------------
def _conv9(tap, w_ref, h, w, cpin, tc):
    """3x3 conv as 9 shifted taps -> MXU dots (bf16 x bf16, f32 accumulation)."""
    acc = None
    for t in range(9):
        dy, dx = divmod(t, 3)
        xs = tap(dy, dx).reshape(h * w, cpin)
        d = jnp.dot(xs, w_ref[t], preferred_element_type=jnp.float32)
        acc = d if acc is None else acc + d
    return acc


def _update_stats(stats_ref, acc, batch_idx):
    """Per-channel [sum, sum-of-squares] accumulated across the batch ('arbitrary') axis."""
    @pl.when(batch_idx == 0)
    def _init():
        stats_ref[...] = jnp.zeros(stats_ref.shape, stats_ref.dtype)

    stats_ref[0:1, :] = stats_ref[0:1, :] + jnp.sum(acc, axis=0, keepdims=True)
    stats_ref[1:2, :] = stats_ref[1:2, :] + jnp.sum(acc * acc, axis=0, keepdims=True)


def _zero_pad_scratch(pad_ref):
    # Scratch persists across grid steps; only the interior (written every step) ever
    # changes, so zeroing the border + channel-pad lanes once per batch sweep suffices.
    # (The batch axis is 'arbitrary', so every core runs its full batch range.)
    @pl.when(pl.program_id(1) == 0)
    def _zero():
        pad_ref[...] = jnp.zeros(pad_ref.shape, pad_ref.dtype)


# ---------------------------------------------------------------------------
# Kernel 1: fused MaxPool2x2 + pad + Conv3x3 (+ BN1 statistics)
# ---------------------------------------------------------------------------
def _pool_conv_kernel(x_ref, w_ref, y_ref, stats_ref, pad_ref, *, cin, h, w, cpin, tc):
    _zero_pad_scratch(pad_ref)
    x = x_ref[...]                                     # (1, h, 2, w, 2*cin) f32
    m = jnp.maximum(x[:, :, 0], x[:, :, 1])            # row pair    -> (1, h, w, 2*cin)
    m = jnp.maximum(m[..., :cin], m[..., cin:])        # column pair -> (1, h, w, cin)
    pad_ref[:, 1:1 + h, 1:1 + w, :cin] = m.astype(pad_ref.dtype)

    acc = _conv9(lambda dy, dx: pad_ref[0, dy:dy + h, dx:dx + w, :],
                 w_ref, h, w, cpin, tc)
    y_ref[...] = acc.reshape(1, h, w, tc).astype(y_ref.dtype)
    _update_stats(stats_ref, acc, pl.program_id(1))


# ---------------------------------------------------------------------------
# Kernel 2: fused BN+ReLU (previous layer) + Conv3x3 (+ BN2 statistics)
# ---------------------------------------------------------------------------
def _bnrelu_conv_kernel(y_in_ref, scale_ref, shift_ref, w_ref,
                        y_ref, stats_ref, pad_ref, *, h, w, cpin, tc):
    _zero_pad_scratch(pad_ref)
    y_in = y_in_ref[...].astype(jnp.float32)           # (1, h, w, cpin)
    scale = scale_ref[...].reshape(1, 1, 1, cpin)
    shift = shift_ref[...].reshape(1, 1, 1, cpin)
    xn = jnp.maximum(y_in * scale + shift, 0.0)        # BN1 + ReLU, fused into input stage
    pad_ref[:, 1:1 + h, 1:1 + w, :] = xn.astype(pad_ref.dtype)

    acc = _conv9(lambda dy, dx: pad_ref[0, dy:dy + h, dx:dx + w, :],
                 w_ref, h, w, cpin, tc)
    y_ref[...] = acc.reshape(1, h, w, tc).astype(y_ref.dtype)
    _update_stats(stats_ref, acc, pl.program_id(1))


# ---------------------------------------------------------------------------
# Shared pallas_call wrapper for both conv kernels
# ---------------------------------------------------------------------------
def _conv_call(kernel, in_arrays, in_specs, n, h, w, cpout, tc, pad_cin):
    n_co = cpout // tc
    return pl.pallas_call(
        kernel,
        grid=(n_co, n),                                          # (Cout blocks, batch)
        in_specs=in_specs,
        out_specs=(
            pl.BlockSpec((1, h, w, tc), lambda co, b: (b, 0, 0, co)),
            pl.BlockSpec((2, tc), lambda co, b: (0, co)),        # resident across batch axis
        ),
        out_shape=(
            jax.ShapeDtypeStruct((n, h, w, cpout), jnp.bfloat16),  # pre-BN conv output
            jax.ShapeDtypeStruct((2, cpout), jnp.float32),         # [sum, sum of squares]
        ),
        scratch_shapes=(pltpu.VMEM((1, h + 2, w + 2, pad_cin), jnp.bfloat16),),
        compiler_params=pltpu.CompilerParams(
            dimension_semantics=("parallel", "arbitrary"),        # megacore | BN reduction
            vmem_limit_bytes=VMEM_LIMIT),
    )(*in_arrays)


def maxpool_conv3x3(x_nhwc, w9, cpin, tc):
    n, hh, ww, cin = x_nhwc.shape
    assert hh % 2 == 0 and ww % 2 == 0, "MaxPool2d(2) path assumes even spatial dims"
    h, w = hh // 2, ww // 2
    cpout = w9.shape[-1]
    xr = x_nhwc.reshape(n, h, 2, w, 2 * cin)             # contiguous -> no data movement
    kern = functools.partial(_pool_conv_kernel, cin=cin, h=h, w=w, cpin=cpin, tc=tc)
    in_specs = (
        pl.BlockSpec((1, h, 2, w, 2 * cin), lambda co, b: (b, 0, 0, 0, 0)),
        pl.BlockSpec((9, cpin, tc), lambda co, b: (0, 0, co)),
    )
    return _conv_call(kern, (xr, w9), in_specs, n, h, w, cpout, tc, cpin)


def conv3x3_fused_bnrelu(y_prev, scale, shift, w9, tc):
    n, h, w, cpin = y_prev.shape
    cpout = w9.shape[-1]
    kern = functools.partial(_bnrelu_conv_kernel, h=h, w=w, cpin=cpin, tc=tc)
    in_specs = (
        pl.BlockSpec((1, h, w, cpin), lambda co, b: (b, 0, 0, 0)),
        pl.BlockSpec((1, cpin), lambda co, b: (0, 0)),
        pl.BlockSpec((1, cpin), lambda co, b: (0, 0)),
        pl.BlockSpec((9, cpin, tc), lambda co, b: (0, 0, co)),
    )
    return _conv_call(kern, (y_prev, scale, shift, w9), in_specs, n, h, w, cpout, tc, cpin)


# ---------------------------------------------------------------------------
# Kernel 3: final BN + ReLU epilogue (for the last conv)
# ---------------------------------------------------------------------------
def _bn_relu_kernel(y_ref, scale_ref, shift_ref, o_ref, *, cp):
    scale = scale_ref[...].reshape(1, 1, 1, cp)
    shift = shift_ref[...].reshape(1, 1, 1, cp)
    y = y_ref[...].astype(jnp.float32)
    o_ref[...] = jnp.maximum(y * scale + shift, 0.0).astype(o_ref.dtype)


def bn_relu(y, scale, shift, out_dtype):
    n, h, w, cp = y.shape
    kern = functools.partial(_bn_relu_kernel, cp=cp)
    return pl.pallas_call(
        kern,
        grid=(n,),
        in_specs=(
            pl.BlockSpec((1, h, w, cp), lambda b: (b, 0, 0, 0)),
            pl.BlockSpec((1, cp), lambda b: (0, 0)),
            pl.BlockSpec((1, cp), lambda b: (0, 0)),
        ),
        out_specs=pl.BlockSpec((1, h, w, cp), lambda b: (b, 0, 0, 0)),
        out_shape=jax.ShapeDtypeStruct((n, h, w, cp), out_dtype),
        compiler_params=pltpu.CompilerParams(
            dimension_semantics=("parallel",), vmem_limit_bytes=VMEM_LIMIT),
    )(y, scale, shift)


# ---------------------------------------------------------------------------
# Glue (O(C) parameter math + packing) and the full Down forward
# ---------------------------------------------------------------------------
def _bn_fold(stats, gamma_p, beta_p, count):
    # Training-mode BatchNorm: batch mean, biased variance over (N, H, W), eps=1e-5,
    # folded into per-channel scale/shift.  Padded channels get scale=shift=0.
    mean = stats[0] / count
    var = jnp.maximum(stats[1] / count - mean * mean, 0.0)
    inv = jax.lax.rsqrt(var + BN_EPS)
    scale = gamma_p * inv
    shift = beta_p - mean * scale
    return scale.reshape(1, -1), shift.reshape(1, -1)


def _pack_weight(w_hwio, cpin, cpout):
    kh, kw, cin, cout = w_hwio.shape
    wp = jnp.pad(w_hwio, ((0, 0), (0, 0), (0, cpin - cin), (0, cpout - cout)))
    return wp.reshape(kh * kw, cpin, cpout).astype(jnp.bfloat16)


def _pad_chan(v, cp):
    return jnp.pad(v, (0, cp - v.shape[0])).astype(jnp.float32)


def down_forward(x_nchw, params):
    """Down: MaxPool2d(2) -> (Conv3x3 -> BN -> ReLU) x 2.  NCHW in / NCHW out."""
    n, cin, h, w = x_nchw.shape
    cmid = params["w1"].shape[-1]
    cout = params["w2"].shape[-1]
    cpin, cpmid, cpout = (_round_up(c, LANES) for c in (cin, cmid, cout))
    tc_mid = 256 if cpmid % 256 == 0 else 128   # lane-dense Cout tiles (256 fills 2x256 MXU)
    tc_out = 256 if cpout % 256 == 0 else 128
    h2, w2 = h // 2, w // 2
    count = jnp.float32(n * h2 * w2)            # BN reduction size over (N, H, W)

    wk1 = _pack_weight(params["w1"], cpin, cpmid)
    wk2 = _pack_weight(params["w2"], cpmid, cpout)
    g1, be1 = _pad_chan(params["g1"], cpmid), _pad_chan(params["beta1"], cpmid)
    g2, be2 = _pad_chan(params["g2"], cpout), _pad_chan(params["beta2"], cpout)

    x = jnp.transpose(x_nchw, (0, 2, 3, 1))                   # NCHW -> NHWC (channels on lanes)

    y1, st1 = maxpool_conv3x3(x, wk1, cpin, tc_mid)           # pool + conv1 (pre-BN) + stats
    s1, sh1 = _bn_fold(st1, g1, be1, count)

    y2, st2 = conv3x3_fused_bnrelu(y1, s1, sh1, wk2, tc_out)  # BN1+ReLU fused into conv2
    s2, sh2 = _bn_fold(st2, g2, be2, count)

    out = bn_relu(y2, s2, sh2, x_nchw.dtype)                  # final BN2 + ReLU epilogue
    return jnp.transpose(out[..., :cout], (0, 3, 1, 2))       # drop channel pad, NHWC -> NCHW


# ---------------------------------------------------------------------------
# Deterministic parameter init (shapes from Down(in_channels, out_channels))
# ---------------------------------------------------------------------------
def init_down_params(key, in_channels, out_channels):
    mid_channels = out_channels  # DoubleConv default: mid = out
    k1, k2 = jax.random.split(key, 2)
    return {
        # HWIO conv weights (PyTorch OIHW (Cout,Cin,3,3) transposed to (3,3,Cin,Cout)).
        # Conv biases are omitted: under training-mode BatchNorm a per-channel bias is
        # exactly cancelled by the mean subtraction, so the forward output is identical.
        "w1": jax.random.normal(k1, (3, 3, in_channels, mid_channels), jnp.float32) * 0.1,
        "g1": jnp.ones((mid_channels,), jnp.float32),      # BN weight (fresh init = 1)
        "beta1": jnp.zeros((mid_channels,), jnp.float32),  # BN bias   (fresh init = 0)
        "w2": jax.random.normal(k2, (3, 3, mid_channels, out_channels), jnp.float32) * 0.1,
        "g2": jnp.ones((out_channels,), jnp.float32),
        "beta2": jnp.zeros((out_channels,), jnp.float32),
    }


if __name__ == "__main__":
    key = jax.random.PRNGKey(0)
    kx, kp = jax.random.split(key)

    in_channels, out_channels = 4, 8
    N, H, W = 2, 16, 16
    x = jax.random.normal(kx, (N, in_channels, H, W), jnp.float32)   # NCHW, like PyTorch

    params = init_down_params(kp, in_channels, out_channels)

    fwd = jax.jit(down_forward)
    y = jax.block_until_ready(fwd(x, params))

    assert y.shape == (N, out_channels, H // 2, W // 2), y.shape
    assert jnp.all(jnp.isfinite(y))
    assert jnp.all(y >= 0.0)  # final ReLU
    print("KERNEL_OK")
</pallas_src>

<mosaic_0001>
module attributes {stable_mosaic.version = 11 : i64} {
  func.func @_bn_relu_kernel(%arg0: i32, %arg1: memref<1x8x8x128xbf16, #tpu.memory_space<vmem>>, %arg2: memref<1x128xf32, #tpu.memory_space<vmem>>, %arg3: memref<1x128xf32, #tpu.memory_space<vmem>>, %arg4: memref<1x8x8x128xf32, #tpu.memory_space<vmem>>) attributes {dimension_semantics = [#tpu.dimension_semantics<parallel>], iteration_bounds = array<i64: 2>, scalar_prefetch = 0 : i64, scratch_operands = 0 : i64, tpu.core_type = #tpu.core_type<tc>, window_params = [{transform_indices = @transform_0, window_bounds = array<i64: 1, 8, 8, 128>}, {pipeline_mode = #tpu.pipeline_mode<synchronous>, transform_indices = @transform_1, window_bounds = array<i64: 1, 128>}, {pipeline_mode = #tpu.pipeline_mode<synchronous>, transform_indices = @transform_2, window_bounds = array<i64: 1, 128>}, {transform_indices = @transform_3, window_bounds = array<i64: 1, 8, 8, 128>}]} {
    %c0 = arith.constant 0 : index
    %c0_0 = arith.constant 0 : index
    %0 = vector.load %arg2[%c0, %c0_0] : memref<1x128xf32, #tpu.memory_space<vmem>>, vector<1x128xf32>
    %1 = vector.shape_cast %0 : vector<1x128xf32> to vector<1x1x1x128xf32>
    %c0_1 = arith.constant 0 : index
    %c0_2 = arith.constant 0 : index
    %2 = vector.load %arg3[%c0_1, %c0_2] : memref<1x128xf32, #tpu.memory_space<vmem>>, vector<1x128xf32>
    %3 = vector.shape_cast %2 : vector<1x128xf32> to vector<1x1x1x128xf32>
    %c0_3 = arith.constant 0 : index
    %c0_4 = arith.constant 0 : index
    %c0_5 = arith.constant 0 : index
    %c0_6 = arith.constant 0 : index
    %4 = vector.load %arg1[%c0_3, %c0_4, %c0_5, %c0_6] : memref<1x8x8x128xbf16, #tpu.memory_space<vmem>>, vector<1x8x8x128xbf16>
    %5 = arith.extf %4 : vector<1x8x8x128xbf16> to vector<1x8x8x128xf32>
    %6 = vector.broadcast %1 : vector<1x1x1x128xf32> to vector<1x8x8x128xf32>
    %7 = arith.mulf %5, %6 : vector<1x8x8x128xf32>
    %8 = vector.broadcast %3 : vector<1x1x1x128xf32> to vector<1x8x8x128xf32>
    %9 = arith.addf %7, %8 : vector<1x8x8x128xf32>
    %cst = arith.constant 0.000000e+00 : f32
    %10 = vector.broadcast %cst : f32 to vector<1x8x8x128xf32>
    %11 = arith.maximumf %9, %10 : vector<1x8x8x128xf32>
    %c0_7 = arith.constant 0 : index
    %c0_8 = arith.constant 0 : index
    %c0_9 = arith.constant 0 : index
    %c0_10 = arith.constant 0 : index
    %12 = vector.load %arg4[%c0_7, %c0_8, %c0_9, %c0_10] : memref<1x8x8x128xf32, #tpu.memory_space<vmem>>, vector<1x8x8x128xf32>
    tpu.vector_store %arg4[%c0_7, %c0_8, %c0_9, %c0_10], %11 {strides = array<i32>} : memref<1x8x8x128xf32, #tpu.memory_space<vmem>>, vector<1x8x8x128xf32>,
    return
  }
  func.func @transform_0(%arg0: i32) -> (i32, i32, i32, i32) {
    %c0_i32 = arith.constant 0 : i32
    %c0_i32_0 = arith.constant 0 : i32
    %c0_i32_1 = arith.constant 0 : i32
    %c0_i32_2 = arith.constant 0 : i32
    return %arg0, %c0_i32, %c0_i32_0, %c0_i32_1 : i32, i32, i32, i32
  }
  func.func @transform_1(%arg0: i32) -> (i32, i32) {
    %c0_i32 = arith.constant 0 : i32
    %c0_i32_0 = arith.constant 0 : i32
    %c0_i32_1 = arith.constant 0 : i32
    return %c0_i32, %c0_i32_0 : i32, i32
  }
  func.func @transform_2(%arg0: i32) -> (i32, i32) {
    %c0_i32 = arith.constant 0 : i32
    %c0_i32_0 = arith.constant 0 : i32
    %c0_i32_1 = arith.constant 0 : i32
    return %c0_i32, %c0_i32_0 : i32, i32
  }
  func.func @transform_3(%arg0: i32) -> (i32, i32, i32, i32) {
    %c0_i32 = arith.constant 0 : i32
    %c0_i32_0 = arith.constant 0 : i32
    %c0_i32_1 = arith.constant 0 : i32
    %c0_i32_2 = arith.constant 0 : i32
    return %arg0, %c0_i32, %c0_i32_0, %c0_i32_1 : i32, i32, i32, i32
  }
}

module attributes {stable_mosaic.version = 11 : i64} {
  func.func @_pool_conv_kernel(%arg0: i32, %arg1: i32, %arg2: memref<1x8x2x8x8xf32, #tpu.memory_space<vmem>>, %arg3: memref<9x128x128xbf16, #tpu.memory_space<vmem>>, %arg4: memref<1x8x8x128xbf16, #tpu.memory_space<vmem>>, %arg5: memref<2x128xf32, #tpu.memory_space<vmem>>, %arg6: memref<1x10x10x128xbf16, #tpu.memory_space<vmem>>) attributes {dimension_semantics = [#tpu.dimension_semantics<parallel>, #tpu.dimension_semantics<arbitrary>], iteration_bounds = array<i64: 1, 2>, scalar_prefetch = 0 : i64, scratch_operands = 1 : i64, tpu.core_type = #tpu.core_type<tc>, window_params = [{transform_indices = @transform_0, window_bounds = array<i64: 1, 8, 2, 8, 8>}, {transform_indices = @transform_1, window_bounds = array<i64: 9, 128, 128>}, {transform_indices = @transform_2, window_bounds = array<i64: 1, 8, 8, 128>}, {transform_indices = @transform_3, window_bounds = array<i64: 2, 128>}]} {
    %c0_i32 = arith.constant 0 : i32
    %0 = arith.cmpi eq, %arg1, %c0_i32 : i32
    %1 = arith.extui %0 : i1 to i32
    %c0_i32_0 = arith.constant 0 : i32
    %2 = arith.cmpi ne, %1, %c0_i32_0 : i32
    scf.if %2 {
      %cst_88 = arith.constant 0.000000e+00 : bf16
      %93 = vector.broadcast %cst_88 : bf16 to vector<1x10x10x128xbf16>
      %c0_89 = arith.constant 0 : index
      %c0_90 = arith.constant 0 : index
      %c0_91 = arith.constant 0 : index
      %c0_92 = arith.constant 0 : index
      %94 = vector.load %arg6[%c0_89, %c0_90, %c0_91, %c0_92] : memref<1x10x10x128xbf16, #tpu.memory_space<vmem>>, vector<1x10x10x128xbf16>
      tpu.vector_store %arg6[%c0_89, %c0_90, %c0_91, %c0_92], %93 {strides = array<i32>} : memref<1x10x10x128xbf16, #tpu.memory_space<vmem>>, vector<1x10x10x128xbf16>,
    } else {
    }
    %c0 = arith.constant 0 : index
    %c0_1 = arith.constant 0 : index
    %c0_2 = arith.constant 0 : index
    %c0_3 = arith.constant 0 : index
    %c0_4 = arith.constant 0 : index
    %3 = vector.load %arg2[%c0, %c0_1, %c0_2, %c0_3, %c0_4] : memref<1x8x2x8x8xf32, #tpu.memory_space<vmem>>, vector<1x8x2x8x8xf32>
    %4 = vector.extract_strided_slice %3 {offsets = [0, 0, 0, 0, 0], sizes = [1, 8, 1, 8, 8], strides = [1, 1, 1, 1, 1]} : vector<1x8x2x8x8xf32> to vector<1x8x1x8x8xf32>
    %5 = vector.shape_cast %4 : vector<1x8x1x8x8xf32> to vector<1x8x8x8xf32>
    %6 = vector.extract_strided_slice %3 {offsets = [0, 0, 1, 0, 0], sizes = [1, 8, 1, 8, 8], strides = [1, 1, 1, 1, 1]} : vector<1x8x2x8x8xf32> to vector<1x8x1x8x8xf32>
    %7 = vector.shape_cast %6 : vector<1x8x1x8x8xf32> to vector<1x8x8x8xf32>
    %8 = arith.maximumf %5, %7 : vector<1x8x8x8xf32>
    %9 = vector.extract_strided_slice %8 {offsets = [0, 0, 0, 0], sizes = [1, 8, 8, 4], strides = [1, 1, 1, 1]} : vector<1x8x8x8xf32> to vector<1x8x8x4xf32>
    %10 = vector.extract_strided_slice %8 {offsets = [0, 0, 0, 4], sizes = [1, 8, 8, 4], strides = [1, 1, 1, 1]} : vector<1x8x8x8xf32> to vector<1x8x8x4xf32>
    %11 = arith.maximumf %9, %10 : vector<1x8x8x4xf32>
    %12 = arith.truncf %11 : vector<1x8x8x4xf32> to vector<1x8x8x4xbf16>
    %c0_5 = arith.constant 0 : index
    %c1 = arith.constant 1 : index
    %c1_6 = arith.constant 1 : index
    %c0_7 = arith.constant 0 : index
    %13 = vector.load %arg6[%c0_5, %c1, %c1_6, %c0_7] : memref<1x10x10x128xbf16, #tpu.memory_space<vmem>>, vector<1x8x8x4xbf16>
    tpu.vector_store %arg6[%c0_5, %c1, %c1_6, %c0_7], %12 {strides = array<i32>} : memref<1x10x10x128xbf16, #tpu.memory_space<vmem>>, vector<1x8x8x4xbf16>,
    %c0_8 = arith.constant 0 : index
    %c0_9 = arith.constant 0 : index
    %c0_10 = arith.constant 0 : index
    %c0_11 = arith.constant 0 : index
    %14 = vector.load %arg6[%c0_8, %c0_9, %c0_10, %c0_11] : memref<1x10x10x128xbf16, #tpu.memory_space<vmem>>, vector<1x8x8x128xbf16>
    %15 = vector.shape_cast %14 : vector<1x8x8x128xbf16> to vector<8x8x128xbf16>
    %16 = vector.shape_cast %15 : vector<8x8x128xbf16> to vector<64x128xbf16>
    %c0_12 = arith.constant 0 : index
    %c0_13 = arith.constant 0 : index
    %c0_14 = arith.constant 0 : index
    %17 = vector.load %arg3[%c0_12, %c0_13, %c0_14] : memref<9x128x128xbf16, #tpu.memory_space<vmem>>, vector<1x128x128xbf16>
    %18 = vector.shape_cast %17 : vector<1x128x128xbf16> to vector<128x128xbf16>
    %cst = arith.constant dense<0.000000e+00> : vector<64x128xf32>
    %19 = tpu.matmul %16, %18, %cst {dimension_numbers = #tpu.dot_dimension_numbers<[1], [0], [0], [1], [0, 0, 1, 1], [], []>} : vector<64x128xbf16>, vector<128x128xbf16>, vector<64x128xf32> -> vector<64x128xf32>
    %c0_15 = arith.constant 0 : index
    %c0_16 = arith.constant 0 : index
    %c1_17 = arith.constant 1 : index
    %c0_18 = arith.constant 0 : index
    %20 = vector.load %arg6[%c0_15, %c0_16, %c1_17, %c0_18] : memref<1x10x10x128xbf16, #tpu.memory_space<vmem>>, vector<1x8x8x128xbf16>
    %21 = vector.shape_cast %20 : vector<1x8x8x128xbf16> to vector<8x8x128xbf16>
    %22 = vector.shape_cast %21 : vector<8x8x128xbf16> to vector<64x128xbf16>
    %c1_19 = arith.constant 1 : index
    %c0_20 = arith.constant 0 : index
    %c0_21 = arith.constant 0 : index
    %23 = vector.load %arg3[%c1_19, %c0_20, %c0_21] : memref<9x128x128xbf16, #tpu.memory_space<vmem>>, vector<1x128x128xbf16>
    %24 = vector.shape_cast %23 : vector<1x128x128xbf16> to vector<128x128xbf16>
    %cst_22 = arith.constant dense<0.000000e+00> : vector<64x128xf32>
    %25 = tpu.matmul %22, %24, %cst_22 {dimension_numbers = #tpu.dot_dimension_numbers<[1], [0], [0], [1], [0, 0, 1, 1], [], []>} : vector<64x128xbf16>, vector<128x128xbf16>, vector<64x128xf32> -> vector<64x128xf32>
    %26 = arith.addf %19, %25 : vector<64x128xf32>
    %c0_23 = arith.constant 0 : index
    %c0_24 = arith.constant 0 : index
    %c2 = arith.constant 2 : index
    %c0_25 = arith.constant 0 : index
    %27 = vector.load %arg6[%c0_23, %c0_24, %c2, %c0_25] : memref<1x10x10x128xbf16, #tpu.memory_space<vmem>>, vector<1x8x8x128xbf16>
    %28 = vector.shape_cast %27 : vector<1x8x8x128xbf16> to vector<8x8x128xbf16>
    %29 = vector.shape_cast %28 : vector<8x8x128xbf16> to vector<64x128xbf16>
    %c2_26 = arith.constant 2 : index
    %c0_27 = arith.constant 0 : index
    %c0_28 = arith.constant 0 : index
    %30 = vector.load %arg3[%c2_26, %c0_27, %c0_28] : memref<9x128x128xbf16, #tpu.memory_space<vmem>>, vector<1x128x128xbf16>
    %31 = vector.shape_cast %30 : vector<1x128x128xbf16> to vector<128x128xbf16>
    %cst_29 = arith.constant dense<0.000000e+00> : vector<64x128xf32>
    %32 = tpu.matmul %29, %31, %cst_29 {dimension_numbers = #tpu.dot_dimension_numbers<[1], [0], [0], [1], [0, 0, 1, 1], [], []>} : vector<64x128xbf16>, vector<128x128xbf16>, vector<64x128xf32> -> vector<64x128xf32>
    %33 = arith.addf %26, %32 : vector<64x128xf32>
    %c0_30 = arith.constant 0 : index
    %c1_31 = arith.constant 1 : index
    %c0_32 = arith.constant 0 : index
    %c0_33 = arith.constant 0 : index
    %34 = vector.load %arg6[%c0_30, %c1_31, %c0_32, %c0_33] : memref<1x10x10x128xbf16, #tpu.memory_space<vmem>>, vector<1x8x8x128xbf16>
    %35 = vector.shape_cast %34 : vector<1x8x8x128xbf16> to vector<8x8x128xbf16>
    %36 = vector.shape_cast %35 : vector<8x8x128xbf16> to vector<64x128xbf16>
    %c3 = arith.constant 3 : index
    %c0_34 = arith.constant 0 : index
    %c0_35 = arith.constant 0 : index
    %37 = vector.load %arg3[%c3, %c0_34, %c0_35] : memref<9x128x128xbf16, #tpu.memory_space<vmem>>, vector<1x128x128xbf16>
    %38 = vector.shape_cast %37 : vector<1x128x128xbf16> to vector<128x128xbf16>
    %cst_36 = arith.constant dense<0.000000e+00> : vector<64x128xf32>
    %39 = tpu.matmul %36, %38, %cst_36 {dimension_numbers = #tpu.dot_dimension_numbers<[1], [0], [0], [1], [0, 0, 1, 1], [], []>} : vector<64x128xbf16>, vector<128x128xbf16>, vector<64x128xf32> -> vector<64x128xf32>
    %40 = arith.addf %33, %39 : vector<64x128xf32>
    %c0_37 = arith.constant 0 : index
    %c1_38 = arith.constant 1 : index
    %c1_39 = arith.constant 1 : index
    %c0_40 = arith.constant 0 : index
    %41 = vector.load %arg6[%c0_37, %c1_38, %c1_39, %c0_40] : memref<1x10x10x128xbf16, #tpu.memory_space<vmem>>, vector<1x8x8x128xbf16>
    %42 = vector.shape_cast %41 : vector<1x8x8x128xbf16> to vector<8x8x128xbf16>
    %43 = vector.shape_cast %42 : vector<8x8x128xbf16> to vector<64x128xbf16>
    %c4 = arith.constant 4 : index
    %c0_41 = arith.constant 0 : index
    %c0_42 = arith.constant 0 : index
    %44 = vector.load %arg3[%c4, %c0_41, %c0_42] : memref<9x128x128xbf16, #tpu.memory_space<vmem>>, vector<1x128x128xbf16>
    %45 = vector.shape_cast %44 : vector<1x128x128xbf16> to vector<128x128xbf16>
    %cst_43 = arith.constant dense<0.000000e+00> : vector<64x128xf32>
    %46 = tpu.matmul %43, %45, %cst_43 {dimension_numbers = #tpu.dot_dimension_numbers<[1], [0], [0], [1], [0, 0, 1, 1], [], []>} : vector<64x128xbf16>, vector<128x128xbf16>, vector<64x128xf32> -> vector<64x128xf32>
    %47 = arith.addf %40, %46 : vector<64x128xf32>
    %c0_44 = arith.constant 0 : index
    %c1_45 = arith.constant 1 : index
    %c2_46 = arith.constant 2 : index
    %c0_47 = arith.constant 0 : index
    %48 = vector.load %arg6[%c0_44, %c1_45, %c2_46, %c0_47] : memref<1x10x10x128xbf16, #tpu.memory_space<vmem>>, vector<1x8x8x128xbf16>
    %49 = vector.shape_cast %48 : vector<1x8x8x128xbf16> to vector<8x8x128xbf16>
    %50 = vector.shape_cast %49 : vector<8x8x128xbf16> to vector<64x128xbf16>
    %c5 = arith.constant 5 : index
    %c0_48 = arith.constant 0 : index
    %c0_49 = arith.constant 0 : index
    %51 = vector.load %arg3[%c5, %c0_48, %c0_49] : memref<9x128x128xbf16, #tpu.memory_space<vmem>>, vector<1x128x128xbf16>
    %52 = vector.shape_cast %51 : vector<1x128x128xbf16> to vector<128x128xbf16>
    %cst_50 = arith.constant dense<0.000000e+00> : vector<64x128xf32>
    %53 = tpu.matmul %50, %52, %cst_50 {dimension_numbers = #tpu.dot_dimension_numbers<[1], [0], [0], [1], [0, 0, 1, 1], [], []>} : vector<64x128xbf16>, vector<128x128xbf16>, vector<64x128xf32> -> vector<64x128xf32>
    %54 = arith.addf %47, %53 : vector<64x128xf32>
    %c0_51 = arith.constant 0 : index
    %c2_52 = arith.constant 2 : index
    %c0_53 = arith.constant 0 : index
    %c0_54 = arith.constant 0 : index
    %55 = vector.load %arg6[%c0_51, %c2_52, %c0_53, %c0_54] : memref<1x10x10x128xbf16, #tpu.memory_space<vmem>>, vector<1x8x8x128xbf16>
    %56 = vector.shape_cast %55 : vector<1x8x8x128xbf16> to vector<8x8x128xbf16>
    %57 = vector.shape_cast %56 : vector<8x8x128xbf16> to vector<64x128xbf16>
    %c6 = arith.constant 6 : index
    %c0_55 = arith.constant 0 : index
    %c0_56 = arith.constant 0 : index
    %58 = vector.load %arg3[%c6, %c0_55, %c0_56] : memref<9x128x128xbf16, #tpu.memory_space<vmem>>, vector<1x128x128xbf16>
    %59 = vector.shape_cast %58 : vector<1x128x128xbf16> to vector<128x128xbf16>
    %cst_57 = arith.constant dense<0.000000e+00> : vector<64x128xf32>
    %60 = tpu.matmul %57, %59, %cst_57 {dimension_numbers = #tpu.dot_dimension_numbers<[1], [0], [0], [1], [0, 0, 1, 1], [], []>} : vector<64x128xbf16>, vector<128x128xbf16>, vector<64x128xf32> -> vector<64x128xf32>
    %61 = arith.addf %54, %60 : vector<64x128xf32>
    %c0_58 = arith.constant 0 : index
    %c2_59 = arith.constant 2 : index
    %c1_60 = arith.constant 1 : index
    %c0_61 = arith.constant 0 : index
    %62 = vector.load %arg6[%c0_58, %c2_59, %c1_60, %c0_61] : memref<1x10x10x128xbf16, #tpu.memory_space<vmem>>, vector<1x8x8x128xbf16>
    %63 = vector.shape_cast %62 : vector<1x8x8x128xbf16> to vector<8x8x128xbf16>
    %64 = vector.shape_cast %63 : vector<8x8x128xbf16> to vector<64x128xbf16>
    %c7 = arith.constant 7 : index
    %c0_62 = arith.constant 0 : index
    %c0_63 = arith.constant 0 : index
    %65 = vector.load %arg3[%c7, %c0_62, %c0_63] : memref<9x128x128xbf16, #tpu.memory_space<vmem>>, vector<1x128x128xbf16>
    %66 = vector.shape_cast %65 : vector<1x128x128xbf16> to vector<128x128xbf16>
    %cst_64 = arith.constant dense<0.000000e+00> : vector<64x128xf32>
    %67 = tpu.matmul %64, %66, %cst_64 {dimension_numbers = #tpu.dot_dimension_numbers<[1], [0], [0], [1], [0, 0, 1, 1], [], []>} : vector<64x128xbf16>, vector<128x128xbf16>, vector<64x128xf32> -> vector<64x128xf32>
    %68 = arith.addf %61, %67 : vector<64x128xf32>
    %c0_65 = arith.constant 0 : index
    %c2_66 = arith.constant 2 : index
    %c2_67 = arith.constant 2 : index
    %c0_68 = arith.constant 0 : index
    %69 = vector.load %arg6[%c0_65, %c2_66, %c2_67, %c0_68] : memref<1x10x10x128xbf16, #tpu.memory_space<vmem>>, vector<1x8x8x128xbf16>
    %70 = vector.shape_cast %69 : vector<1x8x8x128xbf16> to vector<8x8x128xbf16>
    %71 = vector.shape_cast %70 : vector<8x8x128xbf16> to vector<64x128xbf16>
    %c8 = arith.constant 8 : index
    %c0_69 = arith.constant 0 : index
    %c0_70 = arith.constant 0 : index
    %72 = vector.load %arg3[%c8, %c0_69, %c0_70] : memref<9x128x128xbf16, #tpu.memory_space<vmem>>, vector<1x128x128xbf16>
    %73 = vector.shape_cast %72 : vector<1x128x128xbf16> to vector<128x128xbf16>
    %cst_71 = arith.constant dense<0.000000e+00> : vector<64x128xf32>
    %74 = tpu.matmul %71, %73, %cst_71 {dimension_numbers = #tpu.dot_dimension_numbers<[1], [0], [0], [1], [0, 0, 1, 1], [], []>} : vector<64x128xbf16>, vector<128x128xbf16>, vector<64x128xf32> -> vector<64x128xf32>
    %75 = arith.addf %68, %74 : vector<64x128xf32>
    %76 = vector.shape_cast %75 : vector<64x128xf32> to vector<1x8x8x128xf32>
    %77 = arith.truncf %76 : vector<1x8x8x128xf32> to vector<1x8x8x128xbf16>
    %c0_72 = arith.constant 0 : index
    %c0_73 = arith.constant 0 : index
    %c0_74 = arith.constant 0 : index
    %c0_75 = arith.constant 0 : index
    %78 = vector.load %arg4[%c0_72, %c0_73, %c0_74, %c0_75] : memref<1x8x8x128xbf16, #tpu.memory_space<vmem>>, vector<1x8x8x128xbf16>
    tpu.vector_store %arg4[%c0_72, %c0_73, %c0_74, %c0_75], %77 {strides = array<i32>} : memref<1x8x8x128xbf16, #tpu.memory_space<vmem>>, vector<1x8x8x128xbf16>,
    %c0_i32_76 = arith.constant 0 : i32
    %79 = arith.cmpi eq, %arg1, %c0_i32_76 : i32
    %80 = arith.extui %79 : i1 to i32
    %c0_i32_77 = arith.constant 0 : i32
    %81 = arith.cmpi ne, %80, %c0_i32_77 : i32
    scf.if %81 {
      %cst_88 = arith.constant 0.000000e+00 : f32
      %93 = vector.broadcast %cst_88 : f32 to vector<2x128xf32>
      %c0_89 = arith.constant 0 : index
      %c0_90 = arith.constant 0 : index
      %94 = vector.load %arg5[%c0_89, %c0_90] : memref<2x128xf32, #tpu.memory_space<vmem>>, vector<2x128xf32>
      tpu.vector_store %arg5[%c0_89, %c0_90], %93 {strides = array<i32>} : memref<2x128xf32, #tpu.memory_space<vmem>>, vector<2x128xf32>,
    } else {
    }
    %c0_78 = arith.constant 0 : index
    %c0_79 = arith.constant 0 : index
    %82 = vector.load %arg5[%c0_78, %c0_79] : memref<2x128xf32, #tpu.memory_space<vmem>>, vector<1x128xf32>
    %cst_80 = arith.constant dense<0.000000e+00> : vector<128xf32>
    %83 = vector.multi_reduction <add>, %75, %cst_80 [0] : vector<64x128xf32> to vector<128xf32>
    %84 = vector.shape_cast %83 : vector<128xf32> to vector<1x128xf32>
    %85 = arith.addf %82, %84 : vector<1x128xf32>
    %c0_81 = arith.constant 0 : index
    %c0_82 = arith.constant 0 : index
    %86 = vector.load %arg5[%c0_81, %c0_82] : memref<2x128xf32, #tpu.memory_space<vmem>>, vector<1x128xf32>
    tpu.vector_store %arg5[%c0_81, %c0_82], %85 {strides = array<i32>} : memref<2x128xf32, #tpu.memory_space<vmem>>, vector<1x128xf32>,
    %c1_83 = arith.constant 1 : index
    %c0_84 = arith.constant 0 : index
    %87 = vector.load %arg5[%c1_83, %c0_84] : memref<2x128xf32, #tpu.memory_space<vmem>>, vector<1x128xf32>
    %88 = arith.mulf %75, %75 : vector<64x128xf32>
    %cst_85 = arith.constant dense<0.000000e+00> : vector<128xf32>
    %89 = vector.multi_reduction <add>, %88, %cst_85 [0] : vector<64x128xf32> to vector<128xf32>
    %90 = vector.shape_cast %89 : vector<128xf32> to vector<1x128xf32>
    %91 = arith.addf %87, %90 : vector<1x128xf32>
    %c1_86 = arith.constant 1 : index
    %c0_87 = arith.constant 0 : index
    %92 = vector.load %arg5[%c1_86, %c0_87] : memref<2x128xf32, #tpu.memory_space<vmem>>, vector<1x128xf32>
    tpu.vector_store %arg5[%c1_86, %c0_87], %91 {strides = array<i32>} : memref<2x128xf32, #tpu.memory_space<vmem>>, vector<1x128xf32>,
    return
  }
  func.func @transform_0(%arg0: i32, %arg1: i32) -> (i32, i32, i32, i32, i32) {
    %c0_i32 = arith.constant 0 : i32
    %c0_i32_0 = arith.constant 0 : i32
    %c0_i32_1 = arith.constant 0 : i32
    %c0_i32_2 = arith.constant 0 : i32
    %c0_i32_3 = arith.constant 0 : i32
    return %arg1, %c0_i32, %c0_i32_0, %c0_i32_1, %c0_i32_2 : i32, i32, i32, i32, i32
  }
  func.func @transform_1(%arg0: i32, %arg1: i32) -> (i32, i32, i32) {
    %c0_i32 = arith.constant 0 : i32
    %c0_i32_0 = arith.constant 0 : i32
    %c0_i32_1 = arith.constant 0 : i32
    return %c0_i32, %c0_i32_0, %arg0 : i32, i32, i32
  }
  func.func @transform_2(%arg0: i32, %arg1: i32) -> (i32, i32, i32, i32) {
    %c0_i32 = arith.constant 0 : i32
    %c0_i32_0 = arith.constant 0 : i32
    %c0_i32_1 = arith.constant 0 : i32
    return %arg1, %c0_i32, %c0_i32_0, %arg0 : i32, i32, i32, i32
  }
  func.func @transform_3(%arg0: i32, %arg1: i32) -> (i32, i32) {
    %c0_i32 = arith.constant 0 : i32
    %c0_i32_0 = arith.constant 0 : i32
    return %c0_i32, %arg0 : i32, i32
  }
}

module attributes {stable_mosaic.version = 11 : i64} {
  func.func @_bnrelu_conv_kernel(%arg0: i32, %arg1: i32, %arg2: memref<1x8x8x128xbf16, #tpu.memory_space<vmem>>, %arg3: memref<1x128xf32, #tpu.memory_space<vmem>>, %arg4: memref<1x128xf32, #tpu.memory_space<vmem>>, %arg5: memref<9x128x128xbf16, #tpu.memory_space<vmem>>, %arg6: memref<1x8x8x128xbf16, #tpu.memory_space<vmem>>, %arg7: memref<2x128xf32, #tpu.memory_space<vmem>>, %arg8: memref<1x10x10x128xbf16, #tpu.memory_space<vmem>>) attributes {dimension_semantics = [#tpu.dimension_semantics<parallel>, #tpu.dimension_semantics<arbitrary>], iteration_bounds = array<i64: 1, 2>, scalar_prefetch = 0 : i64, scratch_operands = 1 : i64, tpu.core_type = #tpu.core_type<tc>, window_params = [{transform_indices = @transform_0, window_bounds = array<i64: 1, 8, 8, 128>}, {pipeline_mode = #tpu.pipeline_mode<synchronous>, transform_indices = @transform_1, window_bounds = array<i64: 1, 128>}, {pipeline_mode = #tpu.pipeline_mode<synchronous>, transform_indices = @transform_2, window_bounds = array<i64: 1, 128>}, {transform_indices = @transform_3, window_bounds = array<i64: 9, 128, 128>}, {transform_indices = @transform_4, window_bounds = array<i64: 1, 8, 8, 128>}, {transform_indices = @transform_5, window_bounds = array<i64: 2, 128>}]} {
    %c0_i32 = arith.constant 0 : i32
    %0 = arith.cmpi eq, %arg1, %c0_i32 : i32
    %1 = arith.extui %0 : i1 to i32
    %c0_i32_0 = arith.constant 0 : i32
    %2 = arith.cmpi ne, %1, %c0_i32_0 : i32
    scf.if %2 {
      %cst_92 = arith.constant 0.000000e+00 : bf16
      %96 = vector.broadcast %cst_92 : bf16 to vector<1x10x10x128xbf16>
      %c0_93 = arith.constant 0 : index
      %c0_94 = arith.constant 0 : index
      %c0_95 = arith.constant 0 : index
      %c0_96 = arith.constant 0 : index
      %97 = vector.load %arg8[%c0_93, %c0_94, %c0_95, %c0_96] : memref<1x10x10x128xbf16, #tpu.memory_space<vmem>>, vector<1x10x10x128xbf16>
      tpu.vector_store %arg8[%c0_93, %c0_94, %c0_95, %c0_96], %96 {strides = array<i32>} : memref<1x10x10x128xbf16, #tpu.memory_space<vmem>>, vector<1x10x10x128xbf16>,
    } else {
    }
    %c0 = arith.constant 0 : index
    %c0_1 = arith.constant 0 : index
    %c0_2 = arith.constant 0 : index
    %c0_3 = arith.constant 0 : index
    %3 = vector.load %arg2[%c0, %c0_1, %c0_2, %c0_3] : memref<1x8x8x128xbf16, #tpu.memory_space<vmem>>, vector<1x8x8x128xbf16>
    %4 = arith.extf %3 : vector<1x8x8x128xbf16> to vector<1x8x8x128xf32>
    %c0_4 = arith.constant 0 : index
    %c0_5 = arith.constant 0 : index
    %5 = vector.load %arg3[%c0_4, %c0_5] : memref<1x128xf32, #tpu.memory_space<vmem>>, vector<1x128xf32>
    %6 = vector.shape_cast %5 : vector<1x128xf32> to vector<1x1x1x128xf32>
    %c0_6 = arith.constant 0 : index
    %c0_7 = arith.constant 0 : index
    %7 = vector.load %arg4[%c0_6, %c0_7] : memref<1x128xf32, #tpu.memory_space<vmem>>, vector<1x128xf32>
    %8 = vector.shape_cast %7 : vector<1x128xf32> to vector<1x1x1x128xf32>
    %9 = vector.broadcast %6 : vector<1x1x1x128xf32> to vector<1x8x8x128xf32>
    %10 = arith.mulf %4, %9 : vector<1x8x8x128xf32>
    %11 = vector.broadcast %8 : vector<1x1x1x128xf32> to vector<1x8x8x128xf32>
    %12 = arith.addf %10, %11 : vector<1x8x8x128xf32>
    %cst = arith.constant 0.000000e+00 : f32
    %13 = vector.broadcast %cst : f32 to vector<1x8x8x128xf32>
    %14 = arith.maximumf %12, %13 : vector<1x8x8x128xf32>
    %15 = arith.truncf %14 : vector<1x8x8x128xf32> to vector<1x8x8x128xbf16>
    %c0_8 = arith.constant 0 : index
    %c1 = arith.constant 1 : index
    %c1_9 = arith.constant 1 : index
    %c0_10 = arith.constant 0 : index
    %16 = vector.load %arg8[%c0_8, %c1, %c1_9, %c0_10] : memref<1x10x10x128xbf16, #tpu.memory_space<vmem>>, vector<1x8x8x128xbf16>
    tpu.vector_store %arg8[%c0_8, %c1, %c1_9, %c0_10], %15 {strides = array<i32>} : memref<1x10x10x128xbf16, #tpu.memory_space<vmem>>, vector<1x8x8x128xbf16>,
    %c0_11 = arith.constant 0 : index
    %c0_12 = arith.constant 0 : index
    %c0_13 = arith.constant 0 : index
    %c0_14 = arith.constant 0 : index
    %17 = vector.load %arg8[%c0_11, %c0_12, %c0_13, %c0_14] : memref<1x10x10x128xbf16, #tpu.memory_space<vmem>>, vector<1x8x8x128xbf16>
    %18 = vector.shape_cast %17 : vector<1x8x8x128xbf16> to vector<8x8x128xbf16>
    %19 = vector.shape_cast %18 : vector<8x8x128xbf16> to vector<64x128xbf16>
    %c0_15 = arith.constant 0 : index
    %c0_16 = arith.constant 0 : index
    %c0_17 = arith.constant 0 : index
    %20 = vector.load %arg5[%c0_15, %c0_16, %c0_17] : memref<9x128x128xbf16, #tpu.memory_space<vmem>>, vector<1x128x128xbf16>
    %21 = vector.shape_cast %20 : vector<1x128x128xbf16> to vector<128x128xbf16>
    %cst_18 = arith.constant dense<0.000000e+00> : vector<64x128xf32>
    %22 = tpu.matmul %19, %21, %cst_18 {dimension_numbers = #tpu.dot_dimension_numbers<[1], [0], [0], [1], [0, 0, 1, 1], [], []>} : vector<64x128xbf16>, vector<128x128xbf16>, vector<64x128xf32> -> vector<64x128xf32>
    %c0_19 = arith.constant 0 : index
    %c0_20 = arith.constant 0 : index
    %c1_21 = arith.constant 1 : index
    %c0_22 = arith.constant 0 : index
    %23 = vector.load %arg8[%c0_19, %c0_20, %c1_21, %c0_22] : memref<1x10x10x128xbf16, #tpu.memory_space<vmem>>, vector<1x8x8x128xbf16>
    %24 = vector.shape_cast %23 : vector<1x8x8x128xbf16> to vector<8x8x128xbf16>
    %25 = vector.shape_cast %24 : vector<8x8x128xbf16> to vector<64x128xbf16>
    %c1_23 = arith.constant 1 : index
    %c0_24 = arith.constant 0 : index
    %c0_25 = arith.constant 0 : index
    %26 = vector.load %arg5[%c1_23, %c0_24, %c0_25] : memref<9x128x128xbf16, #tpu.memory_space<vmem>>, vector<1x128x128xbf16>
    %27 = vector.shape_cast %26 : vector<1x128x128xbf16> to vector<128x128xbf16>
    %cst_26 = arith.constant dense<0.000000e+00> : vector<64x128xf32>
    %28 = tpu.matmul %25, %27, %cst_26 {dimension_numbers = #tpu.dot_dimension_numbers<[1], [0], [0], [1], [0, 0, 1, 1], [], []>} : vector<64x128xbf16>, vector<128x128xbf16>, vector<64x128xf32> -> vector<64x128xf32>
    %29 = arith.addf %22, %28 : vector<64x128xf32>
    %c0_27 = arith.constant 0 : index
    %c0_28 = arith.constant 0 : index
    %c2 = arith.constant 2 : index
    %c0_29 = arith.constant 0 : index
    %30 = vector.load %arg8[%c0_27, %c0_28, %c2, %c0_29] : memref<1x10x10x128xbf16, #tpu.memory_space<vmem>>, vector<1x8x8x128xbf16>
    %31 = vector.shape_cast %30 : vector<1x8x8x128xbf16> to vector<8x8x128xbf16>
    %32 = vector.shape_cast %31 : vector<8x8x128xbf16> to vector<64x128xbf16>
    %c2_30 = arith.constant 2 : index
    %c0_31 = arith.constant 0 : index
    %c0_32 = arith.constant 0 : index
    %33 = vector.load %arg5[%c2_30, %c0_31, %c0_32] : memref<9x128x128xbf16, #tpu.memory_space<vmem>>, vector<1x128x128xbf16>
    %34 = vector.shape_cast %33 : vector<1x128x128xbf16> to vector<128x128xbf16>
    %cst_33 = arith.constant dense<0.000000e+00> : vector<64x128xf32>
    %35 = tpu.matmul %32, %34, %cst_33 {dimension_numbers = #tpu.dot_dimension_numbers<[1], [0], [0], [1], [0, 0, 1, 1], [], []>} : vector<64x128xbf16>, vector<128x128xbf16>, vector<64x128xf32> -> vector<64x128xf32>
    %36 = arith.addf %29, %35 : vector<64x128xf32>
    %c0_34 = arith.constant 0 : index
    %c1_35 = arith.constant 1 : index
    %c0_36 = arith.constant 0 : index
    %c0_37 = arith.constant 0 : index
    %37 = vector.load %arg8[%c0_34, %c1_35, %c0_36, %c0_37] : memref<1x10x10x128xbf16, #tpu.memory_space<vmem>>, vector<1x8x8x128xbf16>
    %38 = vector.shape_cast %37 : vector<1x8x8x128xbf16> to vector<8x8x128xbf16>
    %39 = vector.shape_cast %38 : vector<8x8x128xbf16> to vector<64x128xbf16>
    %c3 = arith.constant 3 : index
    %c0_38 = arith.constant 0 : index
    %c0_39 = arith.constant 0 : index
    %40 = vector.load %arg5[%c3, %c0_38, %c0_39] : memref<9x128x128xbf16, #tpu.memory_space<vmem>>, vector<1x128x128xbf16>
    %41 = vector.shape_cast %40 : vector<1x128x128xbf16> to vector<128x128xbf16>
    %cst_40 = arith.constant dense<0.000000e+00> : vector<64x128xf32>
    %42 = tpu.matmul %39, %41, %cst_40 {dimension_numbers = #tpu.dot_dimension_numbers<[1], [0], [0], [1], [0, 0, 1, 1], [], []>} : vector<64x128xbf16>, vector<128x128xbf16>, vector<64x128xf32> -> vector<64x128xf32>
    %43 = arith.addf %36, %42 : vector<64x128xf32>
    %c0_41 = arith.constant 0 : index
    %c1_42 = arith.constant 1 : index
    %c1_43 = arith.constant 1 : index
    %c0_44 = arith.constant 0 : index
    %44 = vector.load %arg8[%c0_41, %c1_42, %c1_43, %c0_44] : memref<1x10x10x128xbf16, #tpu.memory_space<vmem>>, vector<1x8x8x128xbf16>
    %45 = vector.shape_cast %44 : vector<1x8x8x128xbf16> to vector<8x8x128xbf16>
    %46 = vector.shape_cast %45 : vector<8x8x128xbf16> to vector<64x128xbf16>
    %c4 = arith.constant 4 : index
    %c0_45 = arith.constant 0 : index
    %c0_46 = arith.constant 0 : index
    %47 = vector.load %arg5[%c4, %c0_45, %c0_46] : memref<9x128x128xbf16, #tpu.memory_space<vmem>>, vector<1x128x128xbf16>
    %48 = vector.shape_cast %47 : vector<1x128x128xbf16> to vector<128x128xbf16>
    %cst_47 = arith.constant dense<0.000000e+00> : vector<64x128xf32>
    %49 = tpu.matmul %46, %48, %cst_47 {dimension_numbers = #tpu.dot_dimension_numbers<[1], [0], [0], [1], [0, 0, 1, 1], [], []>} : vector<64x128xbf16>, vector<128x128xbf16>, vector<64x128xf32> -> vector<64x128xf32>
    %50 = arith.addf %43, %49 : vector<64x128xf32>
    %c0_48 = arith.constant 0 : index
    %c1_49 = arith.constant 1 : index
    %c2_50 = arith.constant 2 : index
    %c0_51 = arith.constant 0 : index
    %51 = vector.load %arg8[%c0_48, %c1_49, %c2_50, %c0_51] : memref<1x10x10x128xbf16, #tpu.memory_space<vmem>>, vector<1x8x8x128xbf16>
    %52 = vector.shape_cast %51 : vector<1x8x8x128xbf16> to vector<8x8x128xbf16>
    %53 = vector.shape_cast %52 : vector<8x8x128xbf16> to vector<64x128xbf16>
    %c5 = arith.constant 5 : index
    %c0_52 = arith.constant 0 : index
    %c0_53 = arith.constant 0 : index
    %54 = vector.load %arg5[%c5, %c0_52, %c0_53] : memref<9x128x128xbf16, #tpu.memory_space<vmem>>, vector<1x128x128xbf16>
    %55 = vector.shape_cast %54 : vector<1x128x128xbf16> to vector<128x128xbf16>
    %cst_54 = arith.constant dense<0.000000e+00> : vector<64x128xf32>
    %56 = tpu.matmul %53, %55, %cst_54 {dimension_numbers = #tpu.dot_dimension_numbers<[1], [0], [0], [1], [0, 0, 1, 1], [], []>} : vector<64x128xbf16>, vector<128x128xbf16>, vector<64x128xf32> -> vector<64x128xf32>
    %57 = arith.addf %50, %56 : vector<64x128xf32>
    %c0_55 = arith.constant 0 : index
    %c2_56 = arith.constant 2 : index
    %c0_57 = arith.constant 0 : index
    %c0_58 = arith.constant 0 : index
    %58 = vector.load %arg8[%c0_55, %c2_56, %c0_57, %c0_58] : memref<1x10x10x128xbf16, #tpu.memory_space<vmem>>, vector<1x8x8x128xbf16>
    %59 = vector.shape_cast %58 : vector<1x8x8x128xbf16> to vector<8x8x128xbf16>
    %60 = vector.shape_cast %59 : vector<8x8x128xbf16> to vector<64x128xbf16>
    %c6 = arith.constant 6 : index
    %c0_59 = arith.constant 0 : index
    %c0_60 = arith.constant 0 : index
    %61 = vector.load %arg5[%c6, %c0_59, %c0_60] : memref<9x128x128xbf16, #tpu.memory_space<vmem>>, vector<1x128x128xbf16>
    %62 = vector.shape_cast %61 : vector<1x128x128xbf16> to vector<128x128xbf16>
    %cst_61 = arith.constant dense<0.000000e+00> : vector<64x128xf32>
    %63 = tpu.matmul %60, %62, %cst_61 {dimension_numbers = #tpu.dot_dimension_numbers<[1], [0], [0], [1], [0, 0, 1, 1], [], []>} : vector<64x128xbf16>, vector<128x128xbf16>, vector<64x128xf32> -> vector<64x128xf32>
    %64 = arith.addf %57, %63 : vector<64x128xf32>
    %c0_62 = arith.constant 0 : index
    %c2_63 = arith.constant 2 : index
    %c1_64 = arith.constant 1 : index
    %c0_65 = arith.constant 0 : index
    %65 = vector.load %arg8[%c0_62, %c2_63, %c1_64, %c0_65] : memref<1x10x10x128xbf16, #tpu.memory_space<vmem>>, vector<1x8x8x128xbf16>
    %66 = vector.shape_cast %65 : vector<1x8x8x128xbf16> to vector<8x8x128xbf16>
    %67 = vector.shape_cast %66 : vector<8x8x128xbf16> to vector<64x128xbf16>
    %c7 = arith.constant 7 : index
    %c0_66 = arith.constant 0 : index
    %c0_67 = arith.constant 0 : index
    %68 = vector.load %arg5[%c7, %c0_66, %c0_67] : memref<9x128x128xbf16, #tpu.memory_space<vmem>>, vector<1x128x128xbf16>
    %69 = vector.shape_cast %68 : vector<1x128x128xbf16> to vector<128x128xbf16>
    %cst_68 = arith.constant dense<0.000000e+00> : vector<64x128xf32>
    %70 = tpu.matmul %67, %69, %cst_68 {dimension_numbers = #tpu.dot_dimension_numbers<[1], [0], [0], [1], [0, 0, 1, 1], [], []>} : vector<64x128xbf16>, vector<128x128xbf16>, vector<64x128xf32> -> vector<64x128xf32>
    %71 = arith.addf %64, %70 : vector<64x128xf32>
    %c0_69 = arith.constant 0 : index
    %c2_70 = arith.constant 2 : index
    %c2_71 = arith.constant 2 : index
    %c0_72 = arith.constant 0 : index
    %72 = vector.load %arg8[%c0_69, %c2_70, %c2_71, %c0_72] : memref<1x10x10x128xbf16, #tpu.memory_space<vmem>>, vector<1x8x8x128xbf16>
    %73 = vector.shape_cast %72 : vector<1x8x8x128xbf16> to vector<8x8x128xbf16>
    %74 = vector.shape_cast %73 : vector<8x8x128xbf16> to vector<64x128xbf16>
    %c8 = arith.constant 8 : index
    %c0_73 = arith.constant 0 : index
    %c0_74 = arith.constant 0 : index
    %75 = vector.load %arg5[%c8, %c0_73, %c0_74] : memref<9x128x128xbf16, #tpu.memory_space<vmem>>, vector<1x128x128xbf16>
    %76 = vector.shape_cast %75 : vector<1x128x128xbf16> to vector<128x128xbf16>
    %cst_75 = arith.constant dense<0.000000e+00> : vector<64x128xf32>
    %77 = tpu.matmul %74, %76, %cst_75 {dimension_numbers = #tpu.dot_dimension_numbers<[1], [0], [0], [1], [0, 0, 1, 1], [], []>} : vector<64x128xbf16>, vector<128x128xbf16>, vector<64x128xf32> -> vector<64x128xf32>
    %78 = arith.addf %71, %77 : vector<64x128xf32>
    %79 = vector.shape_cast %78 : vector<64x128xf32> to vector<1x8x8x128xf32>
    %80 = arith.truncf %79 : vector<1x8x8x128xf32> to vector<1x8x8x128xbf16>
    %c0_76 = arith.constant 0 : index
    %c0_77 = arith.constant 0 : index
    %c0_78 = arith.constant 0 : index
    %c0_79 = arith.constant 0 : index
    %81 = vector.load %arg6[%c0_76, %c0_77, %c0_78, %c0_79] : memref<1x8x8x128xbf16, #tpu.memory_space<vmem>>, vector<1x8x8x128xbf16>
    tpu.vector_store %arg6[%c0_76, %c0_77, %c0_78, %c0_79], %80 {strides = array<i32>} : memref<1x8x8x128xbf16, #tpu.memory_space<vmem>>, vector<1x8x8x128xbf16>,
    %c0_i32_80 = arith.constant 0 : i32
    %82 = arith.cmpi eq, %arg1, %c0_i32_80 : i32
    %83 = arith.extui %82 : i1 to i32
    %c0_i32_81 = arith.constant 0 : i32
    %84 = arith.cmpi ne, %83, %c0_i32_81 : i32
    scf.if %84 {
      %cst_92 = arith.constant 0.000000e+00 : f32
      %96 = vector.broadcast %cst_92 : f32 to vector<2x128xf32>
      %c0_93 = arith.constant 0 : index
      %c0_94 = arith.constant 0 : index
      %97 = vector.load %arg7[%c0_93, %c0_94] : memref<2x128xf32, #tpu.memory_space<vmem>>, vector<2x128xf32>
      tpu.vector_store %arg7[%c0_93, %c0_94], %96 {strides = array<i32>} : memref<2x128xf32, #tpu.memory_space<vmem>>, vector<2x128xf32>,
    } else {
    }
    %c0_82 = arith.constant 0 : index
    %c0_83 = arith.constant 0 : index
    %85 = vector.load %arg7[%c0_82, %c0_83] : memref<2x128xf32, #tpu.memory_space<vmem>>, vector<1x128xf32>
    %cst_84 = arith.constant dense<0.000000e+00> : vector<128xf32>
    %86 = vector.multi_reduction <add>, %78, %cst_84 [0] : vector<64x128xf32> to vector<128xf32>
    %87 = vector.shape_cast %86 : vector<128xf32> to vector<1x128xf32>
    %88 = arith.addf %85, %87 : vector<1x128xf32>
    %c0_85 = arith.constant 0 : index
    %c0_86 = arith.constant 0 : index
    %89 = vector.load %arg7[%c0_85, %c0_86] : memref<2x128xf32, #tpu.memory_space<vmem>>, vector<1x128xf32>
    tpu.vector_store %arg7[%c0_85, %c0_86], %88 {strides = array<i32>} : memref<2x128xf32, #tpu.memory_space<vmem>>, vector<1x128xf32>,
    %c1_87 = arith.constant 1 : index
    %c0_88 = arith.constant 0 : index
    %90 = vector.load %arg7[%c1_87, %c0_88] : memref<2x128xf32, #tpu.memory_space<vmem>>, vector<1x128xf32>
    %91 = arith.mulf %78, %78 : vector<64x128xf32>
    %cst_89 = arith.constant dense<0.000000e+00> : vector<128xf32>
    %92 = vector.multi_reduction <add>, %91, %cst_89 [0] : vector<64x128xf32> to vector<128xf32>
    %93 = vector.shape_cast %92 : vector<128xf32> to vector<1x128xf32>
    %94 = arith.addf %90, %93 : vector<1x128xf32>
    %c1_90 = arith.constant 1 : index
    %c0_91 = arith.constant 0 : index
    %95 = vector.load %arg7[%c1_90, %c0_91] : memref<2x128xf32, #tpu.memory_space<vmem>>, vector<1x128xf32>
    tpu.vector_store %arg7[%c1_90, %c0_91], %94 {strides = array<i32>} : memref<2x128xf32, #tpu.memory_space<vmem>>, vector<1x128xf32>,
    return
  }
  func.func @transform_0(%arg0: i32, %arg1: i32) -> (i32, i32, i32, i32) {
    %c0_i32 = arith.constant 0 : i32
    %c0_i32_0 = arith.constant 0 : i32
    %c0_i32_1 = arith.constant 0 : i32
    %c0_i32_2 = arith.constant 0 : i32
    return %arg1, %c0_i32, %c0_i32_0, %c0_i32_1 : i32, i32, i32, i32
  }
  func.func @transform_1(%arg0: i32, %arg1: i32) -> (i32, i32) {
    %c0_i32 = arith.constant 0 : i32
    %c0_i32_0 = arith.constant 0 : i32
    %c0_i32_1 = arith.constant 0 : i32
    return %c0_i32, %c0_i32_0 : i32, i32
  }
  func.func @transform_2(%arg0: i32, %arg1: i32) -> (i32, i32) {
    %c0_i32 = arith.constant 0 : i32
    %c0_i32_0 = arith.constant 0 : i32
    %c0_i32_1 = arith.constant 0 : i32
    return %c0_i32, %c0_i32_0 : i32, i32
  }
  func.func @transform_3(%arg0: i32, %arg1: i32) -> (i32, i32, i32) {
    %c0_i32 = arith.constant 0 : i32
    %c0_i32_0 = arith.constant 0 : i32
    %c0_i32_1 = arith.constant 0 : i32
    return %c0_i32, %c0_i32_0, %arg0 : i32, i32, i32
  }
  func.func @transform_4(%arg0: i32, %arg1: i32) -> (i32, i32, i32, i32) {
    %c0_i32 = arith.constant 0 : i32
    %c0_i32_0 = arith.constant 0 : i32
    %c0_i32_1 = arith.constant 0 : i32
    return %arg1, %c0_i32, %c0_i32_0, %arg0 : i32, i32, i32, i32
  }
  func.func @transform_5(%arg0: i32, %arg1: i32) -> (i32, i32) {
    %c0_i32 = arith.constant 0 : i32
    %c0_i32_0 = arith.constant 0 : i32
    return %c0_i32, %arg0 : i32, i32
  }
}

</mosaic_0001>

<llo_original>
// kernel: down_forward.5
$region0: #{down_forward.5}
  #allocation0 [shape = 'u32[]', space=smem, size = 0x4, offset = 0x4, fixed_abs, tag = 'smem constant byte address 0x4 - core index']
  #allocation1 [shape = 'u32[144,128]{1,0:T(1,128)}', space=vmem, size = 0x12000, scoped, tag = 'internal scratch']
  %s0 = inlined_call_operand.vmem [shape: bf16[2,8,8,128], index: 0, kind: input, shape index: {}]
  %s1 = inlined_call_operand.vmem [shape: f32[1,128], index: 1, kind: input, shape index: {}]
  %s2 = inlined_call_operand.vmem [shape: f32[1,128], index: 2, kind: input, shape index: {}]
  %s3 = inlined_call_operand.vmem [shape: f32[2,8,8,128], index: 3, kind: output, shape index: {}]
  %s4 = sld [smem:[#allocation0]]
  $region45: #{down_forward.5} parent=0
    _
  %s6 = ssub.s32 1, %s4
  %s7 = scalar_select 0, %s6, %s4
  loop: start=0, step=1, limit=4
  $region2: #{down_forward.5} parent=0 // loop_pre_header
    _
  $region3: #{down_forward.5} parent=0 // loop_header
    %s9 = sphi 0, %s13
    %p10 = scmp.ge.s32.totalorder %s9, 4
    %s19 = sphi 0, %s21
    %s22 = sphi 0, %s19
    %s23 = sphi 0, %s22
    %s39 = sphi 0, %s23
    %s43 = sphi 0, %s43
    %s45 = sphi 0, %s43
    %s46 = sphi 0, %s45
    %s60 = sphi 0, %s46
    %s64 = sphi 0, %s64
    %s66 = sphi 0, %s64
    %s67 = sphi 0, %s66
    %s81 = sphi 0, %s67
    %s87 = sphi 0, %s89
    %s90 = sphi 0, %s87
    %s91 = sphi 0, %s90
    %s107 = sphi 0, %s91
  $region4: #{down_forward.5} parent=0 // loop_header_branch
    %12 = sbr.rel (%p10) target = $region8
  $region5: #{down_forward.5} parent=0 // loop_body
    %s14 = ssub.s32 %s9, 1
    %s15 = ssub.s32 %s9, 2
    %s16 = sadd.s32 %s9, 1
    %s17 = ssub.s32 %s9, %s16
    %p18 = scmp.eq.s32.totalorder %s17, 0
    %s20 = sadd.s32 %s19, 1
    %s21 = scalar_select %p18, %s19, %s20
    %p24 = pneg %p18
    %p25 = scmp.eq.s32.totalorder %s9, 1
    %p26 = por %p24, %p25
    %p27 = scmp.ne.s32.totalorder %s19, %s22
    %p28 = scmp.eq.s32.totalorder %s9, 0
    %p29 = por %p27, %p28
    %p30 = scmp.ne.s32.totalorder %s19, %s22
    %p31 = scmp.eq.s32.totalorder %s14, 1
    %p32 = por %p30, %p31
    %p33 = scmp.ne.s32.totalorder %s22, %s23
    %p34 = scmp.eq.s32.totalorder %s14, 0
    %p35 = por %p33, %p34
    %p36 = scmp.ne.s32.totalorder %s22, %s23
    %p37 = scmp.eq.s32.totalorder %s15, 1
    %p38 = por %p36, %p37
    %p40 = scmp.ne.s32.totalorder %s23, %s39
    %p41 = scmp.eq.s32.totalorder %s15, 0
    %p42 = por %p40, %p41
    %s44 = sadd.s32 %s43, 1
    %p47 = scmp.eq.s32.totalorder %s9, 1
    %p48 = scmp.ne.s32.totalorder %s43, %s45
    %p49 = scmp.eq.s32.totalorder %s9, 0
    %p50 = por %p48, %p49
    %p51 = scmp.ne.s32.totalorder %s43, %s45
    %p52 = scmp.eq.s32.totalorder %s14, 1
    %p53 = por %p51, %p52
    %p54 = scmp.ne.s32.totalorder %s45, %s46
    %p55 = scmp.eq.s32.totalorder %s14, 0
    %p56 = por %p54, %p55
    %p57 = scmp.ne.s32.totalorder %s45, %s46
    %p58 = scmp.eq.s32.totalorder %s15, 1
    %p59 = por %p57, %p58
    %p61 = scmp.ne.s32.totalorder %s46, %s60
    %p62 = scmp.eq.s32.totalorder %s15, 0
    %p63 = por %p61, %p62
    %s65 = sadd.s32 %s64, 1
    %p68 = scmp.eq.s32.totalorder %s9, 1
    %p69 = scmp.ne.s32.totalorder %s64, %s66
    %p70 = scmp.eq.s32.totalorder %s9, 0
    %p71 = por %p69, %p70
    %p72 = scmp.ne.s32.totalorder %s64, %s66
    %p73 = scmp.eq.s32.totalorder %s14, 1
    %p74 = por %p72, %p73
    %p75 = scmp.ne.s32.totalorder %s66, %s67
    %p76 = scmp.eq.s32.totalorder %s14, 0
    %p77 = por %p75, %p76
    %p78 = scmp.ne.s32.totalorder %s66, %s67
    %p79 = scmp.eq.s32.totalorder %s15, 1
    %p80 = por %p78, %p79
    %p82 = scmp.ne.s32.totalorder %s67, %s81
    %p83 = scmp.eq.s32.totalorder %s15, 0
    %p84 = por %p82, %p83
    %s85 = ssub.s32 %s9, %s16
    %p86 = scmp.eq.s32.totalorder %s85, 0
    %s88 = sadd.s32 %s87, 1
    %s89 = scalar_select %p86, %s87, %s88
    %p92 = pneg %p86
    %p93 = scmp.eq.s32.totalorder %s9, 1
    %p94 = por %p92, %p93
    %p95 = scmp.ne.s32.totalorder %s87, %s90
    %p96 = scmp.eq.s32.totalorder %s9, 0
    %p97 = por %p95, %p96
    %p98 = scmp.ne.s32.totalorder %s87, %s90
    %p99 = scmp.eq.s32.totalorder %s14, 1
    %p100 = por %p98, %p99
    %p101 = scmp.ne.s32.totalorder %s90, %s91
    %p102 = scmp.eq.s32.totalorder %s14, 0
    %p103 = por %p101, %p102
    %p104 = scmp.ne.s32.totalorder %s90, %s91
    %p105 = scmp.eq.s32.totalorder %s15, 1
    %p106 = por %p104, %p105
    %p108 = scmp.ne.s32.totalorder %s91, %s107
    %p109 = scmp.eq.s32.totalorder %s15, 0
    %p110 = por %p108, %p109
    %p111 = scmp.le.s32.totalorder 1, %s9
    %p112 = scmp.lt.s32.totalorder %s9, 3
    %p113 = pnand %p111, %p112
    %p114 = pneg %p113
    // Predicated region
    $region9: #{down_forward.5} parent=5 // pred_check
      _
    $region10: #{down_forward.5} parent=5 // pred_check_branch
      %116 = sbr.rel (%p113) target = $region12
    $region11: #{down_forward.5} parent=5 // pred_region
      %s117 = ssub.s32 %s9, 1
      // Predicated region
      $region13: #{down_forward.5} parent=11 // pred_check
        %p118 = pneg %p56
      $region14: #{down_forward.5} parent=11 // pred_check_branch
        %120 = sbr.rel (%p118) target = $region16
      $region15: #{down_forward.5} parent=11 // pred_region
        _
      $region16: #{down_forward.5} parent=11 // pred_fallthru
        _
      // Predicated region
      $region17: #{down_forward.5} parent=11 // pred_check
        %p121 = pneg %p77
      $region18: #{down_forward.5} parent=11 // pred_check_branch
        %123 = sbr.rel (%p121) target = $region20
      $region19: #{down_forward.5} parent=11 // pred_region
        _
      $region20: #{down_forward.5} parent=11 // pred_fallthru
        _
    $region12: #{down_forward.5} parent=5 // pred_fallthru
      _
    %p124 = scmp.lt.s32.totalorder %s9, 2
    // Predicated region
    $region21: #{down_forward.5} parent=5 // pred_check
      %p125 = pneg %p124
    $region22: #{down_forward.5} parent=5 // pred_check_branch
      %127 = sbr.rel (%p125) target = $region24
    $region23: #{down_forward.5} parent=5 // pred_region
      // Predicated region
      $region25: #{down_forward.5} parent=23 // pred_check
        %p128 = pneg %p29
      $region26: #{down_forward.5} parent=23 // pred_check_branch
        %130 = sbr.rel (%p128) target = $region28
      $region27: #{down_forward.5} parent=23 // pred_region
        %p131 = scmp.lt.s32.totalorder %s9, 1
        %s132 = scalar_select %p131, %s9, 1
        %s133 = smul.addr %s132, 8
        %s134 = smul.addr %s133, 4
        %s135 = scalar_lea.vmem %s0, %s134
      $region28: #{down_forward.5} parent=23 // pred_fallthru
        _
    $region24: #{down_forward.5} parent=5 // pred_fallthru
      _
    %p136 = scmp.le.s32.totalorder 1, %s9
    %p137 = scmp.lt.s32.totalorder %s9, 3
    %p138 = pnand %p136, %p137
    %p139 = pneg %p138
    // Predicated region
    $region29: #{down_forward.5} parent=5 // pred_check
      _
    $region30: #{down_forward.5} parent=5 // pred_check_branch
      %141 = sbr.rel (%p138) target = $region32
    $region31: #{down_forward.5} parent=5 // pred_region
      %s142 = ssub.s32 %s9, 1
      %p143 = scmp.lt.s32.totalorder %s14, 1
      %s144 = scalar_select %p143, %s14, 1
      %s145 = smul.addr %s144, 8
      %s146 = smul.addr %s145, 4
      %s147 = scalar_lea.vmem %s0, %s146
      %p148 = pneg %p35
      %p149 = pneg %p32
      %p150 = pneg %p56
      %p151 = pneg %p53
      %p152 = pneg %p77
      %p153 = pneg %p74
      %p154 = pneg %p103
      %p155 = pneg %p100
      %p156 = scmp.lt.s32.totalorder %s14, 1
      %s157 = scalar_select %p156, %s14, 1
      %s158 = smul.addr %s157, 8
      %s159 = smul.addr %s158, 8
      %s160 = scalar_lea.vmem %s3, %s159
      %p161 = scmp.lt.s32.totalorder %s14, 1
      %s162 = scalar_select %p161, %s14, 1
      %s163 = smul.addr %s162, 8
      %s164 = smul.addr %s163, 4
      %s165 = scalar_lea.vmem %s0, %s164
      %p166 = scmp.lt.s32.totalorder %s14, 1
      %s167 = scalar_select %p166, %s14, 1
      %s168 = smul.addr %s167, 8
      %s169 = smul.addr %s168, 8
      %s170 = scalar_lea.vmem %s3, %s169
      %v171 = vld [vmem:[%s1] sm:$0x1]
      %v172 = vld [vmem:[%s2] sm:$0x1]
      %v173 = vld [vmem:[%s165] sm:$0xf]
      %v174 = vld [vmem:[%s165 + $0x4] sm:$0xf]
      %v175 = vld [vmem:[%s165 + $0x8] sm:$0xf]
      %v176 = vld [vmem:[%s165 + $0xc] sm:$0xf]
      %v177 = vld [vmem:[%s165 + $0x10] sm:$0xf]
      %v178 = vld [vmem:[%s165 + $0x14] sm:$0xf]
      %v179 = vld [vmem:[%s165 + $0x18] sm:$0xf]
      %v180 = vld [vmem:[%s165 + $0x1c] sm:$0xf]
      %v181 = vunpack.c.l.bf16 %v173
      %v182 = vunpack.c.l.bf16 %v174
      %v183 = vunpack.c.l.bf16 %v175
      %v184 = vunpack.c.l.bf16 %v176
      %v185 = vunpack.c.l.bf16 %v177
      %v186 = vunpack.c.l.bf16 %v178
      %v187 = vunpack.c.l.bf16 %v179
      %v188 = vunpack.c.l.bf16 %v180
      %v190 = vlaneseq
      %v191 = vshrl.u32 %v190, 7
      %v192 = vsub.s32 0, %v191
      %v193 = vrot.slane %v171, %v192
      %v195 = vmul.f32 %v181, %v193
      %v196 = vmul.f32 %v182, %v193
      %v197 = vmul.f32 %v183, %v193
      %v198 = vmul.f32 %v184, %v193
      %v199 = vmul.f32 %v185, %v193
      %v200 = vmul.f32 %v186, %v193
      %v201 = vmul.f32 %v187, %v193
      %v202 = vmul.f32 %v188, %v193
      %v204 = vlaneseq
      %v205 = vshrl.u32 %v204, 7
      %v206 = vsub.s32 0, %v205
      %v207 = vrot.slane %v172, %v206
      %v209 = vadd.f32 %v195, %v207
      %v210 = vadd.f32 %v196, %v207
      %v211 = vadd.f32 %v197, %v207
      %v212 = vadd.f32 %v198, %v207
      %v213 = vadd.f32 %v199, %v207
      %v214 = vadd.f32 %v200, %v207
      %v215 = vadd.f32 %v201, %v207
      %v216 = vadd.f32 %v202, %v207
      %v217 = vmax.f32 %v209, 0.0
      %v218 = vmax.f32 %v210, 0.0
      %v219 = vmax.f32 %v211, 0.0
      %v220 = vmax.f32 %v212, 0.0
      %v221 = vmax.f32 %v213, 0.0
      %v222 = vmax.f32 %v214, 0.0
      %v223 = vmax.f32 %v215, 0.0
      %v224 = vmax.f32 %v216, 0.0
      %225 = vst [vmem:[%s170] sm:$0xff] %v217
      %226 = vst [vmem:[%s170 + $0x8] sm:$0xff] %v218
      %227 = vst [vmem:[%s170 + $0x10] sm:$0xff] %v219
      %228 = vst [vmem:[%s170 + $0x18] sm:$0xff] %v220
      %229 = vst [vmem:[%s170 + $0x20] sm:$0xff] %v221
      %230 = vst [vmem:[%s170 + $0x28] sm:$0xff] %v222
      %231 = vst [vmem:[%s170 + $0x30] sm:$0xff] %v223
      %232 = vst [vmem:[%s170 + $0x38] sm:$0xff] %v224
      %p233 = scmp.lt.s32.totalorder %s14, 1
      %s234 = scalar_select %p233, %s14, 1
      %s235 = smul.addr %s234, 8
      %s236 = smul.addr %s235, 8
      %s237 = scalar_lea.vmem %s3, %s236
      // Predicated region
      $region33: #{down_forward.5} parent=31 // pred_check
        %p238 = pneg %p100
      $region34: #{down_forward.5} parent=31 // pred_check_branch
        %240 = sbr.rel (%p238) target = $region36
      $region35: #{down_forward.5} parent=31 // pred_region
        _
      $region36: #{down_forward.5} parent=31 // pred_fallthru
        _
    $region32: #{down_forward.5} parent=5 // pred_fallthru
      _
    %p241 = scmp.le.s32.totalorder 2, %s9
    // Predicated region
    $region37: #{down_forward.5} parent=5 // pred_check
      %p242 = pneg %p241
    $region38: #{down_forward.5} parent=5 // pred_check_branch
      %244 = sbr.rel (%p242) target = $region40
    $region39: #{down_forward.5} parent=5 // pred_region
      %s245 = ssub.s32 %s9, 2
      // Predicated region
      $region41: #{down_forward.5} parent=39 // pred_check
        %p246 = pneg %p106
      $region42: #{down_forward.5} parent=39 // pred_check_branch
        %248 = sbr.rel (%p246) target = $region44
      $region43: #{down_forward.5} parent=39 // pred_region
        %p249 = scmp.lt.s32.totalorder %s15, 1
        %s250 = scalar_select %p249, %s15, 1
        %s251 = smul.addr %s250, 8
        %s252 = smul.addr %s251, 8
        %s253 = scalar_lea.vmem %s3, %s252
      $region44: #{down_forward.5} parent=39 // pred_fallthru
        _
    $region40: #{down_forward.5} parent=5 // pred_fallthru
      _
  $region6: #{down_forward.5} parent=0 // loop_footer
    %s13 = sadd.s32 1, %s9
  $region7: #{down_forward.5} parent=0 // loop_footer_branch
    %8 = sbr.rel target = $region3
  $region8: #{down_forward.5} parent=0 // loop_exit
    _

// kernel: down_forward.3
$region0: #{down_forward.3}
  #allocation0 [shape = 'u32[]', space=smem, size = 0x4, offset = 0x4, fixed_abs, tag = 'smem constant byte address 0x4 - core index']
  #allocation1 [shape = 'u32[144,128]{1,0:T(1,128)}', space=vmem, size = 0x12000, scoped, tag = 'internal scratch']
  #allocation2 [shape = 'bf16[1,10,10,128]{3,2,1,0:T(8,128)(2,1)}', space=vmem, size = 0xa000, scoped, tag = 'scratch operand']
  %s0 = inlined_call_operand.vmem [shape: f32[2,8,2,8,8], index: 0, kind: input, shape index: {}]
  %s1 = inlined_call_operand.vmem [shape: bf16[9,128,128], index: 1, kind: input, shape index: {}]
  %s2 = inlined_call_operand.vmem [shape: bf16[2,8,8,128], index: 2, kind: output, shape index: {0}]
  %s3 = inlined_call_operand.vmem [shape: f32[2,128], index: 3, kind: output, shape index: {1}]
  %4 = xla_tuple %s2, %s3
  %s5 = sld [smem:[#allocation0]]
  $region57: #{down_forward.3} parent=0
    _
  %s7 = ssub.s32 1, %s5
  %s8 = scalar_select 0, %s7, %s5
  loop: start=0, step=1, limit=4
  $region2: #{down_forward.3} parent=0 // loop_pre_header
    _
  $region3: #{down_forward.3} parent=0 // loop_header
    %s10 = sphi 0, %s14
    %p11 = scmp.ge.s32.totalorder %s10, 4
    %s17 = sphi 0, %s29
    %s18 = sphi 0, %s25
    %s19 = sphi 0, %s17
    %s20 = sphi 0, %s18
    %s21 = sphi 0, %s19
    %s22 = sphi 0, %s20
    %s32 = sphi 0, %s34
    %s35 = sphi 0, %s32
    %s36 = sphi 0, %s35
    %s52 = sphi 0, %s36
    %s58 = sphi 0, %s60
    %s61 = sphi 0, %s58
    %s62 = sphi 0, %s61
    %s78 = sphi 0, %s62
    %s86 = sphi 0, %s88
    %s89 = sphi 0, %s86
    %s90 = sphi 0, %s89
    %s106 = sphi 0, %s90
    %s112 = sphi 0, %s114
    %s115 = sphi 0, %s112
    %s116 = sphi 0, %s115
    %s132 = sphi 0, %s116
  $region4: #{down_forward.3} parent=0 // loop_header_branch
    %13 = sbr.rel (%p11) target = $region8
  $region5: #{down_forward.3} parent=0 // loop_body
    %s15 = ssub.s32 %s10, 1
    %s16 = ssub.s32 %s10, 2
    %s23 = sadd.s32 1, %s18
    %p24 = scmp.ge.s32.totalorder %s23, 2
    %s25 = scalar_select %p24, 0, %s23
    %s26 = sadd.s32 1, %s17
    %s27 = scalar_select %p24, %s26, %s17
    %p28 = scmp.ge.s32.totalorder %s27, 1
    %s29 = scalar_select %p28, 0, %s27
    %s30 = ssub.s32 %s18, %s25
    %p31 = scmp.eq.s32.totalorder %s30, 0
    %s33 = sadd.s32 %s32, 1
    %s34 = scalar_select %p31, %s32, %s33
    %p37 = pneg %p31
    %p38 = scmp.eq.s32.totalorder %s10, 1
    %p39 = por %p37, %p38
    %p40 = scmp.ne.s32.totalorder %s32, %s35
    %p41 = scmp.eq.s32.totalorder %s10, 0
    %p42 = por %p40, %p41
    %p43 = scmp.ne.s32.totalorder %s32, %s35
    %p44 = scmp.eq.s32.totalorder %s15, 1
    %p45 = por %p43, %p44
    %p46 = scmp.ne.s32.totalorder %s35, %s36
    %p47 = scmp.eq.s32.totalorder %s15, 0
    %p48 = por %p46, %p47
    %p49 = scmp.ne.s32.totalorder %s35, %s36
    %p50 = scmp.eq.s32.totalorder %s16, 1
    %p51 = por %p49, %p50
    %p53 = scmp.ne.s32.totalorder %s36, %s52
    %p54 = scmp.eq.s32.totalorder %s16, 0
    %p55 = por %p53, %p54
    %s56 = ssub.s32 %s17, %s29
    %p57 = scmp.eq.s32.totalorder %s56, 0
    %s59 = sadd.s32 %s58, 1
    %s60 = scalar_select %p57, %s58, %s59
    %p63 = pneg %p57
    %p64 = scmp.eq.s32.totalorder %s10, 1
    %p65 = por %p63, %p64
    %p66 = scmp.ne.s32.totalorder %s58, %s61
    %p67 = scmp.eq.s32.totalorder %s10, 0
    %p68 = por %p66, %p67
    %p69 = scmp.ne.s32.totalorder %s58, %s61
    %p70 = scmp.eq.s32.totalorder %s15, 1
    %p71 = por %p69, %p70
    %p72 = scmp.ne.s32.totalorder %s61, %s62
    %p73 = scmp.eq.s32.totalorder %s15, 0
    %p74 = por %p72, %p73
    %p75 = scmp.ne.s32.totalorder %s61, %s62
    %p76 = scmp.eq.s32.totalorder %s16, 1
    %p77 = por %p75, %p76
    %p79 = scmp.ne.s32.totalorder %s62, %s78
    %p80 = scmp.eq.s32.totalorder %s16, 0
    %p81 = por %p79, %p80
    %s82 = ssub.s32 %s18, %s25
    %s83 = ssub.s32 %s17, %s29
    %s84 = sor.u32 %s82, %s83
    %p85 = scmp.eq.s32.totalorder %s84, 0
    %s87 = sadd.s32 %s86, 1
    %s88 = scalar_select %p85, %s86, %s87
    %p91 = pneg %p85
    %p92 = scmp.eq.s32.totalorder %s10, 1
    %p93 = por %p91, %p92
    %p94 = scmp.ne.s32.totalorder %s86, %s89
    %p95 = scmp.eq.s32.totalorder %s10, 0
    %p96 = por %p94, %p95
    %p97 = scmp.ne.s32.totalorder %s86, %s89
    %p98 = scmp.eq.s32.totalorder %s15, 1
    %p99 = por %p97, %p98
    %p100 = scmp.ne.s32.totalorder %s89, %s90
    %p101 = scmp.eq.s32.totalorder %s15, 0
    %p102 = por %p100, %p101
    %p103 = scmp.ne.s32.totalorder %s89, %s90
    %p104 = scmp.eq.s32.totalorder %s16, 1
    %p105 = por %p103, %p104
    %p107 = scmp.ne.s32.totalorder %s90, %s106
    %p108 = scmp.eq.s32.totalorder %s16, 0
    %p109 = por %p107, %p108
    %s110 = ssub.s32 %s17, %s29
    %p111 = scmp.eq.s32.totalorder %s110, 0
    %s113 = sadd.s32 %s112, 1
    %s114 = scalar_select %p111, %s112, %s113
    %p117 = pneg %p111
    %p118 = scmp.eq.s32.totalorder %s10, 1
    %p119 = por %p117, %p118
    %p120 = scmp.ne.s32.totalorder %s112, %s115
    %p121 = scmp.eq.s32.totalorder %s10, 0
    %p122 = por %p120, %p121
    %p123 = scmp.ne.s32.totalorder %s112, %s115
    %p124 = scmp.eq.s32.totalorder %s15, 1
    %p125 = por %p123, %p124
    %p126 = scmp.ne.s32.totalorder %s115, %s116
    %p127 = scmp.eq.s32.totalorder %s15, 0
    %p128 = por %p126, %p127
    %p129 = scmp.ne.s32.totalorder %s115, %s116
    %p130 = scmp.eq.s32.totalorder %s16, 1
    %p131 = por %p129, %p130
    %p133 = scmp.ne.s32.totalorder %s116, %s132
    %p134 = scmp.eq.s32.totalorder %s16, 0
    %p135 = por %p133, %p134
    %p136 = scmp.le.s32.totalorder 1, %s10
    %p137 = scmp.lt.s32.totalorder %s10, 3
    %p138 = pnand %p136, %p137
    %p139 = pneg %p138
    // Predicated region
    $region9: #{down_forward.3} parent=5 // pred_check
      _
    $region10: #{down_forward.3} parent=5 // pred_check_branch
      %141 = sbr.rel (%p138) target = $region12
    $region11: #{down_forward.3} parent=5 // pred_region
      %s142 = ssub.s32 %s10, 1
      // Predicated region
      $region13: #{down_forward.3} parent=11 // pred_check
        %p143 = pneg %p74
      $region14: #{down_forward.3} parent=11 // pred_check_branch
        %145 = sbr.rel (%p143) target = $region16
      $region15: #{down_forward.3} parent=11 // pred_region
        %p146 = scmp.lt.s32.totalorder %s19, 0
        %s147 = scalar_select %p146, %s19, 0
        %s148 = smul.addr %s147, 4
        %s149 = scalar_lea.vmem %s1, %s148
      $region16: #{down_forward.3} parent=11 // pred_fallthru
        _
    $region12: #{down_forward.3} parent=5 // pred_fallthru
      _
    %p150 = scmp.lt.s32.totalorder %s10, 2
    // Predicated region
    $region17: #{down_forward.3} parent=5 // pred_check
      %p151 = pneg %p150
    $region18: #{down_forward.3} parent=5 // pred_check_branch
      %153 = sbr.rel (%p151) target = $region20
    $region19: #{down_forward.3} parent=5 // pred_region
      // Predicated region
      $region21: #{down_forward.3} parent=19 // pred_check
        %p154 = pneg %p42
      $region22: #{down_forward.3} parent=19 // pred_check_branch
        %156 = sbr.rel (%p154) target = $region24
      $region23: #{down_forward.3} parent=19 // pred_region
        %p157 = scmp.lt.s32.totalorder %s18, 1
        %s158 = scalar_select %p157, %s18, 1
        %s159 = smul.addr %s158, 16
        %s160 = smul.addr %s159, 8
        %s161 = scalar_lea.vmem %s0, %s160
      $region24: #{down_forward.3} parent=19 // pred_fallthru
        _
    $region20: #{down_forward.3} parent=5 // pred_fallthru
      _
    %p162 = scmp.le.s32.totalorder 1, %s10
    %p163 = scmp.lt.s32.totalorder %s10, 3
    %p164 = pnand %p162, %p163
    %p165 = pneg %p164
    // Predicated region
    $region25: #{down_forward.3} parent=5 // pred_check
      _
    $region26: #{down_forward.3} parent=5 // pred_check_branch
      %167 = sbr.rel (%p164) target = $region28
    $region27: #{down_forward.3} parent=5 // pred_region
      %s168 = ssub.s32 %s10, 1
      %p169 = scmp.lt.s32.totalorder %s20, 1
      %s170 = scalar_select %p169, %s20, 1
      %s171 = smul.addr %s170, 16
      %s172 = smul.addr %s171, 8
      %s173 = scalar_lea.vmem %s0, %s172
      %p174 = pneg %p48
      %p175 = pneg %p45
      %p176 = scmp.lt.s32.totalorder %s19, 0
      %s177 = scalar_select %p176, %s19, 0
      %s178 = smul.addr %s177, 4
      %s179 = scalar_lea.vmem %s1, %s178
      %p180 = pneg %p74
      %p181 = pneg %p71
      %p182 = pneg %p102
      %p183 = pneg %p99
      %p184 = scmp.lt.s32.totalorder %s20, 1
      %s185 = scalar_select %p184, %s20, 1
      %p186 = scmp.lt.s32.totalorder %s19, 0
      %s187 = scalar_select %p186, %s19, 0
      %s188 = smul.addr %s185, 8
      %s189 = sadd.s32 %s187, %s188
      %s190 = smul.addr %s189, 4
      %s191 = scalar_lea.vmem %s2, %s190
      %p192 = pneg %p128
      %p193 = pneg %p125
      %p194 = scmp.lt.s32.totalorder %s19, 0
      %s195 = scalar_select %p194, %s19, 0
      %s196 = smul.addr %s195, 2
      %s197 = scalar_lea.vmem %s3, %s196
      %p198 = scmp.lt.s32.totalorder %s20, 1
      %s199 = scalar_select %p198, %s20, 1
      %s200 = smul.addr %s199, 16
      %s201 = smul.addr %s200, 8
      %s202 = scalar_lea.vmem %s0, %s201
      %p203 = scmp.lt.s32.totalorder %s19, 0
      %s204 = scalar_select %p203, %s19, 0
      %s205 = smul.addr %s204, 4
      %s206 = scalar_lea.vmem %s1, %s205
      %p207 = scmp.lt.s32.totalorder %s20, 1
      %s208 = scalar_select %p207, %s20, 1
      %p209 = scmp.lt.s32.totalorder %s19, 0
      %s210 = scalar_select %p209, %s19, 0
      %s211 = smul.addr %s208, 8
      %s212 = sadd.s32 %s210, %s211
      %s213 = smul.addr %s212, 4
      %s214 = scalar_lea.vmem %s2, %s213
      %p215 = scmp.lt.s32.totalorder %s19, 0
      %s216 = scalar_select %p215, %s19, 0
      %s217 = smul.addr %s216, 2
      %s218 = scalar_lea.vmem %s3, %s217
      %p220 = scmp.eq.s32.totalorder %s20, 0
      // Predicated region
      $region29: #{down_forward.3} parent=27 // pred_check
        %p221 = pneg %p220
      $region30: #{down_forward.3} parent=27 // pred_check_branch
        %223 = sbr.rel (%p221) target = $region32
      $region31: #{down_forward.3} parent=27 // pred_region
        %224 = vst [vmem:[#allocation2] sm:$0xf] 0
        %225 = vst [vmem:[#allocation2 + $0x4] sm:$0x1] 0
        %226 = vst [vmem:[#allocation2 + $0x8] sm:$0xf] 0
        %227 = vst [vmem:[#allocation2 + $0xc] sm:$0x1] 0
        %228 = vst [vmem:[#allocation2 + $0x10] sm:$0xf] 0
        %229 = vst [vmem:[#allocation2 + $0x14] sm:$0x1] 0
        %230 = vst [vmem:[#allocation2 + $0x18] sm:$0xf] 0
        %231 = vst [vmem:[#allocation2 + $0x1c] sm:$0x1] 0
        %232 = vst [vmem:[#allocation2 + $0x20] sm:$0xf] 0
        %233 = vst [vmem:[#allocation2 + $0x24] sm:$0x1] 0
        %234 = vst [vmem:[#allocation2 + $0x28] sm:$0xf] 0
        %235 = vst [vmem:[#allocation2 + $0x2c] sm:$0x1] 0
        %236 = vst [vmem:[#allocation2 + $0x30] sm:$0xf] 0
        %237 = vst [vmem:[#allocation2 + $0x34] sm:$0x1] 0
        %238 = vst [vmem:[#allocation2 + $0x38] sm:$0xf] 0
        %239 = vst [vmem:[#allocation2 + $0x3c] sm:$0x1] 0
        %240 = vst [vmem:[#allocation2 + $0x40] sm:$0xf] 0
        %241 = vst [vmem:[#allocation2 + $0x44] sm:$0x1] 0
        %242 = vst [vmem:[#allocation2 + $0x48] sm:$0xf] 0
        %243 = vst [vmem:[#allocation2 + $0x4c] sm:$0x1] 0
      $region32: #{down_forward.3} parent=27 // pred_fallthru
        _
      %v244 = vld [vmem:[%s202] sm:$0xff]
      %v245 = vld [vmem:[%s202 + $0x8] sm:$0xff]
      %v246 = vld [vmem:[%s202 + $0x10] sm:$0xff]
      %v247 = vld [vmem:[%s202 + $0x18] sm:$0xff]
      %v248 = vld [vmem:[%s202 + $0x20] sm:$0xff]
      %v249 = vld [vmem:[%s202 + $0x28] sm:$0xff]
      %v250 = vld [vmem:[%s202 + $0x30] sm:$0xff]
      %v251 = vld [vmem:[%s202 + $0x38] sm:$0xff]
      %v252 = vld [vmem:[%s202 + $0x40] sm:$0xff]
      %v253 = vld [vmem:[%s202 + $0x48] sm:$0xff]
      %v254 = vld [vmem:[%s202 + $0x50] sm:$0xff]
      %v255 = vld [vmem:[%s202 + $0x58] sm:$0xff]
      %v256 = vld [vmem:[%s202 + $0x60] sm:$0xff]
      %v257 = vld [vmem:[%s202 + $0x68] sm:$0xff]
      %v258 = vld [vmem:[%s202 + $0x70] sm:$0xff]
      %v259 = vld [vmem:[%s202 + $0x78] sm:$0xff]
      %v260 = vmax.f32 %v244, %v245
      %v261 = vmax.f32 %v246, %v247
      %v262 = vmax.f32 %v248, %v249
      %v263 = vmax.f32 %v250, %v251
      %v264 = vmax.f32 %v252, %v253
      %v265 = vmax.f32 %v254, %v255
      %v266 = vmax.f32 %v256, %v257
      %v267 = vmax.f32 %v258, %v259
      %276 = vrot.lane.b32.xlu0 %v260, 124
      %v277 = vpop.permute.xlu0 %276
      %278 = vrot.lane.b32.xlu0 %v261, 124
      %v279 = vpop.permute.xlu0 %278
      %280 = vrot.lane.b32.xlu0 %v262, 124
      %v281 = vpop.permute.xlu0 %280
      %282 = vrot.lane.b32.xlu0 %v263, 124
      %v283 = vpop.permute.xlu0 %282
      %284 = vrot.lane.b32.xlu0 %v264, 124
      %v285 = vpop.permute.xlu0 %284
      %286 = vrot.lane.b32.xlu0 %v265, 124
      %v287 = vpop.permute.xlu0 %286
      %288 = vrot.lane.b32.xlu0 %v266, 124
      %v289 = vpop.permute.xlu0 %288
      %290 = vrot.lane.b32.xlu0 %v267, 124
      %v291 = vpop.permute.xlu0 %290
      %v300 = vmax.f32 %v260, %v277
      %v301 = vmax.f32 %v261, %v279
      %v302 = vmax.f32 %v262, %v281
      %v303 = vmax.f32 %v263, %v283
      %v304 = vmax.f32 %v264, %v285
      %v305 = vmax.f32 %v265, %v287
      %v306 = vmax.f32 %v266, %v289
      %v307 = vmax.f32 %v267, %v291
      %v308 = vpack.c.bf16 %v300, %v300
      %v309 = vpack.c.bf16 %v301, %v301
      %v310 = vpack.c.bf16 %v302, %v302
      %v311 = vpack.c.bf16 %v303, %v303
      %v312 = vpack.c.bf16 %v304, %v304
      %v313 = vpack.c.bf16 %v305, %v305
      %v314 = vpack.c.bf16 %v306, %v306
      %v315 = vpack.c.bf16 %v307, %v307
      %v324 = vunpack.c.l.b16 %v308
      %v325 = vunpack.c.l.b16 %v309
      %v326 = vunpack.c.l.b16 %v310
      %v327 = vunpack.c.l.b16 %v311
      %v328 = vunpack.c.l.b16 %v312
      %v329 = vunpack.c.l.b16 %v313
      %v330 = vunpack.c.l.b16 %v314
      %v331 = vunpack.c.l.b16 %v315
      %v332 = vpack.c.b16 %v324, %v324
      %v333 = vpack.c.b16 %v325, %v325
      %v334 = vpack.c.b16 %v326, %v326
      %v335 = vpack.c.b16 %v327, %v327
      %v336 = vpack.c.b16 %v328, %v328
      %v337 = vpack.c.b16 %v329, %v329
      %v338 = vpack.c.b16 %v330, %v330
      %v339 = vpack.c.b16 %v331, %v331
      %v341 = vshrl.u32 %v332, 16
      %v343 = vrot.slane %v341, 7
      %v344 = vshll.u32 %v332, 16
      %v346 = vor.u32 %v343, %v344
      %v347 = vrot.slane %v343, 4
      %v349 = vshrl.u32 %v333, 16
      %v351 = vrot.slane %v349, 7
      %v352 = vshll.u32 %v333, 16
      %v354 = vor.u32 %v351, %v352
      %v355 = vrot.slane %v351, 4
      %v357 = vshrl.u32 %v334, 16
      %v359 = vrot.slane %v357, 7
      %v360 = vshll.u32 %v334, 16
      %v362 = vor.u32 %v359, %v360
      %v363 = vrot.slane %v359, 4
      %v365 = vshrl.u32 %v335, 16
      %v367 = vrot.slane %v365, 7
      %v368 = vshll.u32 %v335, 16
      %v370 = vor.u32 %v367, %v368
      %v371 = vrot.slane %v367, 4
      %v373 = vshrl.u32 %v336, 16
      %v375 = vrot.slane %v373, 7
      %v376 = vshll.u32 %v336, 16
      %v378 = vor.u32 %v375, %v376
      %v379 = vrot.slane %v375, 4
      %v381 = vshrl.u32 %v337, 16
      %v383 = vrot.slane %v381, 7
      %v384 = vshll.u32 %v337, 16
      %v386 = vor.u32 %v383, %v384
      %v387 = vrot.slane %v383, 4
      %v389 = vshrl.u32 %v338, 16
      %v391 = vrot.slane %v389, 7
      %v392 = vshll.u32 %v338, 16
      %v394 = vor.u32 %v391, %v392
      %v395 = vrot.slane %v391, 4
      %v397 = vshrl.u32 %v339, 16
      %v399 = vrot.slane %v397, 7
      %v400 = vshll.u32 %v339, 16
      %v402 = vor.u32 %v399, %v400
      %v403 = vrot.slane %v399, 4
      %s420 = scalar_lea.vmem [#allocation2], 8
      %vm421 = vcmask 27648
      %vm422 = vsmask.f32 7938
      %vm423 = vmand %vm421, %vm422
      %v424 = vld [vmem:[%s420] sm:$0xf]
      %v425 = vsel %vm423, %v346, %v424
      %426 = vst [vmem:[%s420] sm:$0xf] %v425
      %vm427 = vcmask 24576
      %vm428 = vsmask.f32 256
      %vm429 = vmand %vm427, %vm428
      %v430 = vld [vmem:[%s420 + $0x4] sm:$0x1]
      %v431 = vsel %vm429, %v347, %v430
      %432 = vst [vmem:[%s420 + $0x4] sm:$0x1] %v431
      %v433 = vld [vmem:[%s420 + $0x8] sm:$0xf]
      %v434 = vsel %vm423, %v354, %v433
      %435 = vst [vmem:[%s420 + $0x8] sm:$0xf] %v434
      %v436 = vld [vmem:[%s420 + $0xc] sm:$0x1]
      %v437 = vsel %vm429, %v355, %v436
      %438 = vst [vmem:[%s420 + $0xc] sm:$0x1] %v437
      %v439 = vld [vmem:[%s420 + $0x10] sm:$0xf]
      %v440 = vsel %vm423, %v362, %v439
      %441 = vst [vmem:[%s420 + $0x10] sm:$0xf] %v440
      %v442 = vld [vmem:[%s420 + $0x14] sm:$0x1]
      %v443 = vsel %vm429, %v363, %v442
      %444 = vst [vmem:[%s420 + $0x14] sm:$0x1] %v443
      %v445 = vld [vmem:[%s420 + $0x18] sm:$0xf]
      %v446 = vsel %vm423, %v370, %v445
      %447 = vst [vmem:[%s420 + $0x18] sm:$0xf] %v446
      %v448 = vld [vmem:[%s420 + $0x1c] sm:$0x1]
      %v449 = vsel %vm429, %v371, %v448
      %450 = vst [vmem:[%s420 + $0x1c] sm:$0x1] %v449
      %v451 = vld [vmem:[%s420 + $0x20] sm:$0xf]
      %v452 = vsel %vm423, %v378, %v451
      %453 = vst [vmem:[%s420 + $0x20] sm:$0xf] %v452
      %v454 = vld [vmem:[%s420 + $0x24] sm:$0x1]
      %v455 = vsel %vm429, %v379, %v454
      %456 = vst [vmem:[%s420 + $0x24] sm:$0x1] %v455
      %v457 = vld [vmem:[%s420 + $0x28] sm:$0xf]
      %v458 = vsel %vm423, %v386, %v457
      %459 = vst [vmem:[%s420 + $0x28] sm:$0xf] %v458
      %v460 = vld [vmem:[%s420 + $0x2c] sm:$0x1]
      %v461 = vsel %vm429, %v387, %v460
      %462 = vst [vmem:[%s420 + $0x2c] sm:$0x1] %v461
      %v463 = vld [vmem:[%s420 + $0x30] sm:$0xf]
      %v464 = vsel %vm423, %v394, %v463
      %465 = vst [vmem:[%s420 + $0x30] sm:$0xf] %v464
      %v466 = vld [vmem:[%s420 + $0x34] sm:$0x1]
      %v467 = vsel %vm429, %v395, %v466
      %468 = vst [vmem:[%s420 + $0x34] sm:$0x1] %v467
      %v469 = vld [vmem:[%s420 + $0x38] sm:$0xf]
      %v470 = vsel %vm423, %v402, %v469
      %471 = vst [vmem:[%s420 + $0x38] sm:$0xf] %v470
      %v472 = vld [vmem:[%s420 + $0x3c] sm:$0x1]
      %v473 = vsel %vm429, %v403, %v472
      %474 = vst [vmem:[%s420 + $0x3c] sm:$0x1] %v473
      %v475 = vld [vmem:[#allocation2] sm:$0xf]
      %v476 = vld [vmem:[#allocation2 + $0x8] sm:$0xf]
      %v477 = vld [vmem:[#allocation2 + $0x10] sm:$0xf]
      %v478 = vld [vmem:[#allocation2 + $0x18] sm:$0xf]
      %v479 = vld [vmem:[#allocation2 + $0x20] sm:$0xf]
      %v480 = vld [vmem:[#allocation2 + $0x28] sm:$0xf]
      %v481 = vld [vmem:[#allocation2 + $0x30] sm:$0xf]
      %v482 = vld [vmem:[#allocation2 + $0x38] sm:$0xf]
      %v483 = vld [vmem:[%s206] sm:$0xf]
      %v484 = vld [vmem:[%s206 + $0x4] sm:$0xf]
      %v485 = vld [vmem:[%s206 + $0x8] sm:$0xf]
      %v486 = vld [vmem:[%s206 + $0xc] sm:$0xf]
      %v487 = vld [vmem:[%s206 + $0x10] sm:$0xf]
      %v488 = vld [vmem:[%s206 + $0x14] sm:$0xf]
      %v489 = vld [vmem:[%s206 + $0x18] sm:$0xf]
      %v490 = vld [vmem:[%s206 + $0x1c] sm:$0xf]
      %v491 = vld [vmem:[%s206 + $0x20] sm:$0xf]
      %v492 = vld [vmem:[%s206 + $0x24] sm:$0xf]
      %v493 = vld [vmem:[%s206 + $0x28] sm:$0xf]
      %v494 = vld [vmem:[%s206 + $0x2c] sm:$0xf]
      %v495 = vld [vmem:[%s206 + $0x30] sm:$0xf]
      %v496 = vld [vmem:[%s206 + $0x34] sm:$0xf]
      %v497 = vld [vmem:[%s206 + $0x38] sm:$0xf]
      %v498 = vld [vmem:[%s206 + $0x3c] sm:$0xf]
      %v499 = vld [vmem:[#allocation2 + $0x4] sm:$0x1]
      %v500 = vld [vmem:[#allocation2 + $0xc] sm:$0x1]
      %v501 = vld [vmem:[#allocation2 + $0x14] sm:$0x1]
      %v502 = vld [vmem:[#allocation2 + $0x1c] sm:$0x1]
      %v503 = vld [vmem:[#allocation2 + $0x24] sm:$0x1]
      %v504 = vld [vmem:[#allocation2 + $0x2c] sm:$0x1]
      %v505 = vld [vmem:[#allocation2 + $0x34] sm:$0x1]
      %v506 = vld [vmem:[#allocation2 + $0x3c] sm:$0x1]
      %vm507 = vsmask.f32 3328
      %vm508 = vsmask.f32 7440
      %vm509 = vmor %vm507, %vm508
      %v511 = vshrl.u32 %v475, 16
      %v513 = vrot.slane %v511, 4
      %v514 = vshll.u32 %v475, 16
      %v516 = vrot.slane %v514, 5
      %v517 = vor.u32 %v513, %v516
      %v518 = vrot.slane %v517, 4
      %v520 = vshll.u32 %v499, 16
      %v522 = vrot.slane %v520, 5
      %v523 = vsel %vm509, %v518, %v522
      %v525 = vshrl.u32 %v476, 16
      %v527 = vrot.slane %v525, 4
      %v528 = vshll.u32 %v476, 16
      %v530 = vrot.slane %v528, 5
      %v531 = vor.u32 %v527, %v530
      %v532 = vrot.slane %v531, 4
      %v534 = vshll.u32 %v500, 16
      %v536 = vrot.slane %v534, 5
      %v537 = vsel %vm509, %v532, %v536
      %v539 = vshrl.u32 %v477, 16
      %v541 = vrot.slane %v539, 4
      %v542 = vshll.u32 %v477, 16
      %v544 = vrot.slane %v542, 5
      %v545 = vor.u32 %v541, %v544
      %v546 = vrot.slane %v545, 4
      %v548 = vshll.u32 %v501, 16
      %v550 = vrot.slane %v548, 5
      %v551 = vsel %vm509, %v546, %v550
      %v553 = vshrl.u32 %v478, 16
      %v555 = vrot.slane %v553, 4
      %v556 = vshll.u32 %v478, 16
      %v558 = vrot.slane %v556, 5
      %v559 = vor.u32 %v555, %v558
      %v560 = vrot.slane %v559, 4
      %v562 = vshll.u32 %v502, 16
      %v564 = vrot.slane %v562, 5
      %v565 = vsel %vm509, %v560, %v564
      %v567 = vshrl.u32 %v479, 16
      %v569 = vrot.slane %v567, 4
      %v570 = vshll.u32 %v479, 16
      %v572 = vrot.slane %v570, 5
      %v573 = vor.u32 %v569, %v572
      %v574 = vrot.slane %v573, 4
      %v576 = vshll.u32 %v503, 16
      %v578 = vrot.slane %v576, 5
      %v579 = vsel %vm509, %v574, %v578
      %v581 = vshrl.u32 %v480, 16
      %v583 = vrot.slane %v581, 4
      %v584 = vshll.u32 %v480, 16
      %v586 = vrot.slane %v584, 5
      %v587 = vor.u32 %v583, %v586
      %v588 = vrot.slane %v587, 4
      %v590 = vshll.u32 %v504, 16
      %v592 = vrot.slane %v590, 5
      %v593 = vsel %vm509, %v588, %v592
      %v595 = vshrl.u32 %v481, 16
      %v597 = vrot.slane %v595, 4
      %v598 = vshll.u32 %v481, 16
      %v600 = vrot.slane %v598, 5
      %v601 = vor.u32 %v597, %v600
      %v602 = vrot.slane %v601, 4
      %v604 = vshll.u32 %v505, 16
      %v606 = vrot.slane %v604, 5
      %v607 = vsel %vm509, %v602, %v606
      %v609 = vshrl.u32 %v482, 16
      %v611 = vrot.slane %v609, 4
      %v612 = vshll.u32 %v482, 16
      %v614 = vrot.slane %v612, 5
      %v615 = vor.u32 %v611, %v614
      %v616 = vrot.slane %v615, 4
      %v618 = vshll.u32 %v506, 16
      %v620 = vrot.slane %v618, 5
      %v621 = vsel %vm509, %v616, %v620
      %s622 = scalar_lea.vmem %s206, 64
      %v623 = vld [vmem:[%s622] sm:$0xf]
      %v624 = vld [vmem:[%s622 + $0x4] sm:$0xf]
      %v625 = vld [vmem:[%s622 + $0x8] sm:$0xf]
      %v626 = vld [vmem:[%s622 + $0xc] sm:$0xf]
      %v627 = vld [vmem:[%s622 + $0x10] sm:$0xf]
      %v628 = vld [vmem:[%s622 + $0x14] sm:$0xf]
      %v629 = vld [vmem:[%s622 + $0x18] sm:$0xf]
      %v630 = vld [vmem:[%s622 + $0x1c] sm:$0xf]
      %v631 = vld [vmem:[%s622 + $0x20] sm:$0xf]
      %v632 = vld [vmem:[%s622 + $0x24] sm:$0xf]
      %v633 = vld [vmem:[%s622 + $0x28] sm:$0xf]
      %v634 = vld [vmem:[%s622 + $0x2c] sm:$0xf]
      %v635 = vld [vmem:[%s622 + $0x30] sm:$0xf]
      %v636 = vld [vmem:[%s622 + $0x34] sm:$0xf]
      %v637 = vld [vmem:[%s622 + $0x38] sm:$0xf]
      %v638 = vld [vmem:[%s622 + $0x3c] sm:$0xf]
      %v639 = vunpack.c.l.b16 %v523
      %v640 = vunpack.c.l.b16 %v537
      %v641 = vunpack.c.l.b16 %v551
      %v642 = vunpack.c.l.b16 %v565
      %v643 = vunpack.c.l.b16 %v579
      %v644 = vunpack.c.l.b16 %v593
      %v645 = vunpack.c.l.b16 %v607
      %v646 = vunpack.c.l.b16 %v621
      %v647 = vpack.c.b16 %v640, %v639
      %v648 = vpack.c.b16 %v642, %v641
      %v649 = vpack.c.b16 %v644, %v643
      %v650 = vpack.c.b16 %v646, %v645
      %v671 = vunpack.c.l.b16 %v623
      %v672 = vunpack.c.l.b16 %v624
      %v673 = vunpack.c.l.b16 %v625
      %v674 = vunpack.c.l.b16 %v626
      %v675 = vunpack.c.l.b16 %v627
      %v676 = vunpack.c.l.b16 %v628
      %v677 = vunpack.c.l.b16 %v629
      %v678 = vunpack.c.l.b16 %v630
      %v679 = vunpack.c.l.b16 %v631
      %v680 = vunpack.c.l.b16 %v632
      %v681 = vunpack.c.l.b16 %v633
      %v682 = vunpack.c.l.b16 %v634
      %v683 = vunpack.c.l.b16 %v635
      %v684 = vunpack.c.l.b16 %v636
      %v685 = vunpack.c.l.b16 %v637
      %v686 = vunpack.c.l.b16 %v638
      %v687 = vpack.c.b16 %v672, %v671
      %v688 = vpack.c.b16 %v674, %v673
      %v689 = vpack.c.b16 %v676, %v675
      %v690 = vpack.c.b16 %v678, %v677
      %v691 = vpack.c.b16 %v680, %v679
      %v692 = vpack.c.b16 %v682, %v681
      %v693 = vpack.c.b16 %v684, %v683
      %v694 = vpack.c.b16 %v686, %v685
      %703 = vmatprep.subr.bf16.mxu0 0
      %704 = vmatpush1.bf16.msra.mxu0 %v687
      %705 = vmatprep.subr.bf16.mxu0 0
      %706 = vmatpush1.bf16.msra.mxu0 %v688
      %707 = vmatprep.subr.bf16.mxu0 0
      %708 = vmatpush1.bf16.msra.mxu0 %v689
      %709 = vmatprep.subr.bf16.mxu0 0
      %710 = vmatpush1.bf16.msra.mxu0 %v690
      %711 = vmatprep.subr.bf16.mxu0 0
      %712 = vmatpush1.bf16.msra.mxu0 %v691
      %713 = vmatprep.subr.bf16.mxu0 0
      %714 = vmatpush1.bf16.msra.mxu0 %v692
      %715 = vmatprep.subr.bf16.mxu0 0
      %716 = vmatpush1.bf16.msra.mxu0 %v693
      %717 = vmatprep.subr.bf16.mxu0 0
      %718 = vmatpush1.bf16.msra.mxu0 %v694
      %719 = vmatprep.subr.bf16.mxu0 0
      %720 = vmatpush1.bf16.msra.mxu0 0
      %721 = vmatprep.subr.bf16.mxu0 0
      %722 = vmatpush1.bf16.msra.mxu0 0
      %723 = vmatprep.subr.bf16.mxu0 0
      %724 = vmatpush1.bf16.msra.mxu0 0
      %725 = vmatprep.subr.bf16.mxu0 0
      %726 = vmatpush1.bf16.msra.mxu0 0
      %727 = vmatprep.subr.bf16.mxu0 0
      %728 = vmatpush1.bf16.msra.mxu0 0
      %729 = vmatprep.subr.bf16.mxu0 0
      %730 = vmatpush1.bf16.msra.mxu0 0
      %731 = vmatprep.subr.bf16.mxu0 0
      %732 = vmatpush1.bf16.msra.mxu0 0
      %733 = vmatprep.subr.bf16.mxu0 0
      %734 = vmatpush1.bf16.msra.mxu0 0
      %735 = vmatprep.mubr.bf16.mxu0 0
      %736 = vmatmul.mubr.bf16.gmra.mrb[0].mxu0 %v647
      %v737 = vpop.f32.mrb[0].mxu0
      %v738 = vadd.f32 0.0, %v737
      %v739 = vpop.f32.mrb[0].mxu0
      %v740 = vpop.f32.mrb[0].mxu0
      %v741 = vadd.f32 0.0, %v740
      %v742 = vpop.f32.mrb[0].mxu0
      %743 = vmatprep.mubr.bf16.mxu0 0
      %744 = vmatmul.mubr.bf16.gmra.mrb[0].mxu0 %v648
      %v745 = vpop.f32.mrb[0].mxu0
      %v746 = vadd.f32 0.0, %v745
      %v747 = vpop.f32.mrb[0].mxu0
      %v748 = vpop.f32.mrb[0].mxu0
      %v749 = vadd.f32 0.0, %v748
      %v750 = vpop.f32.mrb[0].mxu0
      %751 = vmatprep.mubr.bf16.mxu0 0
      %752 = vmatmul.mubr.bf16.gmra.mrb[0].mxu0 %v649
      %v753 = vpop.f32.mrb[0].mxu0
      %v754 = vadd.f32 0.0, %v753
      %v755 = vpop.f32.mrb[0].mxu0
      %v756 = vpop.f32.mrb[0].mxu0
      %v757 = vadd.f32 0.0, %v756
      %v758 = vpop.f32.mrb[0].mxu0
      %759 = vmatprep.mubr.bf16.mxu0 0
      %760 = vmatmul.mubr.bf16.gmra.mrb[0].mxu0 %v650
      %v761 = vpop.f32.mrb[0].mxu0
      %v762 = vadd.f32 0.0, %v761
      %v763 = vpop.f32.mrb[0].mxu0
      %v764 = vpop.f32.mrb[0].mxu0
      %v765 = vadd.f32 0.0, %v764
      %v766 = vpop.f32.mrb[0].mxu0
      %767 = vdwg.mxu0
      %v776 = vunpack.c.l.b16 %v475
      %v777 = vunpack.c.l.b16 %v476
      %v778 = vunpack.c.l.b16 %v477
      %v779 = vunpack.c.l.b16 %v478
      %v780 = vunpack.c.l.b16 %v479
      %v781 = vunpack.c.l.b16 %v480
      %v782 = vunpack.c.l.b16 %v481
      %v783 = vunpack.c.l.b16 %v482
      %v784 = vpack.c.b16 %v777, %v776
      %v785 = vpack.c.b16 %v779, %v778
      %v786 = vpack.c.b16 %v781, %v780
      %v787 = vpack.c.b16 %v783, %v782
      %v808 = vunpack.c.l.b16 %v483
      %v809 = vunpack.c.l.b16 %v484
      %v810 = vunpack.c.l.b16 %v485
      %v811 = vunpack.c.l.b16 %v486
      %v812 = vunpack.c.l.b16 %v487
      %v813 = vunpack.c.l.b16 %v488
      %v814 = vunpack.c.l.b16 %v489
      %v815 = vunpack.c.l.b16 %v490
      %v816 = vunpack.c.l.b16 %v491
      %v817 = vunpack.c.l.b16 %v492
      %v818 = vunpack.c.l.b16 %v493
      %v819 = vunpack.c.l.b16 %v494
      %v820 = vunpack.c.l.b16 %v495
      %v821 = vunpack.c.l.b16 %v496
      %v822 = vunpack.c.l.b16 %v497
      %v823 = vunpack.c.l.b16 %v498
      %v824 = vpack.c.b16 %v809, %v808
      %v825 = vpack.c.b16 %v811, %v810
      %v826 = vpack.c.b16 %v813, %v812
      %v827 = vpack.c.b16 %v815, %v814
      %v828 = vpack.c.b16 %v817, %v816
      %v829 = vpack.c.b16 %v819, %v818
      %v830 = vpack.c.b16 %v821, %v820
      %v831 = vpack.c.b16 %v823, %v822
      %840 = vmatprep.subr.bf16.mxu0 0
      %841 = vmatpush1.bf16.msra.mxu0 %v824
      %842 = vmatprep.subr.bf16.mxu0 0
      %843 = vmatpush1.bf16.msra.mxu0 %v825
      %844 = vmatprep.subr.bf16.mxu0 0
      %845 = vmatpush1.bf16.msra.mxu0 %v826
      %846 = vmatprep.subr.bf16.mxu0 0
      %847 = vmatpush1.bf16.msra.mxu0 %v827
      %848 = vmatprep.subr.bf16.mxu0 0
      %849 = vmatpush1.bf16.msra.mxu0 %v828
      %850 = vmatprep.subr.bf16.mxu0 0
      %851 = vmatpush1.bf16.msra.mxu0 %v829
      %852 = vmatprep.subr.bf16.mxu0 0
      %853 = vmatpush1.bf16.msra.mxu0 %v830
      %854 = vmatprep.subr.bf16.mxu0 0
      %855 = vmatpush1.bf16.msra.mxu0 %v831
      %856 = vmatprep.subr.bf16.mxu0 0
      %857 = vmatpush1.bf16.msra.mxu0 0
      %858 = vmatprep.subr.bf16.mxu0 0
      %859 = vmatpush1.bf16.msra.mxu0 0
      %860 = vmatprep.subr.bf16.mxu0 0
      %861 = vmatpush1.bf16.msra.mxu0 0
      %862 = vmatprep.subr.bf16.mxu0 0
      %863 = vmatpush1.bf16.msra.mxu0 0
      %864 = vmatprep.subr.bf16.mxu0 0
      %865 = vmatpush1.bf16.msra.mxu0 0
      %866 = vmatprep.subr.bf16.mxu0 0
      %867 = vmatpush1.bf16.msra.mxu0 0
      %868 = vmatprep.subr.bf16.mxu0 0
      %869 = vmatpush1.bf16.msra.mxu0 0
      %870 = vmatprep.subr.bf16.mxu0 0
      %871 = vmatpush1.bf16.msra.mxu0 0
      %872 = vmatprep.mubr.bf16.mxu0 0
      %873 = vmatmul.mubr.bf16.gmra.mrb[0].mxu0 %v784
      %v874 = vpop.f32.mrb[0].mxu0
      %v875 = vadd.f32 %v738, %v874
      %v876 = vpop.f32.mrb[0].mxu0
      %v877 = vpop.f32.mrb[0].mxu0
      %v878 = vadd.f32 %v741, %v877
      %v879 = vpop.f32.mrb[0].mxu0
      %880 = vmatprep.mubr.bf16.mxu0 0
      %881 = vmatmul.mubr.bf16.gmra.mrb[0].mxu0 %v785
      %v882 = vpop.f32.mrb[0].mxu0
      %v883 = vadd.f32 %v746, %v882
      %v884 = vpop.f32.mrb[0].mxu0
      %v885 = vpop.f32.mrb[0].mxu0
      %v886 = vadd.f32 %v749, %v885
      %v887 = vpop.f32.mrb[0].mxu0
      %888 = vmatprep.mubr.bf16.mxu0 0
      %889 = vmatmul.mubr.bf16.gmra.mrb[0].mxu0 %v786
      %v890 = vpop.f32.mrb[0].mxu0
      %v891 = vadd.f32 %v754, %v890
      %v892 = vpop.f32.mrb[0].mxu0
      %v893 = vpop.f32.mrb[0].mxu0
      %v894 = vadd.f32 %v757, %v893
      %v895 = vpop.f32.mrb[0].mxu0
      %896 = vmatprep.mubr.bf16.mxu0 0
      %897 = vmatmul.mubr.bf16.gmra.mrb[0].mxu0 %v787
      %v898 = vpop.f32.mrb[0].mxu0
      %v899 = vadd.f32 %v762, %v898
      %v900 = vpop.f32.mrb[0].mxu0
      %v901 = vpop.f32.mrb[0].mxu0
      %v902 = vadd.f32 %v765, %v901
      %v903 = vpop.f32.mrb[0].mxu0
      %904 = vdwg.mxu0
      %v905 = vld [vmem:[#allocation2] sm:$0xe]
      %v906 = vld [vmem:[#allocation2 + $0x8] sm:$0xe]
      %v907 = vld [vmem:[#allocation2 + $0x10] sm:$0xe]
      %v908 = vld [vmem:[#allocation2 + $0x18] sm:$0xe]
      %v909 = vld [vmem:[#allocation2 + $0x20] sm:$0xe]
      %v910 = vld [vmem:[#allocation2 + $0x28] sm:$0xe]
      %v911 = vld [vmem:[#allocation2 + $0x30] sm:$0xe]
      %v912 = vld [vmem:[#allocation2 + $0x38] sm:$0xe]
      %vm929 = vcmask 1042432
      %vm930 = vcmask 1046532
      %vm931 = vmor %vm929, %vm930
      %v932 = vrot.slane %v905, 5
      %v933 = vrot.slane %v932, 4
      %v934 = vrot.slane %v499, 5
      %v935 = vsel %vm931, %v933, %v934
      %v936 = vrot.slane %v906, 5
      %v937 = vrot.slane %v936, 4
      %v938 = vrot.slane %v500, 5
      %v939 = vsel %vm931, %v937, %v938
      %v940 = vrot.slane %v907, 5
      %v941 = vrot.slane %v940, 4
      %v942 = vrot.slane %v501, 5
      %v943 = vsel %vm931, %v941, %v942
      %v944 = vrot.slane %v908, 5
      %v945 = vrot.slane %v944, 4
      %v946 = vrot.slane %v502, 5
      %v947 = vsel %vm931, %v945, %v946
      %v948 = vrot.slane %v909, 5
      %v949 = vrot.slane %v948, 4
      %v950 = vrot.slane %v503, 5
      %v951 = vsel %vm931, %v949, %v950
      %v952 = vrot.slane %v910, 5
      %v953 = vrot.slane %v952, 4
      %v954 = vrot.slane %v504, 5
      %v955 = vsel %vm931, %v953, %v954
      %v956 = vrot.slane %v911, 5
      %v957 = vrot.slane %v956, 4
      %v958 = vrot.slane %v505, 5
      %v959 = vsel %vm931, %v957, %v958
      %v960 = vrot.slane %v912, 5
      %v961 = vrot.slane %v960, 4
      %v962 = vrot.slane %v506, 5
      %v963 = vsel %vm931, %v961, %v962
      %s964 = scalar_lea.vmem %s206, 128
      %v965 = vld [vmem:[%s964] sm:$0xf]
      %v966 = vld [vmem:[%s964 + $0x4] sm:$0xf]
      %v967 = vld [vmem:[%s964 + $0x8] sm:$0xf]
      %v968 = vld [vmem:[%s964 + $0xc] sm:$0xf]
      %v969 = vld [vmem:[%s964 + $0x10] sm:$0xf]
      %v970 = vld [vmem:[%s964 + $0x14] sm:$0xf]
      %v971 = vld [vmem:[%s964 + $0x18] sm:$0xf]
      %v972 = vld [vmem:[%s964 + $0x1c] sm:$0xf]
      %v973 = vld [vmem:[%s964 + $0x20] sm:$0xf]
      %v974 = vld [vmem:[%s964 + $0x24] sm:$0xf]
      %v975 = vld [vmem:[%s964 + $0x28] sm:$0xf]
      %v976 = vld [vmem:[%s964 + $0x2c] sm:$0xf]
      %v977 = vld [vmem:[%s964 + $0x30] sm:$0xf]
      %v978 = vld [vmem:[%s964 + $0x34] sm:$0xf]
      %v979 = vld [vmem:[%s964 + $0x38] sm:$0xf]
      %v980 = vld [vmem:[%s964 + $0x3c] sm:$0xf]
      %v981 = vunpack.c.l.b16 %v935
      %v982 = vunpack.c.l.b16 %v939
      %v983 = vunpack.c.l.b16 %v943
      %v984 = vunpack.c.l.b16 %v947
      %v985 = vunpack.c.l.b16 %v951
      %v986 = vunpack.c.l.b16 %v955
      %v987 = vunpack.c.l.b16 %v959
      %v988 = vunpack.c.l.b16 %v963
      %v989 = vpack.c.b16 %v982, %v981
      %v990 = vpack.c.b16 %v984, %v983
      %v991 = vpack.c.b16 %v986, %v985
      %v992 = vpack.c.b16 %v988, %v987
      %v1013 = vunpack.c.l.b16 %v965
      %v1014 = vunpack.c.l.b16 %v966
      %v1015 = vunpack.c.l.b16 %v967
      %v1016 = vunpack.c.l.b16 %v968
      %v1017 = vunpack.c.l.b16 %v969
      %v1018 = vunpack.c.l.b16 %v970
      %v1019 = vunpack.c.l.b16 %v971
      %v1020 = vunpack.c.l.b16 %v972
      %v1021 = vunpack.c.l.b16 %v973
      %v1022 = vunpack.c.l.b16 %v974
      %v1023 = vunpack.c.l.b16 %v975
      %v1024 = vunpack.c.l.b16 %v976
      %v1025 = vunpack.c.l.b16 %v977
      %v1026 = vunpack.c.l.b16 %v978
      %v1027 = vunpack.c.l.b16 %v979
      %v1028 = vunpack.c.l.b16 %v980
      %v1029 = vpack.c.b16 %v1014, %v1013
      %v1030 = vpack.c.b16 %v1016, %v1015
      %v1031 = vpack.c.b16 %v1018, %v1017
      %v1032 = vpack.c.b16 %v1020, %v1019
      %v1033 = vpack.c.b16 %v1022, %v1021
      %v1034 = vpack.c.b16 %v1024, %v1023
      %v1035 = vpack.c.b16 %v1026, %v1025
      %v1036 = vpack.c.b16 %v1028, %v1027
      %1045 = vmatprep.subr.bf16.mxu0 0
      %1046 = vmatpush1.bf16.msra.mxu0 %v1029
      %1047 = vmatprep.subr.bf16.mxu0 0
      %1048 = vmatpush1.bf16.msra.mxu0 %v1030
      %1049 = vmatprep.subr.bf16.mxu0 0
      %1050 = vmatpush1.bf16.msra.mxu0 %v1031
      %1051 = vmatprep.subr.bf16.mxu0 0
      %1052 = vmatpush1.bf16.msra.mxu0 %v1032
      %1053 = vmatprep.subr.bf16.mxu0 0
      %1054 = vmatpush1.bf16.msra.mxu0 %v1033
      %1055 = vmatprep.subr.bf16.mxu0 0
      %1056 = vmatpush1.bf16.msra.mxu0 %v1034
      %1057 = vmatprep.subr.bf16.mxu0 0
      %1058 = vmatpush1.bf16.msra.mxu0 %v1035
      %1059 = vmatprep.subr.bf16.mxu0 0
      %1060 = vmatpush1.bf16.msra.mxu0 %v1036
      %1061 = vmatprep.subr.bf16.mxu0 0
      %1062 = vmatpush1.bf16.msra.mxu0 0
      %1063 = vmatprep.subr.bf16.mxu0 0
      %1064 = vmatpush1.bf16.msra.mxu0 0
      %1065 = vmatprep.subr.bf16.mxu0 0
      %1066 = vmatpush1.bf16.msra.mxu0 0
      %1067 = vmatprep.subr.bf16.mxu0 0
      %1068 = vmatpush1.bf16.msra.mxu0 0
      %1069 = vmatprep.subr.bf16.mxu0 0
      %1070 = vmatpush1.bf16.msra.mxu0 0
      %1071 = vmatprep.subr.bf16.mxu0 0
      %1072 = vmatpush1.bf16.msra.mxu0 0
      %1073 = vmatprep.subr.bf16.mxu0 0
      %1074 = vmatpush1.bf16.msra.mxu0 0
      %1075 = vmatprep.subr.bf16.mxu0 0
      %1076 = vmatpush1.bf16.msra.mxu0 0
      %1077 = vmatprep.mubr.bf16.mxu0 0
      %1078 = vmatmul.mubr.bf16.gmra.mrb[0].mxu0 %v989
      %v1079 = vpop.f32.mrb[0].mxu0
      %v1080 = vadd.f32 0.0, %v1079
      %v1081 = vpop.f32.mrb[0].mxu0
      %v1082 = vpop.f32.mrb[0].mxu0
      %v1083 = vadd.f32 0.0, %v1082
      %v1084 = vpop.f32.mrb[0].mxu0
      %1085 = vmatprep.mubr.bf16.mxu0 0
      %1086 = vmatmul.mubr.bf16.gmra.mrb[0].mxu0 %v990
      %v1087 = vpop.f32.mrb[0].mxu0
      %v1088 = vadd.f32 0.0, %v1087
      %v1089 = vpop.f32.mrb[0].mxu0
      %v1090 = vpop.f32.mrb[0].mxu0
      %v1091 = vadd.f32 0.0, %v1090
      %v1092 = vpop.f32.mrb[0].mxu0
      %1093 = vmatprep.mubr.bf16.mxu0 0
      %1094 = vmatmul.mubr.bf16.gmra.mrb[0].mxu0 %v991
      %v1095 = vpop.f32.mrb[0].mxu0
      %v1096 = vadd.f32 0.0, %v1095
      %v1097 = vpop.f32.mrb[0].mxu0
      %v1098 = vpop.f32.mrb[0].mxu0
      %v1099 = vadd.f32 0.0, %v1098
      %v1100 = vpop.f32.mrb[0].mxu0
      %1101 = vmatprep.mubr.bf16.mxu0 0
      %1102 = vmatmul.mubr.bf16.gmra.mrb[0].mxu0 %v992
      %v1103 = vpop.f32.mrb[0].mxu0
      %v1104 = vadd.f32 0.0, %v1103
      %v1105 = vpop.f32.mrb[0].mxu0
      %v1106 = vpop.f32.mrb[0].mxu0
      %v1107 = vadd.f32 0.0, %v1106
      %v1108 = vpop.f32.mrb[0].mxu0
      %1109 = vdwg.mxu0
      %v1110 = vadd.f32 %v875, %v1080
      %v1111 = vadd.f32 %v878, %v1083
      %v1112 = vadd.f32 %v883, %v1088
      %v1113 = vadd.f32 %v886, %v1091
      %v1114 = vadd.f32 %v891, %v1096
      %v1115 = vadd.f32 %v894, %v1099
      %v1116 = vadd.f32 %v899, %v1104
      %v1117 = vadd.f32 %v902, %v1107
      %v1118 = vld [vmem:[%s420] sm:$0xf]
      %v1119 = vld [vmem:[%s420 + $0x8] sm:$0xf]
      %v1120 = vld [vmem:[%s420 + $0x10] sm:$0xf]
      %v1121 = vld [vmem:[%s420 + $0x18] sm:$0xf]
      %v1122 = vld [vmem:[%s420 + $0x20] sm:$0xf]
      %v1123 = vld [vmem:[%s420 + $0x28] sm:$0xf]
      %v1124 = vld [vmem:[%s420 + $0x30] sm:$0xf]
      %v1125 = vld [vmem:[%s420 + $0x38] sm:$0xf]
      %s1126 = scalar_lea.vmem %s206, 192
      %v1127 = vld [vmem:[%s1126] sm:$0xf]
      %v1128 = vld [vmem:[%s1126 + $0x4] sm:$0xf]
      %v1129 = vld [vmem:[%s1126 + $0x8] sm:$0xf]
      %v1130 = vld [vmem:[%s1126 + $0xc] sm:$0xf]
      %v1131 = vld [vmem:[%s1126 + $0x10] sm:$0xf]
      %v1132 = vld [vmem:[%s1126 + $0x14] sm:$0xf]
      %v1133 = vld [vmem:[%s1126 + $0x18] sm:$0xf]
      %v1134 = vld [vmem:[%s1126 + $0x1c] sm:$0xf]
      %v1135 = vld [vmem:[%s1126 + $0x20] sm:$0xf]
      %v1136 = vld [vmem:[%s1126 + $0x24] sm:$0xf]
      %v1137 = vld [vmem:[%s1126 + $0x28] sm:$0xf]
      %v1138 = vld [vmem:[%s1126 + $0x2c] sm:$0xf]
      %v1139 = vld [vmem:[%s1126 + $0x30] sm:$0xf]
      %v1140 = vld [vmem:[%s1126 + $0x34] sm:$0xf]
      %v1141 = vld [vmem:[%s1126 + $0x38] sm:$0xf]
      %v1142 = vld [vmem:[%s1126 + $0x3c] sm:$0xf]
      %v1151 = vunpack.c.l.b16 %v1118
      %v1152 = vunpack.c.l.b16 %v1119
      %v1153 = vunpack.c.l.b16 %v1120
      %v1154 = vunpack.c.l.b16 %v1121
      %v1155 = vunpack.c.l.b16 %v1122
      %v1156 = vunpack.c.l.b16 %v1123
      %v1157 = vunpack.c.l.b16 %v1124
      %v1158 = vunpack.c.l.b16 %v1125
      %v1159 = vpack.c.b16 %v1152, %v1151
      %v1160 = vpack.c.b16 %v1154, %v1153
      %v1161 = vpack.c.b16 %v1156, %v1155
      %v1162 = vpack.c.b16 %v1158, %v1157
      %v1183 = vunpack.c.l.b16 %v1127
      %v1184 = vunpack.c.l.b16 %v1128
      %v1185 = vunpack.c.l.b16 %v1129
      %v1186 = vunpack.c.l.b16 %v1130
      %v1187 = vunpack.c.l.b16 %v1131
      %v1188 = vunpack.c.l.b16 %v1132
      %v1189 = vunpack.c.l.b16 %v1133
      %v1190 = vunpack.c.l.b16 %v1134
      %v1191 = vunpack.c.l.b16 %v1135
      %v1192 = vunpack.c.l.b16 %v1136
      %v1193 = vunpack.c.l.b16 %v1137
      %v1194 = vunpack.c.l.b16 %v1138
      %v1195 = vunpack.c.l.b16 %v1139
      %v1196 = vunpack.c.l.b16 %v1140
      %v1197 = vunpack.c.l.b16 %v1141
      %v1198 = vunpack.c.l.b16 %v1142
      %v1199 = vpack.c.b16 %v1184, %v1183
      %v1200 = vpack.c.b16 %v1186, %v1185
      %v1201 = vpack.c.b16 %v1188, %v1187
      %v1202 = vpack.c.b16 %v1190, %v1189
      %v1203 = vpack.c.b16 %v1192, %v1191
      %v1204 = vpack.c.b16 %v1194, %v1193
      %v1205 = vpack.c.b16 %v1196, %v1195
      %v1206 = vpack.c.b16 %v1198, %v1197
      %1215 = vmatprep.subr.bf16.mxu0 0
      %1216 = vmatpush1.bf16.msra.mxu0 %v1199
      %1217 = vmatprep.subr.bf16.mxu0 0
      %1218 = vmatpush1.bf16.msra.mxu0 %v1200
      %1219 = vmatprep.subr.bf16.mxu0 0
      %1220 = vmatpush1.bf16.msra.mxu0 %v1201
      %1221 = vmatprep.subr.bf16.mxu0 0
      %1222 = vmatpush1.bf16.msra.mxu0 %v1202
      %1223 = vmatprep.subr.bf16.mxu0 0
      %1224 = vmatpush1.bf16.msra.mxu0 %v1203
      %1225 = vmatprep.subr.bf16.mxu0 0
      %1226 = vmatpush1.bf16.msra.mxu0 %v1204
      %1227 = vmatprep.subr.bf16.mxu0 0
      %1228 = vmatpush1.bf16.msra.mxu0 %v1205
      %1229 = vmatprep.subr.bf16.mxu0 0
      %1230 = vmatpush1.bf16.msra.mxu0 %v1206
      %1231 = vmatprep.subr.bf16.mxu0 0
      %1232 = vmatpush1.bf16.msra.mxu0 0
      %1233 = vmatprep.subr.bf16.mxu0 0
      %1234 = vmatpush1.bf16.msra.mxu0 0
      %1235 = vmatprep.subr.bf16.mxu0 0
      %1236 = vmatpush1.bf16.msra.mxu0 0
      %1237 = vmatprep.subr.bf16.mxu0 0
      %1238 = vmatpush1.bf16.msra.mxu0 0
      %1239 = vmatprep.subr.bf16.mxu0 0
      %1240 = vmatpush1.bf16.msra.mxu0 0
      %1241 = vmatprep.subr.bf16.mxu0 0
      %1242 = vmatpush1.bf16.msra.mxu0 0
      %1243 = vmatprep.subr.bf16.mxu0 0
      %1244 = vmatpush1.bf16.msra.mxu0 0
      %1245 = vmatprep.subr.bf16.mxu0 0
      %1246 = vmatpush1.bf16.msra.mxu0 0
      %1247 = vmatprep.mubr.bf16.mxu0 0
      %1248 = vmatmul.mubr.bf16.gmra.mrb[0].mxu0 %v1159
      %v1249 = vpop.f32.mrb[0].mxu0
      %v1250 = vadd.f32 0.0, %v1249
      %v1251 = vpop.f32.mrb[0].mxu0
      %v1252 = vpop.f32.mrb[0].mxu0
      %v1253 = vadd.f32 0.0, %v1252
      %v1254 = vpop.f32.mrb[0].mxu0
      %1255 = vmatprep.mubr.bf16.mxu0 0
      %1256 = vmatmul.mubr.bf16.gmra.mrb[0].mxu0 %v1160
      %v1257 = vpop.f32.mrb[0].mxu0
      %v1258 = vadd.f32 0.0, %v1257
      %v1259 = vpop.f32.mrb[0].mxu0
      %v1260 = vpop.f32.mrb[0].mxu0
      %v1261 = vadd.f32 0.0, %v1260
      %v1262 = vpop.f32.mrb[0].mxu0
      %1263 = vmatprep.mubr.bf16.mxu0 0
      %1264 = vmatmul.mubr.bf16.gmra.mrb[0].mxu0 %v1161
      %v1265 = vpop.f32.mrb[0].mxu0
      %v1266 = vadd.f32 0.0, %v1265
      %v1267 = vpop.f32.mrb[0].mxu0
      %v1268 = vpop.f32.mrb[0].mxu0
      %v1269 = vadd.f32 0.0, %v1268
      %v1270 = vpop.f32.mrb[0].mxu0
      %1271 = vmatprep.mubr.bf16.mxu0 0
      %1272 = vmatmul.mubr.bf16.gmra.mrb[0].mxu0 %v1162
      %v1273 = vpop.f32.mrb[0].mxu0
      %v1274 = vadd.f32 0.0, %v1273
      %v1275 = vpop.f32.mrb[0].mxu0
      %v1276 = vpop.f32.mrb[0].mxu0
      %v1277 = vadd.f32 0.0, %v1276
      %v1278 = vpop.f32.mrb[0].mxu0
      %1279 = vdwg.mxu0
      %v1280 = vadd.f32 %v1110, %v1250
      %v1281 = vadd.f32 %v1111, %v1253
      %v1282 = vadd.f32 %v1112, %v1258
      %v1283 = vadd.f32 %v1113, %v1261
      %v1284 = vadd.f32 %v1114, %v1266
      %v1285 = vadd.f32 %v1115, %v1269
      %v1286 = vadd.f32 %v1116, %v1274
      %v1287 = vadd.f32 %v1117, %v1277
      %v1288 = vld [vmem:[%s420] sm:$0xf]
      %v1289 = vld [vmem:[%s420 + $0x4] sm:$0x1]
      %v1290 = vld [vmem:[%s420 + $0x8] sm:$0xf]
      %v1291 = vld [vmem:[%s420 + $0xc] sm:$0x1]
      %v1292 = vld [vmem:[%s420 + $0x10] sm:$0xf]
      %v1293 = vld [vmem:[%s420 + $0x14] sm:$0x1]
      %v1294 = vld [vmem:[%s420 + $0x18] sm:$0xf]
      %v1295 = vld [vmem:[%s420 + $0x1c] sm:$0x1]
      %v1296 = vld [vmem:[%s420 + $0x20] sm:$0xf]
      %v1297 = vld [vmem:[%s420 + $0x24] sm:$0x1]
      %v1298 = vld [vmem:[%s420 + $0x28] sm:$0xf]
      %v1299 = vld [vmem:[%s420 + $0x2c] sm:$0x1]
      %v1300 = vld [vmem:[%s420 + $0x30] sm:$0xf]
      %v1301 = vld [vmem:[%s420 + $0x34] sm:$0x1]
      %v1302 = vld [vmem:[%s420 + $0x38] sm:$0xf]
      %v1303 = vld [vmem:[%s420 + $0x3c] sm:$0x1]
      %v1305 = vshrl.u32 %v1288, 16
      %v1307 = vrot.slane %v1305, 4
      %v1308 = vshll.u32 %v1288, 16
      %v1310 = vrot.slane %v1308, 5
      %v1311 = vor.u32 %v1307, %v1310
      %v1312 = vrot.slane %v1311, 4
      %v1314 = vshll.u32 %v1289, 16
      %v1316 = vrot.slane %v1314, 5
      %v1317 = vsel %vm509, %v1312, %v1316
      %v1319 = vshrl.u32 %v1290, 16
      %v1321 = vrot.slane %v1319, 4
      %v1322 = vshll.u32 %v1290, 16
      %v1324 = vrot.slane %v1322, 5
      %v1325 = vor.u32 %v1321, %v1324
      %v1326 = vrot.slane %v1325, 4
      %v1328 = vshll.u32 %v1291, 16
      %v1330 = vrot.slane %v1328, 5
      %v1331 = vsel %vm509, %v1326, %v1330
      %v1333 = vshrl.u32 %v1292, 16
      %v1335 = vrot.slane %v1333, 4
      %v1336 = vshll.u32 %v1292, 16
      %v1338 = vrot.slane %v1336, 5
      %v1339 = vor.u32 %v1335, %v1338
      %v1340 = vrot.slane %v1339, 4
      %v1342 = vshll.u32 %v1293, 16
      %v1344 = vrot.slane %v1342, 5
      %v1345 = vsel %vm509, %v1340, %v1344
      %v1347 = vshrl.u32 %v1294, 16
      %v1349 = vrot.slane %v1347, 4
      %v1350 = vshll.u32 %v1294, 16
      %v1352 = vrot.slane %v1350, 5
      %v1353 = vor.u32 %v1349, %v1352
      %v1354 = vrot.slane %v1353, 4
      %v1356 = vshll.u32 %v1295, 16
      %v1358 = vrot.slane %v1356, 5
      %v1359 = vsel %vm509, %v1354, %v1358
      %v1361 = vshrl.u32 %v1296, 16
      %v1363 = vrot.slane %v1361, 4
      %v1364 = vshll.u32 %v1296, 16
      %v1366 = vrot.slane %v1364, 5
      %v1367 = vor.u32 %v1363, %v1366
      %v1368 = vrot.slane %v1367, 4
      %v1370 = vshll.u32 %v1297, 16
      %v1372 = vrot.slane %v1370, 5
      %v1373 = vsel %vm509, %v1368, %v1372
      %v1375 = vshrl.u32 %v1298, 16
      %v1377 = vrot.slane %v1375, 4
      %v1378 = vshll.u32 %v1298, 16
      %v1380 = vrot.slane %v1378, 5
      %v1381 = vor.u32 %v1377, %v1380
      %v1382 = vrot.slane %v1381, 4
      %v1384 = vshll.u32 %v1299, 16
      %v1386 = vrot.slane %v1384, 5
      %v1387 = vsel %vm509, %v1382, %v1386
      %v1389 = vshrl.u32 %v1300, 16
      %v1391 = vrot.slane %v1389, 4
      %v1392 = vshll.u32 %v1300, 16
      %v1394 = vrot.slane %v1392, 5
      %v1395 = vor.u32 %v1391, %v1394
      %v1396 = vrot.slane %v1395, 4
      %v1398 = vshll.u32 %v1301, 16
      %v1400 = vrot.slane %v1398, 5
      %v1401 = vsel %vm509, %v1396, %v1400
      %v1403 = vshrl.u32 %v1302, 16
      %v1405 = vrot.slane %v1403, 4
      %v1406 = vshll.u32 %v1302, 16
      %v1408 = vrot.slane %v1406, 5
      %v1409 = vor.u32 %v1405, %v1408
      %v1410 = vrot.slane %v1409, 4
      %v1412 = vshll.u32 %v1303, 16
      %v1414 = vrot.slane %v1412, 5
      %v1415 = vsel %vm509, %v1410, %v1414
      %s1416 = scalar_lea.vmem %s206, 256
      %v1417 = vld [vmem:[%s1416] sm:$0xf]
      %v1418 = vld [vmem:[%s1416 + $0x4] sm:$0xf]
      %v1419 = vld [vmem:[%s1416 + $0x8] sm:$0xf]
      %v1420 = vld [vmem:[%s1416 + $0xc] sm:$0xf]
      %v1421 = vld [vmem:[%s1416 + $0x10] sm:$0xf]
      %v1422 = vld [vmem:[%s1416 + $0x14] sm:$0xf]
      %v1423 = vld [vmem:[%s1416 + $0x18] sm:$0xf]
      %v1424 = vld [vmem:[%s1416 + $0x1c] sm:$0xf]
      %v1425 = vld [vmem:[%s1416 + $0x20] sm:$0xf]
      %v1426 = vld [vmem:[%s1416 + $0x24] sm:$0xf]
      %v1427 = vld [vmem:[%s1416 + $0x28] sm:$0xf]
      %v1428 = vld [vmem:[%s1416 + $0x2c] sm:$0xf]
      %v1429 = vld [vmem:[%s1416 + $0x30] sm:$0xf]
      %v1430 = vld [vmem:[%s1416 + $0x34] sm:$0xf]
      %v1431 = vld [vmem:[%s1416 + $0x38] sm:$0xf]
      %v1432 = vld [vmem:[%s1416 + $0x3c] sm:$0xf]
      %v1433 = vunpack.c.l.b16 %v1317
      %v1434 = vunpack.c.l.b16 %v1331
      %v1435 = vunpack.c.l.b16 %v1345
      %v1436 = vunpack.c.l.b16 %v1359
      %v1437 = vunpack.c.l.b16 %v1373
      %v1438 = vunpack.c.l.b16 %v1387
      %v1439 = vunpack.c.l.b16 %v1401
      %v1440 = vunpack.c.l.b16 %v1415
      %v1441 = vpack.c.b16 %v1434, %v1433
      %v1442 = vpack.c.b16 %v1436, %v1435
      %v1443 = vpack.c.b16 %v1438, %v1437
      %v1444 = vpack.c.b16 %v1440, %v1439
      %v1465 = vunpack.c.l.b16 %v1417
      %v1466 = vunpack.c.l.b16 %v1418
      %v1467 = vunpack.c.l.b16 %v1419
      %v1468 = vunpack.c.l.b16 %v1420
      %v1469 = vunpack.c.l.b16 %v1421
      %v1470 = vunpack.c.l.b16 %v1422
      %v1471 = vunpack.c.l.b16 %v1423
      %v1472 = vunpack.c.l.b16 %v1424
      %v1473 = vunpack.c.l.b16 %v1425
      %v1474 = vunpack.c.l.b16 %v1426
      %v1475 = vunpack.c.l.b16 %v1427
      %v1476 = vunpack.c.l.b16 %v1428
      %v1477 = vunpack.c.l.b16 %v1429
      %v1478 = vunpack.c.l.b16 %v1430
      %v1479 = vunpack.c.l.b16 %v1431
      %v1480 = vunpack.c.l.b16 %v1432
      %v1481 = vpack.c.b16 %v1466, %v1465
      %v1482 = vpack.c.b16 %v1468, %v1467
      %v1483 = vpack.c.b16 %v1470, %v1469
      %v1484 = vpack.c.b16 %v1472, %v1471
      %v1485 = vpack.c.b16 %v1474, %v1473
      %v1486 = vpack.c.b16 %v1476, %v1475
      %v1487 = vpack.c.b16 %v1478, %v1477
      %v1488 = vpack.c.b16 %v1480, %v1479
      %1497 = vmatprep.subr.bf16.mxu0 0
      %1498 = vmatpush1.bf16.msra.mxu0 %v1481
      %1499 = vmatprep.subr.bf16.mxu0 0
      %1500 = vmatpush1.bf16.msra.mxu0 %v1482
      %1501 = vmatprep.subr.bf16.mxu0 0
      %1502 = vmatpush1.bf16.msra.mxu0 %v1483
      %1503 = vmatprep.subr.bf16.mxu0 0
      %1504 = vmatpush1.bf16.msra.mxu0 %v1484
      %1505 = vmatprep.subr.bf16.mxu0 0
      %1506 = vmatpush1.bf16.msra.mxu0 %v1485
      %1507 = vmatprep.subr.bf16.mxu0 0
      %1508 = vmatpush1.bf16.msra.mxu0 %v1486
      %1509 = vmatprep.subr.bf16.mxu0 0
      %1510 = vmatpush1.bf16.msra.mxu0 %v1487
      %1511 = vmatprep.subr.bf16.mxu0 0
      %1512 = vmatpush1.bf16.msra.mxu0 %v1488
      %1513 = vmatprep.subr.bf16.mxu0 0
      %1514 = vmatpush1.bf16.msra.mxu0 0
      %1515 = vmatprep.subr.bf16.mxu0 0
      %1516 = vmatpush1.bf16.msra.mxu0 0
      %1517 = vmatprep.subr.bf16.mxu0 0
      %1518 = vmatpush1.bf16.msra.mxu0 0
      %1519 = vmatprep.subr.bf16.mxu0 0
      %1520 = vmatpush1.bf16.msra.mxu0 0
      %1521 = vmatprep.subr.bf16.mxu0 0
      %1522 = vmatpush1.bf16.msra.mxu0 0
      %1523 = vmatprep.subr.bf16.mxu0 0
      %1524 = vmatpush1.bf16.msra.mxu0 0
      %1525 = vmatprep.subr.bf16.mxu0 0
      %1526 = vmatpush1.bf16.msra.mxu0 0
      %1527 = vmatprep.subr.bf16.mxu0 0
      %1528 = vmatpush1.bf16.msra.mxu0 0
      %1529 = vmatprep.mubr.bf16.mxu0 0
      %1530 = vmatmul.mubr.bf16.gmra.mrb[0].mxu0 %v1441
      %v1531 = vpop.f32.mrb[0].mxu0
      %v1532 = vadd.f32 0.0, %v1531
      %v1533 = vpop.f32.mrb[0].mxu0
      %v1534 = vpop.f32.mrb[0].mxu0
      %v1535 = vadd.f32 0.0, %v1534
      %v1536 = vpop.f32.mrb[0].mxu0
      %1537 = vmatprep.mubr.bf16.mxu0 0
      %1538 = vmatmul.mubr.bf16.gmra.mrb[0].mxu0 %v1442
      %v1539 = vpop.f32.mrb[0].mxu0
      %v1540 = vadd.f32 0.0, %v1539
      %v1541 = vpop.f32.mrb[0].mxu0
      %v1542 = vpop.f32.mrb[0].mxu0
      %v1543 = vadd.f32 0.0, %v1542
      %v1544 = vpop.f32.mrb[0].mxu0
      %1545 = vmatprep.mubr.bf16.mxu0 0
      %1546 = vmatmul.mubr.bf16.gmra.mrb[0].mxu0 %v1443
      %v1547 = vpop.f32.mrb[0].mxu0
      %v1548 = vadd.f32 0.0, %v1547
      %v1549 = vpop.f32.mrb[0].mxu0
      %v1550 = vpop.f32.mrb[0].mxu0
      %v1551 = vadd.f32 0.0, %v1550
      %v1552 = vpop.f32.mrb[0].mxu0
      %1553 = vmatprep.mubr.bf16.mxu0 0
      %1554 = vmatmul.mubr.bf16.gmra.mrb[0].mxu0 %v1444
      %v1555 = vpop.f32.mrb[0].mxu0
      %v1556 = vadd.f32 0.0, %v1555
      %v1557 = vpop.f32.mrb[0].mxu0
      %v1558 = vpop.f32.mrb[0].mxu0
      %v1559 = vadd.f32 0.0, %v1558
      %v1560 = vpop.f32.mrb[0].mxu0
      %1561 = vdwg.mxu0
      %v1562 = vadd.f32 %v1280, %v1532
      %v1563 = vadd.f32 %v1281, %v1535
      %v1564 = vadd.f32 %v1282, %v1540
      %v1565 = vadd.f32 %v1283, %v1543
      %v1566 = vadd.f32 %v1284, %v1548
      %v1567 = vadd.f32 %v1285, %v1551
      %v1568 = vadd.f32 %v1286, %v1556
      %v1569 = vadd.f32 %v1287, %v1559
      %v1570 = vld [vmem:[%s420] sm:$0xe]
      %v1571 = vld [vmem:[%s420 + $0x8] sm:$0xe]
      %v1572 = vld [vmem:[%s420 + $0x10] sm:$0xe]
      %v1573 = vld [vmem:[%s420 + $0x18] sm:$0xe]
      %v1574 = vld [vmem:[%s420 + $0x20] sm:$0xe]
      %v1575 = vld [vmem:[%s420 + $0x28] sm:$0xe]
      %v1576 = vld [vmem:[%s420 + $0x30] sm:$0xe]
      %v1577 = vld [vmem:[%s420 + $0x38] sm:$0xe]
      %v1594 = vrot.slane %v1570, 5
      %v1595 = vrot.slane %v1594, 4
      %v1596 = vrot.slane %v1289, 5
      %v1597 = vsel %vm931, %v1595, %v1596
      %v1598 = vrot.slane %v1571, 5
      %v1599 = vrot.slane %v1598, 4
      %v1600 = vrot.slane %v1291, 5
      %v1601 = vsel %vm931, %v1599, %v1600
      %v1602 = vrot.slane %v1572, 5
      %v1603 = vrot.slane %v1602, 4
      %v1604 = vrot.slane %v1293, 5
      %v1605 = vsel %vm931, %v1603, %v1604
      %v1606 = vrot.slane %v1573, 5
      %v1607 = vrot.slane %v1606, 4
      %v1608 = vrot.slane %v1295, 5
      %v1609 = vsel %vm931, %v1607, %v1608
      %v1610 = vrot.slane %v1574, 5
      %v1611 = vrot.slane %v1610, 4
      %v1612 = vrot.slane %v1297, 5
      %v1613 = vsel %vm931, %v1611, %v1612
      %v1614 = vrot.slane %v1575, 5
      %v1615 = vrot.slane %v1614, 4
      %v1616 = vrot.slane %v1299, 5
      %v1617 = vsel %vm931, %v1615, %v1616
      %v1618 = vrot.slane %v1576, 5
      %v1619 = vrot.slane %v1618, 4
      %v1620 = vrot.slane %v1301, 5
      %v1621 = vsel %vm931, %v1619, %v1620
      %v1622 = vrot.slane %v1577, 5
      %v1623 = vrot.slane %v1622, 4
      %v1624 = vrot.slane %v1303, 5
      %v1625 = vsel %vm931, %v1623, %v1624
      %s1626 = scalar_lea.vmem %s206, 320
      %v1627 = vld [vmem:[%s1626] sm:$0xf]
      %v1628 = vld [vmem:[%s1626 + $0x4] sm:$0xf]
      %v1629 = vld [vmem:[%s1626 + $0x8] sm:$0xf]
      %v1630 = vld [vmem:[%s1626 + $0xc] sm:$0xf]
      %v1631 = vld [vmem:[%s1626 + $0x10] sm:$0xf]
      %v1632 = vld [vmem:[%s1626 + $0x14] sm:$0xf]
      %v1633 = vld [vmem:[%s1626 + $0x18] sm:$0xf]
      %v1634 = vld [vmem:[%s1626 + $0x1c] sm:$0xf]
      %v1635 = vld [vmem:[%s1626 + $0x20] sm:$0xf]
      %v1636 = vld [vmem:[%s1626 + $0x24] sm:$0xf]
      %v1637 = vld [vmem:[%s1626 + $0x28] sm:$0xf]
      %v1638 = vld [vmem:[%s1626 + $0x2c] sm:$0xf]
      %v1639 = vld [vmem:[%s1626 + $0x30] sm:$0xf]
      %v1640 = vld [vmem:[%s1626 + $0x34] sm:$0xf]
      %v1641 = vld [vmem:[%s1626 + $0x38] sm:$0xf]
      %v1642 = vld [vmem:[%s1626 + $0x3c] sm:$0xf]
      %v1643 = vunpack.c.l.b16 %v1597
      %v1644 = vunpack.c.l.b16 %v1601
      %v1645 = vunpack.c.l.b16 %v1605
      %v1646 = vunpack.c.l.b16 %v1609
      %v1647 = vunpack.c.l.b16 %v1613
      %v1648 = vunpack.c.l.b16 %v1617
      %v1649 = vunpack.c.l.b16 %v1621
      %v1650 = vunpack.c.l.b16 %v1625
      %v1651 = vpack.c.b16 %v1644, %v1643
      %v1652 = vpack.c.b16 %v1646, %v1645
      %v1653 = vpack.c.b16 %v1648, %v1647
      %v1654 = vpack.c.b16 %v1650, %v1649
      %v1675 = vunpack.c.l.b16 %v1627
      %v1676 = vunpack.c.l.b16 %v1628
      %v1677 = vunpack.c.l.b16 %v1629
      %v1678 = vunpack.c.l.b16 %v1630
      %v1679 = vunpack.c.l.b16 %v1631
      %v1680 = vunpack.c.l.b16 %v1632
      %v1681 = vunpack.c.l.b16 %v1633
      %v1682 = vunpack.c.l.b16 %v1634
      %v1683 = vunpack.c.l.b16 %v1635
      %v1684 = vunpack.c.l.b16 %v1636
      %v1685 = vunpack.c.l.b16 %v1637
      %v1686 = vunpack.c.l.b16 %v1638
      %v1687 = vunpack.c.l.b16 %v1639
      %v1688 = vunpack.c.l.b16 %v1640
      %v1689 = vunpack.c.l.b16 %v1641
      %v1690 = vunpack.c.l.b16 %v1642
      %v1691 = vpack.c.b16 %v1676, %v1675
      %v1692 = vpack.c.b16 %v1678, %v1677
      %v1693 = vpack.c.b16 %v1680, %v1679
      %v1694 = vpack.c.b16 %v1682, %v1681
      %v1695 = vpack.c.b16 %v1684, %v1683
      %v1696 = vpack.c.b16 %v1686, %v1685
      %v1697 = vpack.c.b16 %v1688, %v1687
      %v1698 = vpack.c.b16 %v1690, %v1689
      %1707 = vmatprep.subr.bf16.mxu0 0
      %1708 = vmatpush1.bf16.msra.mxu0 %v1691
      %1709 = vmatprep.subr.bf16.mxu0 0
      %1710 = vmatpush1.bf16.msra.mxu0 %v1692
      %1711 = vmatprep.subr.bf16.mxu0 0
      %1712 = vmatpush1.bf16.msra.mxu0 %v1693
      %1713 = vmatprep.subr.bf16.mxu0 0
      %1714 = vmatpush1.bf16.msra.mxu0 %v1694
      %1715 = vmatprep.subr.bf16.mxu0 0
      %1716 = vmatpush1.bf16.msra.mxu0 %v1695
      %1717 = vmatprep.subr.bf16.mxu0 0
      %1718 = vmatpush1.bf16.msra.mxu0 %v1696
      %1719 = vmatprep.subr.bf16.mxu0 0
      %1720 = vmatpush1.bf16.msra.mxu0 %v1697
      %1721 = vmatprep.subr.bf16.mxu0 0
      %1722 = vmatpush1.bf16.msra.mxu0 %v1698
      %1723 = vmatprep.subr.bf16.mxu0 0
      %1724 = vmatpush1.bf16.msra.mxu0 0
      %1725 = vmatprep.subr.bf16.mxu0 0
      %1726 = vmatpush1.bf16.msra.mxu0 0
      %1727 = vmatprep.subr.bf16.mxu0 0
      %1728 = vmatpush1.bf16.msra.mxu0 0
      %1729 = vmatprep.subr.bf16.mxu0 0
      %1730 = vmatpush1.bf16.msra.mxu0 0
      %1731 = vmatprep.subr.bf16.mxu0 0
      %1732 = vmatpush1.bf16.msra.mxu0 0
      %1733 = vmatprep.subr.bf16.mxu0 0
      %1734 = vmatpush1.bf16.msra.mxu0 0
      %1735 = vmatprep.subr.bf16.mxu0 0
      %1736 = vmatpush1.bf16.msra.mxu0 0
      %1737 = vmatprep.subr.bf16.mxu0 0
      %1738 = vmatpush1.bf16.msra.mxu0 0
      %1739 = vmatprep.mubr.bf16.mxu0 0
      %1740 = vmatmul.mubr.bf16.gmra.mrb[0].mxu0 %v1651
      %v1741 = vpop.f32.mrb[0].mxu0
      %v1742 = vadd.f32 0.0, %v1741
      %v1743 = vpop.f32.mrb[0].mxu0
      %v1744 = vpop.f32.mrb[0].mxu0
      %v1745 = vadd.f32 0.0, %v1744
      %v1746 = vpop.f32.mrb[0].mxu0
      %1747 = vmatprep.mubr.bf16.mxu0 0
      %1748 = vmatmul.mubr.bf16.gmra.mrb[0].mxu0 %v1652
      %v1749 = vpop.f32.mrb[0].mxu0
      %v1750 = vadd.f32 0.0, %v1749
      %v1751 = vpop.f32.mrb[0].mxu0
      %v1752 = vpop.f32.mrb[0].mxu0
      %v1753 = vadd.f32 0.0, %v1752
      %v1754 = vpop.f32.mrb[0].mxu0
      %1755 = vmatprep.mubr.bf16.mxu0 0
      %1756 = vmatmul.mubr.bf16.gmra.mrb[0].mxu0 %v1653
      %v1757 = vpop.f32.mrb[0].mxu0
      %v1758 = vadd.f32 0.0, %v1757
      %v1759 = vpop.f32.mrb[0].mxu0
      %v1760 = vpop.f32.mrb[0].mxu0
      %v1761 = vadd.f32 0.0, %v1760
      %v1762 = vpop.f32.mrb[0].mxu0
      %1763 = vmatprep.mubr.bf16.mxu0 0
      %1764 = vmatmul.mubr.bf16.gmra.mrb[0].mxu0 %v1654
      %v1765 = vpop.f32.mrb[0].mxu0
      %v1766 = vadd.f32 0.0, %v1765
      %v1767 = vpop.f32.mrb[0].mxu0
      %v1768 = vpop.f32.mrb[0].mxu0
      %v1769 = vadd.f32 0.0, %v1768
      %v1770 = vpop.f32.mrb[0].mxu0
      %1771 = vdwg.mxu0
      %v1772 = vadd.f32 %v1562, %v1742
      %v1773 = vadd.f32 %v1563, %v1745
      %v1774 = vadd.f32 %v1564, %v1750
      %v1775 = vadd.f32 %v1565, %v1753
      %v1776 = vadd.f32 %v1566, %v1758
      %v1777 = vadd.f32 %v1567, %v1761
      %v1778 = vadd.f32 %v1568, %v1766
      %v1779 = vadd.f32 %v1569, %v1769
      %s1780 = scalar_lea.vmem [#allocation2], 16
      %v1781 = vld [vmem:[%s1780] sm:$0xf]
      %v1782 = vld [vmem:[%s1780 + $0x8] sm:$0xf]
      %v1783 = vld [vmem:[%s1780 + $0x10] sm:$0xf]
      %v1784 = vld [vmem:[%s1780 + $0x18] sm:$0xf]
      %v1785 = vld [vmem:[%s1780 + $0x20] sm:$0xf]
      %v1786 = vld [vmem:[%s1780 + $0x28] sm:$0xf]
      %v1787 = vld [vmem:[%s1780 + $0x30] sm:$0xf]
      %v1788 = vld [vmem:[%s1780 + $0x38] sm:$0xf]
      %s1789 = scalar_lea.vmem %s206, 384
      %v1790 = vld [vmem:[%s1789] sm:$0xf]
      %v1791 = vld [vmem:[%s1789 + $0x4] sm:$0xf]
      %v1792 = vld [vmem:[%s1789 + $0x8] sm:$0xf]
      %v1793 = vld [vmem:[%s1789 + $0xc] sm:$0xf]
      %v1794 = vld [vmem:[%s1789 + $0x10] sm:$0xf]
      %v1795 = vld [vmem:[%s1789 + $0x14] sm:$0xf]
      %v1796 = vld [vmem:[%s1789 + $0x18] sm:$0xf]
      %v1797 = vld [vmem:[%s1789 + $0x1c] sm:$0xf]
      %v1798 = vld [vmem:[%s1789 + $0x20] sm:$0xf]
      %v1799 = vld [vmem:[%s1789 + $0x24] sm:$0xf]
      %v1800 = vld [vmem:[%s1789 + $0x28] sm:$0xf]
      %v1801 = vld [vmem:[%s1789 + $0x2c] sm:$0xf]
      %v1802 = vld [vmem:[%s1789 + $0x30] sm:$0xf]
      %v1803 = vld [vmem:[%s1789 + $0x34] sm:$0xf]
      %v1804 = vld [vmem:[%s1789 + $0x38] sm:$0xf]
      %v1805 = vld [vmem:[%s1789 + $0x3c] sm:$0xf]
      %v1814 = vunpack.c.l.b16 %v1781
      %v1815 = vunpack.c.l.b16 %v1782
      %v1816 = vunpack.c.l.b16 %v1783
      %v1817 = vunpack.c.l.b16 %v1784
      %v1818 = vunpack.c.l.b16 %v1785
      %v1819 = vunpack.c.l.b16 %v1786
      %v1820 = vunpack.c.l.b16 %v1787
      %v1821 = vunpack.c.l.b16 %v1788
      %v1822 = vpack.c.b16 %v1815, %v1814
      %v1823 = vpack.c.b16 %v1817, %v1816
      %v1824 = vpack.c.b16 %v1819, %v1818
      %v1825 = vpack.c.b16 %v1821, %v1820
      %v1846 = vunpack.c.l.b16 %v1790
      %v1847 = vunpack.c.l.b16 %v1791
      %v1848 = vunpack.c.l.b16 %v1792
      %v1849 = vunpack.c.l.b16 %v1793
      %v1850 = vunpack.c.l.b16 %v1794
      %v1851 = vunpack.c.l.b16 %v1795
      %v1852 = vunpack.c.l.b16 %v1796
      %v1853 = vunpack.c.l.b16 %v1797
      %v1854 = vunpack.c.l.b16 %v1798
      %v1855 = vunpack.c.l.b16 %v1799
      %v1856 = vunpack.c.l.b16 %v1800
      %v1857 = vunpack.c.l.b16 %v1801
      %v1858 = vunpack.c.l.b16 %v1802
      %v1859 = vunpack.c.l.b16 %v1803
      %v1860 = vunpack.c.l.b16 %v1804
      %v1861 = vunpack.c.l.b16 %v1805
      %v1862 = vpack.c.b16 %v1847, %v1846
      %v1863 = vpack.c.b16 %v1849, %v1848
      %v1864 = vpack.c.b16 %v1851, %v1850
      %v1865 = vpack.c.b16 %v1853, %v1852
      %v1866 = vpack.c.b16 %v1855, %v1854
      %v1867 = vpack.c.b16 %v1857, %v1856
      %v1868 = vpack.c.b16 %v1859, %v1858
      %v1869 = vpack.c.b16 %v1861, %v1860
      %1878 = vmatprep.subr.bf16.mxu0 0
      %1879 = vmatpush1.bf16.msra.mxu0 %v1862
      %1880 = vmatprep.subr.bf16.mxu0 0
      %1881 = vmatpush1.bf16.msra.mxu0 %v1863
      %1882 = vmatprep.subr.bf16.mxu0 0
      %1883 = vmatpush1.bf16.msra.mxu0 %v1864
      %1884 = vmatprep.subr.bf16.mxu0 0
      %1885 = vmatpush1.bf16.msra.mxu0 %v1865
      %1886 = vmatprep.subr.bf16.mxu0 0
      %1887 = vmatpush1.bf16.msra.mxu0 %v1866
      %1888 = vmatprep.subr.bf16.mxu0 0
      %1889 = vmatpush1.bf16.msra.mxu0 %v1867
      %1890 = vmatprep.subr.bf16.mxu0 0
      %1891 = vmatpush1.bf16.msra.mxu0 %v1868
      %1892 = vmatprep.subr.bf16.mxu0 0
      %1893 = vmatpush1.bf16.msra.mxu0 %v1869
      %1894 = vmatprep.subr.bf16.mxu0 0
      %1895 = vmatpush1.bf16.msra.mxu0 0
      %1896 = vmatprep.subr.bf16.mxu0 0
      %1897 = vmatpush1.bf16.msra.mxu0 0
      %1898 = vmatprep.subr.bf16.mxu0 0
      %1899 = vmatpush1.bf16.msra.mxu0 0
      %1900 = vmatprep.subr.bf16.mxu0 0
      %1901 = vmatpush1.bf16.msra.mxu0 0
      %1902 = vmatprep.subr.bf16.mxu0 0
      %1903 = vmatpush1.bf16.msra.mxu0 0
      %1904 = vmatprep.subr.bf16.mxu0 0
      %1905 = vmatpush1.bf16.msra.mxu0 0
      %1906 = vmatprep.subr.bf16.mxu0 0
      %1907 = vmatpush1.bf16.msra.mxu0 0
      %1908 = vmatprep.subr.bf16.mxu0 0
      %1909 = vmatpush1.bf16.msra.mxu0 0
      %1910 = vmatprep.mubr.bf16.mxu0 0
      %1911 = vmatmul.mubr.bf16.gmra.mrb[0].mxu0 %v1822
      %v1912 = vpop.f32.mrb[0].mxu0
      %v1913 = vadd.f32 0.0, %v1912
      %v1914 = vpop.f32.mrb[0].mxu0
      %v1915 = vpop.f32.mrb[0].mxu0
      %v1916 = vadd.f32 0.0, %v1915
      %v1917 = vpop.f32.mrb[0].mxu0
      %1918 = vmatprep.mubr.bf16.mxu0 0
      %1919 = vmatmul.mubr.bf16.gmra.mrb[0].mxu0 %v1823
      %v1920 = vpop.f32.mrb[0].mxu0
      %v1921 = vadd.f32 0.0, %v1920
      %v1922 = vpop.f32.mrb[0].mxu0
      %v1923 = vpop.f32.mrb[0].mxu0
      %v1924 = vadd.f32 0.0, %v1923
      %v1925 = vpop.f32.mrb[0].mxu0
      %1926 = vmatprep.mubr.bf16.mxu0 0
      %1927 = vmatmul.mubr.bf16.gmra.mrb[0].mxu0 %v1824
      %v1928 = vpop.f32.mrb[0].mxu0
      %v1929 = vadd.f32 0.0, %v1928
      %v1930 = vpop.f32.mrb[0].mxu0
      %v1931 = vpop.f32.mrb[0].mxu0
      %v1932 = vadd.f32 0.0, %v1931
      %v1933 = vpop.f32.mrb[0].mxu0
      %1934 = vmatprep.mubr.bf16.mxu0 0
      %1935 = vmatmul.mubr.bf16.gmra.mrb[0].mxu0 %v1825
      %v1936 = vpop.f32.mrb[0].mxu0
      %v1937 = vadd.f32 0.0, %v1936
      %v1938 = vpop.f32.mrb[0].mxu0
      %v1939 = vpop.f32.mrb[0].mxu0
      %v1940 = vadd.f32 0.0, %v1939
      %v1941 = vpop.f32.mrb[0].mxu0
      %1942 = vdwg.mxu0
      %v1943 = vadd.f32 %v1772, %v1913
      %v1944 = vadd.f32 %v1773, %v1916
      %v1945 = vadd.f32 %v1774, %v1921
      %v1946 = vadd.f32 %v1775, %v1924
      %v1947 = vadd.f32 %v1776, %v1929
      %v1948 = vadd.f32 %v1777, %v1932
      %v1949 = vadd.f32 %v1778, %v1937
      %v1950 = vadd.f32 %v1779, %v1940
      %v1951 = vld [vmem:[%s1780] sm:$0xf]
      %v1952 = vld [vmem:[%s1780 + $0x4] sm:$0x1]
      %v1953 = vld [vmem:[%s1780 + $0x8] sm:$0xf]
      %v1954 = vld [vmem:[%s1780 + $0xc] sm:$0x1]
      %v1955 = vld [vmem:[%s1780 + $0x10] sm:$0xf]
      %v1956 = vld [vmem:[%s1780 + $0x14] sm:$0x1]
      %v1957 = vld [vmem:[%s1780 + $0x18] sm:$0xf]
      %v1958 = vld [vmem:[%s1780 + $0x1c] sm:$0x1]
      %v1959 = vld [vmem:[%s1780 + $0x20] sm:$0xf]
      %v1960 = vld [vmem:[%s1780 + $0x24] sm:$0x1]
      %v1961 = vld [vmem:[%s1780 + $0x28] sm:$0xf]
      %v1962 = vld [vmem:[%s1780 + $0x2c] sm:$0x1]
      %v1963 = vld [vmem:[%s1780 + $0x30] sm:$0xf]
      %v1964 = vld [vmem:[%s1780 + $0x34] sm:$0x1]
      %v1965 = vld [vmem:[%s1780 + $0x38] sm:$0xf]
      %v1966 = vld [vmem:[%s1780 + $0x3c] sm:$0x1]
      %v1968 = vshrl.u32 %v1951, 16
      %v1970 = vrot.slane %v1968, 4
      %v1971 = vshll.u32 %v1951, 16
      %v1973 = vrot.slane %v1971, 5
      %v1974 = vor.u32 %v1970, %v1973
      %v1975 = vrot.slane %v1974, 4
      %v1977 = vshll.u32 %v1952, 16
      %v1979 = vrot.slane %v1977, 5
      %v1980 = vsel %vm509, %v1975, %v1979
      %v1982 = vshrl.u32 %v1953, 16
      %v1984 = vrot.slane %v1982, 4
      %v1985 = vshll.u32 %v1953, 16
      %v1987 = vrot.slane %v1985, 5
      %v1988 = vor.u32 %v1984, %v1987
      %v1989 = vrot.slane %v1988, 4
      %v1991 = vshll.u32 %v1954, 16
      %v1993 = vrot.slane %v1991, 5
      %v1994 = vsel %vm509, %v1989, %v1993
      %v1996 = vshrl.u32 %v1955, 16
      %v1998 = vrot.slane %v1996, 4
      %v1999 = vshll.u32 %v1955, 16
      %v2001 = vrot.slane %v1999, 5
      %v2002 = vor.u32 %v1998, %v2001
      %v2003 = vrot.slane %v2002, 4
      %v2005 = vshll.u32 %v1956, 16
      %v2007 = vrot.slane %v2005, 5
      %v2008 = vsel %vm509, %v2003, %v2007
      %v2010 = vshrl.u32 %v1957, 16
      %v2012 = vrot.slane %v2010, 4
      %v2013 = vshll.u32 %v1957, 16
      %v2015 = vrot.slane %v2013, 5
      %v2016 = vor.u32 %v2012, %v2015
      %v2017 = vrot.slane %v2016, 4
      %v2019 = vshll.u32 %v1958, 16
      %v2021 = vrot.slane %v2019, 5
      %v2022 = vsel %vm509, %v2017, %v2021
      %v2024 = vshrl.u32 %v1959, 16
      %v2026 = vrot.slane %v2024, 4
      %v2027 = vshll.u32 %v1959, 16
      %v2029 = vrot.slane %v2027, 5
      %v2030 = vor.u32 %v2026, %v2029
      %v2031 = vrot.slane %v2030, 4
      %v2033 = vshll.u32 %v1960, 16
      %v2035 = vrot.slane %v2033, 5
      %v2036 = vsel %vm509, %v2031, %v2035
      %v2038 = vshrl.u32 %v1961, 16
      %v2040 = vrot.slane %v2038, 4
      %v2041 = vshll.u32 %v1961, 16
      %v2043 = vrot.slane %v2041, 5
      %v2044 = vor.u32 %v2040, %v2043
      %v2045 = vrot.slane %v2044, 4
      %v2047 = vshll.u32 %v1962, 16
      %v2049 = vrot.slane %v2047, 5
      %v2050 = vsel %vm509, %v2045, %v2049
      %v2052 = vshrl.u32 %v1963, 16
      %v2054 = vrot.slane %v2052, 4
      %v2055 = vshll.u32 %v1963, 16
      %v2057 = vrot.slane %v2055, 5
      %v2058 = vor.u32 %v2054, %v2057
      %v2059 = vrot.slane %v2058, 4
      %v2061 = vshll.u32 %v1964, 16
      %v2063 = vrot.slane %v2061, 5
      %v2064 = vsel %vm509, %v2059, %v2063
      %v2066 = vshrl.u32 %v1965, 16
      %v2068 = vrot.slane %v2066, 4
      %v2069 = vshll.u32 %v1965, 16
      %v2071 = vrot.slane %v2069, 5
      %v2072 = vor.u32 %v2068, %v2071
      %v2073 = vrot.slane %v2072, 4
      %v2075 = vshll.u32 %v1966, 16
      %v2077 = vrot.slane %v2075, 5
      %v2078 = vsel %vm509, %v2073, %v2077
      %s2079 = scalar_lea.vmem %s206, 448
      %v2080 = vld [vmem:[%s2079] sm:$0xf]
      %v2081 = vld [vmem:[%s2079 + $0x4] sm:$0xf]
      %v2082 = vld [vmem:[%s2079 + $0x8] sm:$0xf]
      %v2083 = vld [vmem:[%s2079 + $0xc] sm:$0xf]
      %v2084 = vld [vmem:[%s2079 + $0x10] sm:$0xf]
      %v2085 = vld [vmem:[%s2079 + $0x14] sm:$0xf]
      %v2086 = vld [vmem:[%s2079 + $0x18] sm:$0xf]
      %v2087 = vld [vmem:[%s2079 + $0x1c] sm:$0xf]
      %v2088 = vld [vmem:[%s2079 + $0x20] sm:$0xf]
      %v2089 = vld [vmem:[%s2079 + $0x24] sm:$0xf]
      %v2090 = vld [vmem:[%s2079 + $0x28] sm:$0xf]
      %v2091 = vld [vmem:[%s2079 + $0x2c] sm:$0xf]
      %v2092 = vld [vmem:[%s2079 + $0x30] sm:$0xf]
      %v2093 = vld [vmem:[%s2079 + $0x34] sm:$0xf]
      %v2094 = vld [vmem:[%s2079 + $0x38] sm:$0xf]
      %v2095 = vld [vmem:[%s2079 + $0x3c] sm:$0xf]
      %v2096 = vunpack.c.l.b16 %v1980
      %v2097 = vunpack.c.l.b16 %v1994
      %v2098 = vunpack.c.l.b16 %v2008
      %v2099 = vunpack.c.l.b16 %v2022
      %v2100 = vunpack.c.l.b16 %v2036
      %v2101 = vunpack.c.l.b16 %v2050
      %v2102 = vunpack.c.l.b16 %v2064
      %v2103 = vunpack.c.l.b16 %v2078
      %v2104 = vpack.c.b16 %v2097, %v2096
      %v2105 = vpack.c.b16 %v2099, %v2098
      %v2106 = vpack.c.b16 %v2101, %v2100
      %v2107 = vpack.c.b16 %v2103, %v2102
      %v2128 = vunpack.c.l.b16 %v2080
      %v2129 = vunpack.c.l.b16 %v2081
      %v2130 = vunpack.c.l.b16 %v2082
      %v2131 = vunpack.c.l.b16 %v2083
      %v2132 = vunpack.c.l.b16 %v2084
      %v2133 = vunpack.c.l.b16 %v2085
      %v2134 = vunpack.c.l.b16 %v2086
      %v2135 = vunpack.c.l.b16 %v2087
      %v2136 = vunpack.c.l.b16 %v2088
      %v2137 = vunpack.c.l.b16 %v2089
      %v2138 = vunpack.c.l.b16 %v2090
      %v2139 = vunpack.c.l.b16 %v2091
      %v2140 = vunpack.c.l.b16 %v2092
      %v2141 = vunpack.c.l.b16 %v2093
      %v2142 = vunpack.c.l.b16 %v2094
      %v2143 = vunpack.c.l.b16 %v2095
      %v2144 = vpack.c.b16 %v2129, %v2128
      %v2145 = vpack.c.b16 %v2131, %v2130
      %v2146 = vpack.c.b16 %v2133, %v2132
      %v2147 = vpack.c.b16 %v2135, %v2134
      %v2148 = vpack.c.b16 %v2137, %v2136
      %v2149 = vpack.c.b16 %v2139, %v2138
      %v2150 = vpack.c.b16 %v2141, %v2140
      %v2151 = vpack.c.b16 %v2143, %v2142
      %2160 = vmatprep.subr.bf16.mxu0 0
      %2161 = vmatpush1.bf16.msra.mxu0 %v2144
      %2162 = vmatprep.subr.bf16.mxu0 0
      %2163 = vmatpush1.bf16.msra.mxu0 %v2145
      %2164 = vmatprep.subr.bf16.mxu0 0
      %2165 = vmatpush1.bf16.msra.mxu0 %v2146
      %2166 = vmatprep.subr.bf16.mxu0 0
      %2167 = vmatpush1.bf16.msra.mxu0 %v2147
      %2168 = vmatprep.subr.bf16.mxu0 0
      %2169 = vmatpush1.bf16.msra.mxu0 %v2148
      %2170 = vmatprep.subr.bf16.mxu0 0
      %2171 = vmatpush1.bf16.msra.mxu0 %v2149
      %2172 = vmatprep.subr.bf16.mxu0 0
      %2173 = vmatpush1.bf16.msra.mxu0 %v2150
      %2174 = vmatprep.subr.bf16.mxu0 0
      %2175 = vmatpush1.bf16.msra.mxu0 %v2151
      %2176 = vmatprep.subr.bf16.mxu0 0
      %2177 = vmatpush1.bf16.msra.mxu0 0
      %2178 = vmatprep.subr.bf16.mxu0 0
      %2179 = vmatpush1.bf16.msra.mxu0 0
      %2180 = vmatprep.subr.bf16.mxu0 0
      %2181 = vmatpush1.bf16.msra.mxu0 0
      %2182 = vmatprep.subr.bf16.mxu0 0
      %2183 = vmatpush1.bf16.msra.mxu0 0
      %2184 = vmatprep.subr.bf16.mxu0 0
      %2185 = vmatpush1.bf16.msra.mxu0 0
      %2186 = vmatprep.subr.bf16.mxu0 0
      %2187 = vmatpush1.bf16.msra.mxu0 0
      %2188 = vmatprep.subr.bf16.mxu0 0
      %2189 = vmatpush1.bf16.msra.mxu0 0
      %2190 = vmatprep.subr.bf16.mxu0 0
      %2191 = vmatpush1.bf16.msra.mxu0 0
      %2192 = vmatprep.mubr.bf16.mxu0 0
      %2193 = vmatmul.mubr.bf16.gmra.mrb[0].mxu0 %v2104
      %v2194 = vpop.f32.mrb[0].mxu0
      %v2195 = vadd.f32 0.0, %v2194
      %v2196 = vpop.f32.mrb[0].mxu0
      %v2197 = vpop.f32.mrb[0].mxu0
      %v2198 = vadd.f32 0.0, %v2197
      %v2199 = vpop.f32.mrb[0].mxu0
      %2200 = vmatprep.mubr.bf16.mxu0 0
      %2201 = vmatmul.mubr.bf16.gmra.mrb[0].mxu0 %v2105
      %v2202 = vpop.f32.mrb[0].mxu0
      %v2203 = vadd.f32 0.0, %v2202
      %v2204 = vpop.f32.mrb[0].mxu0
      %v2205 = vpop.f32.mrb[0].mxu0
      %v2206 = vadd.f32 0.0, %v2205
      %v2207 = vpop.f32.mrb[0].mxu0
      %2208 = vmatprep.mubr.bf16.mxu0 0
      %2209 = vmatmul.mubr.bf16.gmra.mrb[0].mxu0 %v2106
      %v2210 = vpop.f32.mrb[0].mxu0
      %v2211 = vadd.f32 0.0, %v2210
      %v2212 = vpop.f32.mrb[0].mxu0
      %v2213 = vpop.f32.mrb[0].mxu0
      %v2214 = vadd.f32 0.0, %v2213
      %v2215 = vpop.f32.mrb[0].mxu0
      %2216 = vmatprep.mubr.bf16.mxu0 0
      %2217 = vmatmul.mubr.bf16.gmra.mrb[0].mxu0 %v2107
      %v2218 = vpop.f32.mrb[0].mxu0
      %v2219 = vadd.f32 0.0, %v2218
      %v2220 = vpop.f32.mrb[0].mxu0
      %v2221 = vpop.f32.mrb[0].mxu0
      %v2222 = vadd.f32 0.0, %v2221
      %v2223 = vpop.f32.mrb[0].mxu0
      %2224 = vdwg.mxu0
      %v2225 = vadd.f32 %v1943, %v2195
      %v2226 = vadd.f32 %v1944, %v2198
      %v2227 = vadd.f32 %v1945, %v2203
      %v2228 = vadd.f32 %v1946, %v2206
      %v2229 = vadd.f32 %v1947, %v2211
      %v2230 = vadd.f32 %v1948, %v2214
      %v2231 = vadd.f32 %v1949, %v2219
      %v2232 = vadd.f32 %v1950, %v2222
      %v2233 = vld [vmem:[%s1780] sm:$0xe]
      %v2234 = vld [vmem:[%s1780 + $0x8] sm:$0xe]
      %v2235 = vld [vmem:[%s1780 + $0x10] sm:$0xe]
      %v2236 = vld [vmem:[%s1780 + $0x18] sm:$0xe]
      %v2237 = vld [vmem:[%s1780 + $0x20] sm:$0xe]
      %v2238 = vld [vmem:[%s1780 + $0x28] sm:$0xe]
      %v2239 = vld [vmem:[%s1780 + $0x30] sm:$0xe]
      %v2240 = vld [vmem:[%s1780 + $0x38] sm:$0xe]
      %v2257 = vrot.slane %v2233, 5
      %v2258 = vrot.slane %v2257, 4
      %v2259 = vrot.slane %v1952, 5
      %v2260 = vsel %vm931, %v2258, %v2259
      %v2261 = vrot.slane %v2234, 5
      %v2262 = vrot.slane %v2261, 4
      %v2263 = vrot.slane %v1954, 5
      %v2264 = vsel %vm931, %v2262, %v2263
      %v2265 = vrot.slane %v2235, 5
      %v2266 = vrot.slane %v2265, 4
      %v2267 = vrot.slane %v1956, 5
      %v2268 = vsel %vm931, %v2266, %v2267
      %v2269 = vrot.slane %v2236, 5
      %v2270 = vrot.slane %v2269, 4
      %v2271 = vrot.slane %v1958, 5
      %v2272 = vsel %vm931, %v2270, %v2271
      %v2273 = vrot.slane %v2237, 5
      %v2274 = vrot.slane %v2273, 4
      %v2275 = vrot.slane %v1960, 5
      %v2276 = vsel %vm931, %v2274, %v2275
      %v2277 = vrot.slane %v2238, 5
      %v2278 = vrot.slane %v2277, 4
      %v2279 = vrot.slane %v1962, 5
      %v2280 = vsel %vm931, %v2278, %v2279
      %v2281 = vrot.slane %v2239, 5
      %v2282 = vrot.slane %v2281, 4
      %v2283 = vrot.slane %v1964, 5
      %v2284 = vsel %vm931, %v2282, %v2283
      %v2285 = vrot.slane %v2240, 5
      %v2286 = vrot.slane %v2285, 4
      %v2287 = vrot.slane %v1966, 5
      %v2288 = vsel %vm931, %v2286, %v2287
      %s2289 = scalar_lea.vmem %s206, 512
      %v2290 = vld [vmem:[%s2289] sm:$0xf]
      %v2291 = vld [vmem:[%s2289 + $0x4] sm:$0xf]
      %v2292 = vld [vmem:[%s2289 + $0x8] sm:$0xf]
      %v2293 = vld [vmem:[%s2289 + $0xc] sm:$0xf]
      %v2294 = vld [vmem:[%s2289 + $0x10] sm:$0xf]
      %v2295 = vld [vmem:[%s2289 + $0x14] sm:$0xf]
      %v2296 = vld [vmem:[%s2289 + $0x18] sm:$0xf]
      %v2297 = vld [vmem:[%s2289 + $0x1c] sm:$0xf]
      %v2298 = vld [vmem:[%s2289 + $0x20] sm:$0xf]
      %v2299 = vld [vmem:[%s2289 + $0x24] sm:$0xf]
      %v2300 = vld [vmem:[%s2289 + $0x28] sm:$0xf]
      %v2301 = vld [vmem:[%s2289 + $0x2c] sm:$0xf]
      %v2302 = vld [vmem:[%s2289 + $0x30] sm:$0xf]
      %v2303 = vld [vmem:[%s2289 + $0x34] sm:$0xf]
      %v2304 = vld [vmem:[%s2289 + $0x38] sm:$0xf]
      %v2305 = vld [vmem:[%s2289 + $0x3c] sm:$0xf]
      %v2306 = vunpack.c.l.b16 %v2260
      %v2307 = vunpack.c.l.b16 %v2264
      %v2308 = vunpack.c.l.b16 %v2268
      %v2309 = vunpack.c.l.b16 %v2272
      %v2310 = vunpack.c.l.b16 %v2276
      %v2311 = vunpack.c.l.b16 %v2280
      %v2312 = vunpack.c.l.b16 %v2284
      %v2313 = vunpack.c.l.b16 %v2288
      %v2314 = vpack.c.b16 %v2307, %v2306
      %v2315 = vpack.c.b16 %v2309, %v2308
      %v2316 = vpack.c.b16 %v2311, %v2310
      %v2317 = vpack.c.b16 %v2313, %v2312
      %v2338 = vunpack.c.l.b16 %v2290
      %v2339 = vunpack.c.l.b16 %v2291
      %v2340 = vunpack.c.l.b16 %v2292
      %v2341 = vunpack.c.l.b16 %v2293
      %v2342 = vunpack.c.l.b16 %v2294
      %v2343 = vunpack.c.l.b16 %v2295
      %v2344 = vunpack.c.l.b16 %v2296
      %v2345 = vunpack.c.l.b16 %v2297
      %v2346 = vunpack.c.l.b16 %v2298
      %v2347 = vunpack.c.l.b16 %v2299
      %v2348 = vunpack.c.l.b16 %v2300
      %v2349 = vunpack.c.l.b16 %v2301
      %v2350 = vunpack.c.l.b16 %v2302
      %v2351 = vunpack.c.l.b16 %v2303
      %v2352 = vunpack.c.l.b16 %v2304
      %v2353 = vunpack.c.l.b16 %v2305
      %v2354 = vpack.c.b16 %v2339, %v2338
      %v2355 = vpack.c.b16 %v2341, %v2340
      %v2356 = vpack.c.b16 %v2343, %v2342
      %v2357 = vpack.c.b16 %v2345, %v2344
      %v2358 = vpack.c.b16 %v2347, %v2346
      %v2359 = vpack.c.b16 %v2349, %v2348
      %v2360 = vpack.c.b16 %v2351, %v2350
      %v2361 = vpack.c.b16 %v2353, %v2352
      %2370 = vmatprep.subr.bf16.mxu0 0
      %2371 = vmatpush1.bf16.msra.mxu0 %v2354
      %2372 = vmatprep.subr.bf16.mxu0 0
      %2373 = vmatpush1.bf16.msra.mxu0 %v2355
      %2374 = vmatprep.subr.bf16.mxu0 0
      %2375 = vmatpush1.bf16.msra.mxu0 %v2356
      %2376 = vmatprep.subr.bf16.mxu0 0
      %2377 = vmatpush1.bf16.msra.mxu0 %v2357
      %2378 = vmatprep.subr.bf16.mxu0 0
      %2379 = vmatpush1.bf16.msra.mxu0 %v2358
      %2380 = vmatprep.subr.bf16.mxu0 0
      %2381 = vmatpush1.bf16.msra.mxu0 %v2359
      %2382 = vmatprep.subr.bf16.mxu0 0
      %2383 = vmatpush1.bf16.msra.mxu0 %v2360
      %2384 = vmatprep.subr.bf16.mxu0 0
      %2385 = vmatpush1.bf16.msra.mxu0 %v2361
      %2386 = vmatprep.subr.bf16.mxu0 0
      %2387 = vmatpush1.bf16.msra.mxu0 0
      %2388 = vmatprep.subr.bf16.mxu0 0
      %2389 = vmatpush1.bf16.msra.mxu0 0
      %2390 = vmatprep.subr.bf16.mxu0 0
      %2391 = vmatpush1.bf16.msra.mxu0 0
      %2392 = vmatprep.subr.bf16.mxu0 0
      %2393 = vmatpush1.bf16.msra.mxu0 0
      %2394 = vmatprep.subr.bf16.mxu0 0
      %2395 = vmatpush1.bf16.msra.mxu0 0
      %2396 = vmatprep.subr.bf16.mxu0 0
      %2397 = vmatpush1.bf16.msra.mxu0 0
      %2398 = vmatprep.subr.bf16.mxu0 0
      %2399 = vmatpush1.bf16.msra.mxu0 0
      %2400 = vmatprep.subr.bf16.mxu0 0
      %2401 = vmatpush1.bf16.msra.mxu0 0
      %2402 = vmatprep.mubr.bf16.mxu0 0
      %2403 = vmatmul.mubr.bf16.gmra.mrb[0].mxu0 %v2314
      %v2404 = vpop.f32.mrb[0].mxu0
      %v2405 = vadd.f32 0.0, %v2404
      %v2406 = vpop.f32.mrb[0].mxu0
      %v2407 = vpop.f32.mrb[0].mxu0
      %v2408 = vadd.f32 0.0, %v2407
      %v2409 = vpop.f32.mrb[0].mxu0
      %2410 = vmatprep.mubr.bf16.mxu0 0
      %2411 = vmatmul.mubr.bf16.gmra.mrb[0].mxu0 %v2315
      %v2412 = vpop.f32.mrb[0].mxu0
      %v2413 = vadd.f32 0.0, %v2412
      %v2414 = vpop.f32.mrb[0].mxu0
      %v2415 = vpop.f32.mrb[0].mxu0
      %v2416 = vadd.f32 0.0, %v2415
      %v2417 = vpop.f32.mrb[0].mxu0
      %2418 = vmatprep.mubr.bf16.mxu0 0
      %2419 = vmatmul.mubr.bf16.gmra.mrb[0].mxu0 %v2316
      %v2420 = vpop.f32.mrb[0].mxu0
      %v2421 = vadd.f32 0.0, %v2420
      %v2422 = vpop.f32.mrb[0].mxu0
      %v2423 = vpop.f32.mrb[0].mxu0
      %v2424 = vadd.f32 0.0, %v2423
      %v2425 = vpop.f32.mrb[0].mxu0
      %2426 = vmatprep.mubr.bf16.mxu0 0
      %2427 = vmatmul.mubr.bf16.gmra.mrb[0].mxu0 %v2317
      %v2428 = vpop.f32.mrb[0].mxu0
      %v2429 = vadd.f32 0.0, %v2428
      %v2430 = vpop.f32.mrb[0].mxu0
      %v2431 = vpop.f32.mrb[0].mxu0
      %v2432 = vadd.f32 0.0, %v2431
      %v2433 = vpop.f32.mrb[0].mxu0
      %2434 = vdwg.mxu0
      %v2435 = vadd.f32 %v2225, %v2405
      %v2436 = vadd.f32 %v2226, %v2408
      %v2437 = vadd.f32 %v2227, %v2413
      %v2438 = vadd.f32 %v2228, %v2416
      %v2439 = vadd.f32 %v2229, %v2421
      %v2440 = vadd.f32 %v2230, %v2424
      %v2441 = vadd.f32 %v2231, %v2429
      %v2442 = vadd.f32 %v2232, %v2432
      %v2443 = vpack.c.bf16 %v2435, %v2435
      %v2444 = vpack.c.bf16 %v2436, %v2436
      %v2445 = vpack.c.bf16 %v2437, %v2437
      %v2446 = vpack.c.bf16 %v2438, %v2438
      %v2447 = vpack.c.bf16 %v2439, %v2439
      %v2448 = vpack.c.bf16 %v2440, %v2440
      %v2449 = vpack.c.bf16 %v2441, %v2441
      %v2450 = vpack.c.bf16 %v2442, %v2442
      %2451 = vst [vmem:[%s214] sm:$0xf] %v2443
      %2452 = vst [vmem:[%s214 + $0x4] sm:$0xf] %v2444
      %2453 = vst [vmem:[%s214 + $0x8] sm:$0xf] %v2445
      %2454 = vst [vmem:[%s214 + $0xc] sm:$0xf] %v2446
      %2455 = vst [vmem:[%s214 + $0x10] sm:$0xf] %v2447
      %2456 = vst [vmem:[%s214 + $0x14] sm:$0xf] %v2448
      %2457 = vst [vmem:[%s214 + $0x18] sm:$0xf] %v2449
      %2458 = vst [vmem:[%s214 + $0x1c] sm:$0xf] %v2450
      // Predicated region
      $region33: #{down_forward.3} parent=27 // pred_check
        %p2459 = pneg %p220
      $region34: #{down_forward.3} parent=27 // pred_check_branch
        %2461 = sbr.rel (%p2459) target = $region36
      $region35: #{down_forward.3} parent=27 // pred_region
        %2462 = vst [vmem:[%s218] sm:$0x3] 0.0
      $region36: #{down_forward.3} parent=27 // pred_fallthru
        _
      %v2463 = vld [vmem:[%s218] sm:$0x1]
      %v2464 = vadd.f32 %v2435, %v2436
      %v2465 = vadd.f32 %v2464, %v2437
      %v2466 = vadd.f32 %v2465, %v2438
      %v2467 = vadd.f32 %v2466, %v2439
      %v2468 = vadd.f32 %v2467, %v2440
      %v2469 = vadd.f32 %v2468, %v2441
      %v2470 = vadd.f32 %v2469, %v2442
      %v2471 = vrot.slane %v2470, 4
      %v2472 = vadd.f32 %v2470, %v2471
      %v2473 = vrot.slane %v2472, 2
      %v2474 = vadd.f32 %v2472, %v2473
      %v2475 = vrot.slane %v2474, 1
      %v2476 = vadd.f32 %v2474, %v2475
      %v2477 = vadd.f32 %v2463, %v2476
      %2478 = vst [vmem:[%s218] sm:$0x1] %v2477
      %v2479 = vld [vmem:[%s218 + $0x1] sm:$0x1]
      %v2480 = vmul.f32 %v2435, %v2435
      %v2481 = vmul.f32 %v2436, %v2436
      %v2482 = vmul.f32 %v2437, %v2437
      %v2483 = vmul.f32 %v2438, %v2438
      %v2484 = vmul.f32 %v2439, %v2439
      %v2485 = vmul.f32 %v2440, %v2440
      %v2486 = vmul.f32 %v2441, %v2441
      %v2487 = vmul.f32 %v2442, %v2442
      %v2488 = vadd.f32 %v2480, %v2481
      %v2489 = vadd.f32 %v2488, %v2482
      %v2490 = vadd.f32 %v2489, %v2483
      %v2491 = vadd.f32 %v2490, %v2484
      %v2492 = vadd.f32 %v2491, %v2485
      %v2493 = vadd.f32 %v2492, %v2486
      %v2494 = vadd.f32 %v2493, %v2487
      %v2495 = vrot.slane %v2494, 4
      %v2496 = vadd.f32 %v2494, %v2495
      %v2497 = vrot.slane %v2496, 2
      %v2498 = vadd.f32 %v2496, %v2497
      %v2499 = vrot.slane %v2498, 1
      %v2500 = vadd.f32 %v2498, %v2499
      %v2501 = vadd.f32 %v2479, %v2500
      %2502 = vst [vmem:[%s218 + $0x1] sm:$0x1] %v2501
      %p2503 = scmp.lt.s32.totalorder %s20, 1
      %s2504 = scalar_select %p2503, %s20, 1
      %p2505 = scmp.lt.s32.totalorder %s19, 0
      %s2506 = scalar_select %p2505, %s19, 0
      %s2507 = smul.addr %s2504, 8
      %s2508 = sadd.s32 %s2506, %s2507
      %s2509 = smul.addr %s2508, 4
      %s2510 = scalar_lea.vmem %s2, %s2509
      %p2511 = scmp.lt.s32.totalorder %s19, 0
      %s2512 = scalar_select %p2511, %s19, 0
      %s2513 = smul.addr %s2512, 2
      %s2514 = scalar_lea.vmem %s3, %s2513
      // Predicated region
      $region37: #{down_forward.3} parent=27 // pred_check
        %p2515 = pneg %p99
      $region38: #{down_forward.3} parent=27 // pred_check_branch
        %2517 = sbr.rel (%p2515) target = $region40
      $region39: #{down_forward.3} parent=27 // pred_region
        _
      $region40: #{down_forward.3} parent=27 // pred_fallthru
        _
      // Predicated region
      $region41: #{down_forward.3} parent=27 // pred_check
        %p2518 = pneg %p125
      $region42: #{down_forward.3} parent=27 // pred_check_branch
        %2520 = sbr.rel (%p2518) target = $region44
      $region43: #{down_forward.3} parent=27 // pred_region
        _
      $region44: #{down_forward.3} parent=27 // pred_fallthru
        _
      // Predicated region
      $region45: #{down_forward.3} parent=27 // pred_check
        %p2521 = pneg %p125
      $region46: #{down_forward.3} parent=27 // pred_check_branch
        %2523 = sbr.rel (%p2521) target = $region48
      $region47: #{down_forward.3} parent=27 // pred_region
        %p2524 = scmp.lt.s32.totalorder %s19, 0
        %s2525 = scalar_select %p2524, %s19, 0
        %s2526 = smul.addr %s2525, 2
        %s2527 = scalar_lea.vmem %s3, %s2526
      $region48: #{down_forward.3} parent=27 // pred_fallthru
        _
    $region28: #{down_forward.3} parent=5 // pred_fallthru
      _
    %p2528 = scmp.le.s32.totalorder 2, %s10
    // Predicated region
    $region49: #{down_forward.3} parent=5 // pred_check
      %p2529 = pneg %p2528
    $region50: #{down_forward.3} parent=5 // pred_check_branch
      %2531 = sbr.rel (%p2529) target = $region52
    $region51: #{down_forward.3} parent=5 // pred_region
      %s2532 = ssub.s32 %s10, 2
      // Predicated region
      $region53: #{down_forward.3} parent=51 // pred_check
        %p2533 = pneg %p105
      $region54: #{down_forward.3} parent=51 // pred_check_branch
        %2535 = sbr.rel (%p2533) target = $region56
      $region55: #{down_forward.3} parent=51 // pred_region
        %p2536 = scmp.lt.s32.totalorder %s22, 1
        %s2537 = scalar_select %p2536, %s22, 1
        %p2538 = scmp.lt.s32.totalorder %s21, 0
        %s2539 = scalar_select %p2538, %s21, 0
        %s2540 = smul.addr %s2537, 8
        %s2541 = sadd.s32 %s2539, %s2540
        %s2542 = smul.addr %s2541, 4
        %s2543 = scalar_lea.vmem %s2, %s2542
      $region56: #{down_forward.3} parent=51 // pred_fallthru
        _
    $region52: #{down_forward.3} parent=5 // pred_fallthru
      _
  $region6: #{down_forward.3} parent=0 // loop_footer
    %s14 = sadd.s32 1, %s10
  $region7: #{down_forward.3} parent=0 // loop_footer_branch
    %9 = sbr.rel target = $region3
  $region8: #{down_forward.3} parent=0 // loop_exit
    _

// kernel: down_forward.4
$region0: #{down_forward.4}
  #allocation0 [shape = 'u32[]', space=smem, size = 0x4, offset = 0x4, fixed_abs, tag = 'smem constant byte address 0x4 - core index']
  #allocation1 [shape = 'u32[144,128]{1,0:T(1,128)}', space=vmem, size = 0x12000, scoped, tag = 'internal scratch']
  #allocation2 [shape = 'bf16[1,10,10,128]{3,2,1,0:T(8,128)(2,1)}', space=vmem, size = 0xa000, scoped, tag = 'scratch operand']
  %s0 = inlined_call_operand.vmem [shape: bf16[2,8,8,128], index: 0, kind: input, shape index: {}]
  %s1 = inlined_call_operand.vmem [shape: f32[1,128], index: 1, kind: input, shape index: {}]
  %s2 = inlined_call_operand.vmem [shape: f32[1,128], index: 2, kind: input, shape index: {}]
  %s3 = inlined_call_operand.vmem [shape: bf16[9,128,128], index: 3, kind: input, shape index: {}]
  %s4 = inlined_call_operand.vmem [shape: bf16[2,8,8,128], index: 4, kind: output, shape index: {0}]
  %s5 = inlined_call_operand.vmem [shape: f32[2,128], index: 5, kind: output, shape index: {1}]
  %6 = xla_tuple %s4, %s5
  %s7 = sld [smem:[#allocation0]]
  $region65: #{down_forward.4} parent=0
    _
  %s9 = ssub.s32 1, %s7
  %s10 = scalar_select 0, %s9, %s7
  loop: start=0, step=1, limit=4
  $region2: #{down_forward.4} parent=0 // loop_pre_header
    _
  $region3: #{down_forward.4} parent=0 // loop_header
    %s12 = sphi 0, %s16
    %p13 = scmp.ge.s32.totalorder %s12, 4
    %s19 = sphi 0, %s31
    %s20 = sphi 0, %s27
    %s21 = sphi 0, %s19
    %s22 = sphi 0, %s20
    %s23 = sphi 0, %s21
    %s24 = sphi 0, %s22
    %s34 = sphi 0, %s36
    %s37 = sphi 0, %s34
    %s38 = sphi 0, %s37
    %s54 = sphi 0, %s38
    %s58 = sphi 0, %s58
    %s60 = sphi 0, %s58
    %s61 = sphi 0, %s60
    %s75 = sphi 0, %s61
    %s79 = sphi 0, %s79
    %s81 = sphi 0, %s79
    %s82 = sphi 0, %s81
    %s96 = sphi 0, %s82
    %s102 = sphi 0, %s104
    %s105 = sphi 0, %s102
    %s106 = sphi 0, %s105
    %s122 = sphi 0, %s106
    %s130 = sphi 0, %s132
    %s133 = sphi 0, %s130
    %s134 = sphi 0, %s133
    %s150 = sphi 0, %s134
    %s156 = sphi 0, %s158
    %s159 = sphi 0, %s156
    %s160 = sphi 0, %s159
    %s176 = sphi 0, %s160
  $region4: #{down_forward.4} parent=0 // loop_header_branch
    %15 = sbr.rel (%p13) target = $region8
  $region5: #{down_forward.4} parent=0 // loop_body
    %s17 = ssub.s32 %s12, 1
    %s18 = ssub.s32 %s12, 2
    %s25 = sadd.s32 1, %s20
    %p26 = scmp.ge.s32.totalorder %s25, 2
    %s27 = scalar_select %p26, 0, %s25
    %s28 = sadd.s32 1, %s19
    %s29 = scalar_select %p26, %s28, %s19
    %p30 = scmp.ge.s32.totalorder %s29, 1
    %s31 = scalar_select %p30, 0, %s29
    %s32 = ssub.s32 %s20, %s27
    %p33 = scmp.eq.s32.totalorder %s32, 0
    %s35 = sadd.s32 %s34, 1
    %s36 = scalar_select %p33, %s34, %s35
    %p39 = pneg %p33
    %p40 = scmp.eq.s32.totalorder %s12, 1
    %p41 = por %p39, %p40
    %p42 = scmp.ne.s32.totalorder %s34, %s37
    %p43 = scmp.eq.s32.totalorder %s12, 0
    %p44 = por %p42, %p43
    %p45 = scmp.ne.s32.totalorder %s34, %s37
    %p46 = scmp.eq.s32.totalorder %s17, 1
    %p47 = por %p45, %p46
    %p48 = scmp.ne.s32.totalorder %s37, %s38
    %p49 = scmp.eq.s32.totalorder %s17, 0
    %p50 = por %p48, %p49
    %p51 = scmp.ne.s32.totalorder %s37, %s38
    %p52 = scmp.eq.s32.totalorder %s18, 1
    %p53 = por %p51, %p52
    %p55 = scmp.ne.s32.totalorder %s38, %s54
    %p56 = scmp.eq.s32.totalorder %s18, 0
    %p57 = por %p55, %p56
    %s59 = sadd.s32 %s58, 1
    %p62 = scmp.eq.s32.totalorder %s12, 1
    %p63 = scmp.ne.s32.totalorder %s58, %s60
    %p64 = scmp.eq.s32.totalorder %s12, 0
    %p65 = por %p63, %p64
    %p66 = scmp.ne.s32.totalorder %s58, %s60
    %p67 = scmp.eq.s32.totalorder %s17, 1
    %p68 = por %p66, %p67
    %p69 = scmp.ne.s32.totalorder %s60, %s61
    %p70 = scmp.eq.s32.totalorder %s17, 0
    %p71 = por %p69, %p70
    %p72 = scmp.ne.s32.totalorder %s60, %s61
    %p73 = scmp.eq.s32.totalorder %s18, 1
    %p74 = por %p72, %p73
    %p76 = scmp.ne.s32.totalorder %s61, %s75
    %p77 = scmp.eq.s32.totalorder %s18, 0
    %p78 = por %p76, %p77
    %s80 = sadd.s32 %s79, 1
    %p83 = scmp.eq.s32.totalorder %s12, 1
    %p84 = scmp.ne.s32.totalorder %s79, %s81
    %p85 = scmp.eq.s32.totalorder %s12, 0
    %p86 = por %p84, %p85
    %p87 = scmp.ne.s32.totalorder %s79, %s81
    %p88 = scmp.eq.s32.totalorder %s17, 1
    %p89 = por %p87, %p88
    %p90 = scmp.ne.s32.totalorder %s81, %s82
    %p91 = scmp.eq.s32.totalorder %s17, 0
    %p92 = por %p90, %p91
    %p93 = scmp.ne.s32.totalorder %s81, %s82
    %p94 = scmp.eq.s32.totalorder %s18, 1
    %p95 = por %p93, %p94
    %p97 = scmp.ne.s32.totalorder %s82, %s96
    %p98 = scmp.eq.s32.totalorder %s18, 0
    %p99 = por %p97, %p98
    %s100 = ssub.s32 %s19, %s31
    %p101 = scmp.eq.s32.totalorder %s100, 0
    %s103 = sadd.s32 %s102, 1
    %s104 = scalar_select %p101, %s102, %s103
    %p107 = pneg %p101
    %p108 = scmp.eq.s32.totalorder %s12, 1
    %p109 = por %p107, %p108
    %p110 = scmp.ne.s32.totalorder %s102, %s105
    %p111 = scmp.eq.s32.totalorder %s12, 0
    %p112 = por %p110, %p111
    %p113 = scmp.ne.s32.totalorder %s102, %s105
    %p114 = scmp.eq.s32.totalorder %s17, 1
    %p115 = por %p113, %p114
    %p116 = scmp.ne.s32.totalorder %s105, %s106
    %p117 = scmp.eq.s32.totalorder %s17, 0
    %p118 = por %p116, %p117
    %p119 = scmp.ne.s32.totalorder %s105, %s106
    %p120 = scmp.eq.s32.totalorder %s18, 1
    %p121 = por %p119, %p120
    %p123 = scmp.ne.s32.totalorder %s106, %s122
    %p124 = scmp.eq.s32.totalorder %s18, 0
    %p125 = por %p123, %p124
    %s126 = ssub.s32 %s20, %s27
    %s127 = ssub.s32 %s19, %s31
    %s128 = sor.u32 %s126, %s127
    %p129 = scmp.eq.s32.totalorder %s128, 0
    %s131 = sadd.s32 %s130, 1
    %s132 = scalar_select %p129, %s130, %s131
    %p135 = pneg %p129
    %p136 = scmp.eq.s32.totalorder %s12, 1
    %p137 = por %p135, %p136
    %p138 = scmp.ne.s32.totalorder %s130, %s133
    %p139 = scmp.eq.s32.totalorder %s12, 0
    %p140 = por %p138, %p139
    %p141 = scmp.ne.s32.totalorder %s130, %s133
    %p142 = scmp.eq.s32.totalorder %s17, 1
    %p143 = por %p141, %p142
    %p144 = scmp.ne.s32.totalorder %s133, %s134
    %p145 = scmp.eq.s32.totalorder %s17, 0
    %p146 = por %p144, %p145
    %p147 = scmp.ne.s32.totalorder %s133, %s134
    %p148 = scmp.eq.s32.totalorder %s18, 1
    %p149 = por %p147, %p148
    %p151 = scmp.ne.s32.totalorder %s134, %s150
    %p152 = scmp.eq.s32.totalorder %s18, 0
    %p153 = por %p151, %p152
    %s154 = ssub.s32 %s19, %s31
    %p155 = scmp.eq.s32.totalorder %s154, 0
    %s157 = sadd.s32 %s156, 1
    %s158 = scalar_select %p155, %s156, %s157
    %p161 = pneg %p155
    %p162 = scmp.eq.s32.totalorder %s12, 1
    %p163 = por %p161, %p162
    %p164 = scmp.ne.s32.totalorder %s156, %s159
    %p165 = scmp.eq.s32.totalorder %s12, 0
    %p166 = por %p164, %p165
    %p167 = scmp.ne.s32.totalorder %s156, %s159
    %p168 = scmp.eq.s32.totalorder %s17, 1
    %p169 = por %p167, %p168
    %p170 = scmp.ne.s32.totalorder %s159, %s160
    %p171 = scmp.eq.s32.totalorder %s17, 0
    %p172 = por %p170, %p171
    %p173 = scmp.ne.s32.totalorder %s159, %s160
    %p174 = scmp.eq.s32.totalorder %s18, 1
    %p175 = por %p173, %p174
    %p177 = scmp.ne.s32.totalorder %s160, %s176
    %p178 = scmp.eq.s32.totalorder %s18, 0
    %p179 = por %p177, %p178
    %p180 = scmp.le.s32.totalorder 1, %s12
    %p181 = scmp.lt.s32.totalorder %s12, 3
    %p182 = pnand %p180, %p181
    %p183 = pneg %p182
    // Predicated region
    $region9: #{down_forward.4} parent=5 // pred_check
      _
    $region10: #{down_forward.4} parent=5 // pred_check_branch
      %185 = sbr.rel (%p182) target = $region12
    $region11: #{down_forward.4} parent=5 // pred_region
      %s186 = ssub.s32 %s12, 1
      // Predicated region
      $region13: #{down_forward.4} parent=11 // pred_check
        %p187 = pneg %p71
      $region14: #{down_forward.4} parent=11 // pred_check_branch
        %189 = sbr.rel (%p187) target = $region16
      $region15: #{down_forward.4} parent=11 // pred_region
        _
      $region16: #{down_forward.4} parent=11 // pred_fallthru
        _
      // Predicated region
      $region17: #{down_forward.4} parent=11 // pred_check
        %p190 = pneg %p92
      $region18: #{down_forward.4} parent=11 // pred_check_branch
        %192 = sbr.rel (%p190) target = $region20
      $region19: #{down_forward.4} parent=11 // pred_region
        _
      $region20: #{down_forward.4} parent=11 // pred_fallthru
        _
      // Predicated region
      $region21: #{down_forward.4} parent=11 // pred_check
        %p193 = pneg %p118
      $region22: #{down_forward.4} parent=11 // pred_check_branch
        %195 = sbr.rel (%p193) target = $region24
      $region23: #{down_forward.4} parent=11 // pred_region
        %p196 = scmp.lt.s32.totalorder %s21, 0
        %s197 = scalar_select %p196, %s21, 0
        %s198 = smul.addr %s197, 4
        %s199 = scalar_lea.vmem %s3, %s198
      $region24: #{down_forward.4} parent=11 // pred_fallthru
        _
    $region12: #{down_forward.4} parent=5 // pred_fallthru
      _
    %p200 = scmp.lt.s32.totalorder %s12, 2
    // Predicated region
    $region25: #{down_forward.4} parent=5 // pred_check
      %p201 = pneg %p200
    $region26: #{down_forward.4} parent=5 // pred_check_branch
      %203 = sbr.rel (%p201) target = $region28
    $region27: #{down_forward.4} parent=5 // pred_region
      // Predicated region
      $region29: #{down_forward.4} parent=27 // pred_check
        %p204 = pneg %p44
      $region30: #{down_forward.4} parent=27 // pred_check_branch
        %206 = sbr.rel (%p204) target = $region32
      $region31: #{down_forward.4} parent=27 // pred_region
        %p207 = scmp.lt.s32.totalorder %s20, 1
        %s208 = scalar_select %p207, %s20, 1
        %s209 = smul.addr %s208, 8
        %s210 = smul.addr %s209, 4
        %s211 = scalar_lea.vmem %s0, %s210
      $region32: #{down_forward.4} parent=27 // pred_fallthru
        _
    $region28: #{down_forward.4} parent=5 // pred_fallthru
      _
    %p212 = scmp.le.s32.totalorder 1, %s12
    %p213 = scmp.lt.s32.totalorder %s12, 3
    %p214 = pnand %p212, %p213
    %p215 = pneg %p214
    // Predicated region
    $region33: #{down_forward.4} parent=5 // pred_check
      _
    $region34: #{down_forward.4} parent=5 // pred_check_branch
      %217 = sbr.rel (%p214) target = $region36
    $region35: #{down_forward.4} parent=5 // pred_region
      %s218 = ssub.s32 %s12, 1
      %p219 = scmp.lt.s32.totalorder %s22, 1
      %s220 = scalar_select %p219, %s22, 1
      %s221 = smul.addr %s220, 8
      %s222 = smul.addr %s221, 4
      %s223 = scalar_lea.vmem %s0, %s222
      %p224 = pneg %p50
      %p225 = pneg %p47
      %p226 = pneg %p71
      %p227 = pneg %p68
      %p228 = pneg %p92
      %p229 = pneg %p89
      %p230 = scmp.lt.s32.totalorder %s21, 0
      %s231 = scalar_select %p230, %s21, 0
      %s232 = smul.addr %s231, 4
      %s233 = scalar_lea.vmem %s3, %s232
      %p234 = pneg %p118
      %p235 = pneg %p115
      %p236 = pneg %p146
      %p237 = pneg %p143
      %p238 = scmp.lt.s32.totalorder %s22, 1
      %s239 = scalar_select %p238, %s22, 1
      %p240 = scmp.lt.s32.totalorder %s21, 0
      %s241 = scalar_select %p240, %s21, 0
      %s242 = smul.addr %s239, 8
      %s243 = sadd.s32 %s241, %s242
      %s244 = smul.addr %s243, 4
      %s245 = scalar_lea.vmem %s4, %s244
      %p246 = pneg %p172
      %p247 = pneg %p169
      %p248 = scmp.lt.s32.totalorder %s21, 0
      %s249 = scalar_select %p248, %s21, 0
      %s250 = smul.addr %s249, 2
      %s251 = scalar_lea.vmem %s5, %s250
      %p252 = scmp.lt.s32.totalorder %s22, 1
      %s253 = scalar_select %p252, %s22, 1
      %s254 = smul.addr %s253, 8
      %s255 = smul.addr %s254, 4
      %s256 = scalar_lea.vmem %s0, %s255
      %p257 = scmp.lt.s32.totalorder %s21, 0
      %s258 = scalar_select %p257, %s21, 0
      %s259 = smul.addr %s258, 4
      %s260 = scalar_lea.vmem %s3, %s259
      %p261 = scmp.lt.s32.totalorder %s22, 1
      %s262 = scalar_select %p261, %s22, 1
      %p263 = scmp.lt.s32.totalorder %s21, 0
      %s264 = scalar_select %p263, %s21, 0
      %s265 = smul.addr %s262, 8
      %s266 = sadd.s32 %s264, %s265
      %s267 = smul.addr %s266, 4
      %s268 = scalar_lea.vmem %s4, %s267
      %p269 = scmp.lt.s32.totalorder %s21, 0
      %s270 = scalar_select %p269, %s21, 0
      %s271 = smul.addr %s270, 2
      %s272 = scalar_lea.vmem %s5, %s271
      %p274 = scmp.eq.s32.totalorder %s22, 0
      // Predicated region
      $region37: #{down_forward.4} parent=35 // pred_check
        %p275 = pneg %p274
      $region38: #{down_forward.4} parent=35 // pred_check_branch
        %277 = sbr.rel (%p275) target = $region40
      $region39: #{down_forward.4} parent=35 // pred_region
        %278 = vst [vmem:[#allocation2] sm:$0xf] 0
        %279 = vst [vmem:[#allocation2 + $0x4] sm:$0x1] 0
        %280 = vst [vmem:[#allocation2 + $0x8] sm:$0xf] 0
        %281 = vst [vmem:[#allocation2 + $0xc] sm:$0x1] 0
        %282 = vst [vmem:[#allocation2 + $0x10] sm:$0xf] 0
        %283 = vst [vmem:[#allocation2 + $0x14] sm:$0x1] 0
        %284 = vst [vmem:[#allocation2 + $0x18] sm:$0xf] 0
        %285 = vst [vmem:[#allocation2 + $0x1c] sm:$0x1] 0
        %286 = vst [vmem:[#allocation2 + $0x20] sm:$0xf] 0
        %287 = vst [vmem:[#allocation2 + $0x24] sm:$0x1] 0
        %288 = vst [vmem:[#allocation2 + $0x28] sm:$0xf] 0
        %289 = vst [vmem:[#allocation2 + $0x2c] sm:$0x1] 0
        %290 = vst [vmem:[#allocation2 + $0x30] sm:$0xf] 0
        %291 = vst [vmem:[#allocation2 + $0x34] sm:$0x1] 0
        %292 = vst [vmem:[#allocation2 + $0x38] sm:$0xf] 0
        %293 = vst [vmem:[#allocation2 + $0x3c] sm:$0x1] 0
        %294 = vst [vmem:[#allocation2 + $0x40] sm:$0xf] 0
        %295 = vst [vmem:[#allocation2 + $0x44] sm:$0x1] 0
        %296 = vst [vmem:[#allocation2 + $0x48] sm:$0xf] 0
        %297 = vst [vmem:[#allocation2 + $0x4c] sm:$0x1] 0
      $region40: #{down_forward.4} parent=35 // pred_fallthru
        _
      %v298 = vld [vmem:[%s256] sm:$0xf]
      %v299 = vld [vmem:[%s256 + $0x4] sm:$0xf]
      %v300 = vld [vmem:[%s256 + $0x8] sm:$0xf]
      %v301 = vld [vmem:[%s256 + $0xc] sm:$0xf]
      %v302 = vld [vmem:[%s256 + $0x10] sm:$0xf]
      %v303 = vld [vmem:[%s256 + $0x14] sm:$0xf]
      %v304 = vld [vmem:[%s256 + $0x18] sm:$0xf]
      %v305 = vld [vmem:[%s256 + $0x1c] sm:$0xf]
      %v306 = vunpack.c.l.bf16 %v298
      %v307 = vunpack.c.l.bf16 %v299
      %v308 = vunpack.c.l.bf16 %v300
      %v309 = vunpack.c.l.bf16 %v301
      %v310 = vunpack.c.l.bf16 %v302
      %v311 = vunpack.c.l.bf16 %v303
      %v312 = vunpack.c.l.bf16 %v304
      %v313 = vunpack.c.l.bf16 %v305
      %v314 = vld [vmem:[%s1] sm:$0x1]
      %v315 = vld [vmem:[%s2] sm:$0x1]
      %v317 = vlaneseq
      %v318 = vshrl.u32 %v317, 7
      %v319 = vsub.s32 0, %v318
      %v320 = vrot.slane %v314, %v319
      %v322 = vmul.f32 %v306, %v320
      %v323 = vmul.f32 %v307, %v320
      %v324 = vmul.f32 %v308, %v320
      %v325 = vmul.f32 %v309, %v320
      %v326 = vmul.f32 %v310, %v320
      %v327 = vmul.f32 %v311, %v320
      %v328 = vmul.f32 %v312, %v320
      %v329 = vmul.f32 %v313, %v320
      %v331 = vlaneseq
      %v332 = vshrl.u32 %v331, 7
      %v333 = vsub.s32 0, %v332
      %v334 = vrot.slane %v315, %v333
      %v336 = vadd.f32 %v322, %v334
      %v337 = vadd.f32 %v323, %v334
      %v338 = vadd.f32 %v324, %v334
      %v339 = vadd.f32 %v325, %v334
      %v340 = vadd.f32 %v326, %v334
      %v341 = vadd.f32 %v327, %v334
      %v342 = vadd.f32 %v328, %v334
      %v343 = vadd.f32 %v329, %v334
      %v344 = vmax.f32 %v336, 0.0
      %v345 = vmax.f32 %v337, 0.0
      %v346 = vmax.f32 %v338, 0.0
      %v347 = vmax.f32 %v339, 0.0
      %v348 = vmax.f32 %v340, 0.0
      %v349 = vmax.f32 %v341, 0.0
      %v350 = vmax.f32 %v342, 0.0
      %v351 = vmax.f32 %v343, 0.0
      %v352 = vpack.c.bf16 %v344, %v344
      %v353 = vpack.c.bf16 %v345, %v345
      %v354 = vpack.c.bf16 %v346, %v346
      %v355 = vpack.c.bf16 %v347, %v347
      %v356 = vpack.c.bf16 %v348, %v348
      %v357 = vpack.c.bf16 %v349, %v349
      %v358 = vpack.c.bf16 %v350, %v350
      %v359 = vpack.c.bf16 %v351, %v351
      %v368 = vunpack.c.l.b16 %v352
      %v369 = vunpack.c.l.b16 %v353
      %v370 = vunpack.c.l.b16 %v354
      %v371 = vunpack.c.l.b16 %v355
      %v372 = vunpack.c.l.b16 %v356
      %v373 = vunpack.c.l.b16 %v357
      %v374 = vunpack.c.l.b16 %v358
      %v375 = vunpack.c.l.b16 %v359
      %v376 = vpack.c.b16 %v368, %v368
      %v377 = vpack.c.b16 %v369, %v369
      %v378 = vpack.c.b16 %v370, %v370
      %v379 = vpack.c.b16 %v371, %v371
      %v380 = vpack.c.b16 %v372, %v372
      %v381 = vpack.c.b16 %v373, %v373
      %v382 = vpack.c.b16 %v374, %v374
      %v383 = vpack.c.b16 %v375, %v375
      %v385 = vshrl.u32 %v376, 16
      %v387 = vrot.slane %v385, 7
      %v388 = vshll.u32 %v376, 16
      %v390 = vor.u32 %v387, %v388
      %v391 = vrot.slane %v387, 4
      %v393 = vshrl.u32 %v377, 16
      %v395 = vrot.slane %v393, 7
      %v396 = vshll.u32 %v377, 16
      %v398 = vor.u32 %v395, %v396
      %v399 = vrot.slane %v395, 4
      %v401 = vshrl.u32 %v378, 16
      %v403 = vrot.slane %v401, 7
      %v404 = vshll.u32 %v378, 16
      %v406 = vor.u32 %v403, %v404
      %v407 = vrot.slane %v403, 4
      %v409 = vshrl.u32 %v379, 16
      %v411 = vrot.slane %v409, 7
      %v412 = vshll.u32 %v379, 16
      %v414 = vor.u32 %v411, %v412
      %v415 = vrot.slane %v411, 4
      %v417 = vshrl.u32 %v380, 16
      %v419 = vrot.slane %v417, 7
      %v420 = vshll.u32 %v380, 16
      %v422 = vor.u32 %v419, %v420
      %v423 = vrot.slane %v419, 4
      %v425 = vshrl.u32 %v381, 16
      %v427 = vrot.slane %v425, 7
      %v428 = vshll.u32 %v381, 16
      %v430 = vor.u32 %v427, %v428
      %v431 = vrot.slane %v427, 4
      %v433 = vshrl.u32 %v382, 16
      %v435 = vrot.slane %v433, 7
      %v436 = vshll.u32 %v382, 16
      %v438 = vor.u32 %v435, %v436
      %v439 = vrot.slane %v435, 4
      %v441 = vshrl.u32 %v383, 16
      %v443 = vrot.slane %v441, 7
      %v444 = vshll.u32 %v383, 16
      %v446 = vor.u32 %v443, %v444
      %v447 = vrot.slane %v443, 4
      %s464 = scalar_lea.vmem [#allocation2], 8
      %vm465 = vcmask 1043456
      %vm466 = vsmask.f32 7938
      %vm467 = vmand %vm465, %vm466
      %v468 = vld [vmem:[%s464] sm:$0xf]
      %v469 = vsel %vm467, %v390, %v468
      %470 = vst [vmem:[%s464] sm:$0xf] %v469
      %vm471 = vcmask 1040384
      %vm472 = vsmask.f32 256
      %vm473 = vmand %vm471, %vm472
      %v474 = vld [vmem:[%s464 + $0x4] sm:$0x1]
      %v475 = vsel %vm473, %v391, %v474
      %476 = vst [vmem:[%s464 + $0x4] sm:$0x1] %v475
      %v477 = vld [vmem:[%s464 + $0x8] sm:$0xf]
      %v478 = vsel %vm467, %v398, %v477
      %479 = vst [vmem:[%s464 + $0x8] sm:$0xf] %v478
      %v480 = vld [vmem:[%s464 + $0xc] sm:$0x1]
      %v481 = vsel %vm473, %v399, %v480
      %482 = vst [vmem:[%s464 + $0xc] sm:$0x1] %v481
      %v483 = vld [vmem:[%s464 + $0x10] sm:$0xf]
      %v484 = vsel %vm467, %v406, %v483
      %485 = vst [vmem:[%s464 + $0x10] sm:$0xf] %v484
      %v486 = vld [vmem:[%s464 + $0x14] sm:$0x1]
      %v487 = vsel %vm473, %v407, %v486
      %488 = vst [vmem:[%s464 + $0x14] sm:$0x1] %v487
      %v489 = vld [vmem:[%s464 + $0x18] sm:$0xf]
      %v490 = vsel %vm467, %v414, %v489
      %491 = vst [vmem:[%s464 + $0x18] sm:$0xf] %v490
      %v492 = vld [vmem:[%s464 + $0x1c] sm:$0x1]
      %v493 = vsel %vm473, %v415, %v492
      %494 = vst [vmem:[%s464 + $0x1c] sm:$0x1] %v493
      %v495 = vld [vmem:[%s464 + $0x20] sm:$0xf]
      %v496 = vsel %vm467, %v422, %v495
      %497 = vst [vmem:[%s464 + $0x20] sm:$0xf] %v496
      %v498 = vld [vmem:[%s464 + $0x24] sm:$0x1]
      %v499 = vsel %vm473, %v423, %v498
      %500 = vst [vmem:[%s464 + $0x24] sm:$0x1] %v499
      %v501 = vld [vmem:[%s464 + $0x28] sm:$0xf]
      %v502 = vsel %vm467, %v430, %v501
      %503 = vst [vmem:[%s464 + $0x28] sm:$0xf] %v502
      %v504 = vld [vmem:[%s464 + $0x2c] sm:$0x1]
      %v505 = vsel %vm473, %v431, %v504
      %506 = vst [vmem:[%s464 + $0x2c] sm:$0x1] %v505
      %v507 = vld [vmem:[%s464 + $0x30] sm:$0xf]
      %v508 = vsel %vm467, %v438, %v507
      %509 = vst [vmem:[%s464 + $0x30] sm:$0xf] %v508
      %v510 = vld [vmem:[%s464 + $0x34] sm:$0x1]
      %v511 = vsel %vm473, %v439, %v510
      %512 = vst [vmem:[%s464 + $0x34] sm:$0x1] %v511
      %v513 = vld [vmem:[%s464 + $0x38] sm:$0xf]
      %v514 = vsel %vm467, %v446, %v513
      %515 = vst [vmem:[%s464 + $0x38] sm:$0xf] %v514
      %v516 = vld [vmem:[%s464 + $0x3c] sm:$0x1]
      %v517 = vsel %vm473, %v447, %v516
      %518 = vst [vmem:[%s464 + $0x3c] sm:$0x1] %v517
      %v519 = vld [vmem:[#allocation2] sm:$0xf]
      %v520 = vld [vmem:[#allocation2 + $0x8] sm:$0xf]
      %v521 = vld [vmem:[#allocation2 + $0x10] sm:$0xf]
      %v522 = vld [vmem:[#allocation2 + $0x18] sm:$0xf]
      %v523 = vld [vmem:[#allocation2 + $0x20] sm:$0xf]
      %v524 = vld [vmem:[#allocation2 + $0x28] sm:$0xf]
      %v525 = vld [vmem:[#allocation2 + $0x30] sm:$0xf]
      %v526 = vld [vmem:[#allocation2 + $0x38] sm:$0xf]
      %v527 = vld [vmem:[%s260] sm:$0xf]
      %v528 = vld [vmem:[%s260 + $0x4] sm:$0xf]
      %v529 = vld [vmem:[%s260 + $0x8] sm:$0xf]
      %v530 = vld [vmem:[%s260 + $0xc] sm:$0xf]
      %v531 = vld [vmem:[%s260 + $0x10] sm:$0xf]
      %v532 = vld [vmem:[%s260 + $0x14] sm:$0xf]
      %v533 = vld [vmem:[%s260 + $0x18] sm:$0xf]
      %v534 = vld [vmem:[%s260 + $0x1c] sm:$0xf]
      %v535 = vld [vmem:[%s260 + $0x20] sm:$0xf]
      %v536 = vld [vmem:[%s260 + $0x24] sm:$0xf]
      %v537 = vld [vmem:[%s260 + $0x28] sm:$0xf]
      %v538 = vld [vmem:[%s260 + $0x2c] sm:$0xf]
      %v539 = vld [vmem:[%s260 + $0x30] sm:$0xf]
      %v540 = vld [vmem:[%s260 + $0x34] sm:$0xf]
      %v541 = vld [vmem:[%s260 + $0x38] sm:$0xf]
      %v542 = vld [vmem:[%s260 + $0x3c] sm:$0xf]
      %v543 = vld [vmem:[#allocation2 + $0x4] sm:$0x1]
      %v544 = vld [vmem:[#allocation2 + $0xc] sm:$0x1]
      %v545 = vld [vmem:[#allocation2 + $0x14] sm:$0x1]
      %v546 = vld [vmem:[#allocation2 + $0x1c] sm:$0x1]
      %v547 = vld [vmem:[#allocation2 + $0x24] sm:$0x1]
      %v548 = vld [vmem:[#allocation2 + $0x2c] sm:$0x1]
      %v549 = vld [vmem:[#allocation2 + $0x34] sm:$0x1]
      %v550 = vld [vmem:[#allocation2 + $0x3c] sm:$0x1]
      %vm551 = vsmask.f32 3328
      %vm552 = vsmask.f32 7440
      %vm553 = vmor %vm551, %vm552
      %v555 = vshrl.u32 %v519, 16
      %v557 = vrot.slane %v555, 4
      %v558 = vshll.u32 %v519, 16
      %v560 = vrot.slane %v558, 5
      %v561 = vor.u32 %v557, %v560
      %v562 = vrot.slane %v561, 4
      %v564 = vshll.u32 %v543, 16
      %v566 = vrot.slane %v564, 5
      %v567 = vsel %vm553, %v562, %v566
      %v569 = vshrl.u32 %v520, 16
      %v571 = vrot.slane %v569, 4
      %v572 = vshll.u32 %v520, 16
      %v574 = vrot.slane %v572, 5
      %v575 = vor.u32 %v571, %v574
      %v576 = vrot.slane %v575, 4
      %v578 = vshll.u32 %v544, 16
      %v580 = vrot.slane %v578, 5
      %v581 = vsel %vm553, %v576, %v580
      %v583 = vshrl.u32 %v521, 16
      %v585 = vrot.slane %v583, 4
      %v586 = vshll.u32 %v521, 16
      %v588 = vrot.slane %v586, 5
      %v589 = vor.u32 %v585, %v588
      %v590 = vrot.slane %v589, 4
      %v592 = vshll.u32 %v545, 16
      %v594 = vrot.slane %v592, 5
      %v595 = vsel %vm553, %v590, %v594
      %v597 = vshrl.u32 %v522, 16
      %v599 = vrot.slane %v597, 4
      %v600 = vshll.u32 %v522, 16
      %v602 = vrot.slane %v600, 5
      %v603 = vor.u32 %v599, %v602
      %v604 = vrot.slane %v603, 4
      %v606 = vshll.u32 %v546, 16
      %v608 = vrot.slane %v606, 5
      %v609 = vsel %vm553, %v604, %v608
      %v611 = vshrl.u32 %v523, 16
      %v613 = vrot.slane %v611, 4
      %v614 = vshll.u32 %v523, 16
      %v616 = vrot.slane %v614, 5
      %v617 = vor.u32 %v613, %v616
      %v618 = vrot.slane %v617, 4
      %v620 = vshll.u32 %v547, 16
      %v622 = vrot.slane %v620, 5
      %v623 = vsel %vm553, %v618, %v622
      %v625 = vshrl.u32 %v524, 16
      %v627 = vrot.slane %v625, 4
      %v628 = vshll.u32 %v524, 16
      %v630 = vrot.slane %v628, 5
      %v631 = vor.u32 %v627, %v630
      %v632 = vrot.slane %v631, 4
      %v634 = vshll.u32 %v548, 16
      %v636 = vrot.slane %v634, 5
      %v637 = vsel %vm553, %v632, %v636
      %v639 = vshrl.u32 %v525, 16
      %v641 = vrot.slane %v639, 4
      %v642 = vshll.u32 %v525, 16
      %v644 = vrot.slane %v642, 5
      %v645 = vor.u32 %v641, %v644
      %v646 = vrot.slane %v645, 4
      %v648 = vshll.u32 %v549, 16
      %v650 = vrot.slane %v648, 5
      %v651 = vsel %vm553, %v646, %v650
      %v653 = vshrl.u32 %v526, 16
      %v655 = vrot.slane %v653, 4
      %v656 = vshll.u32 %v526, 16
      %v658 = vrot.slane %v656, 5
      %v659 = vor.u32 %v655, %v658
      %v660 = vrot.slane %v659, 4
      %v662 = vshll.u32 %v550, 16
      %v664 = vrot.slane %v662, 5
      %v665 = vsel %vm553, %v660, %v664
      %s666 = scalar_lea.vmem %s260, 64
      %v667 = vld [vmem:[%s666] sm:$0xf]
      %v668 = vld [vmem:[%s666 + $0x4] sm:$0xf]
      %v669 = vld [vmem:[%s666 + $0x8] sm:$0xf]
      %v670 = vld [vmem:[%s666 + $0xc] sm:$0xf]
      %v671 = vld [vmem:[%s666 + $0x10] sm:$0xf]
      %v672 = vld [vmem:[%s666 + $0x14] sm:$0xf]
      %v673 = vld [vmem:[%s666 + $0x18] sm:$0xf]
      %v674 = vld [vmem:[%s666 + $0x1c] sm:$0xf]
      %v675 = vld [vmem:[%s666 + $0x20] sm:$0xf]
      %v676 = vld [vmem:[%s666 + $0x24] sm:$0xf]
      %v677 = vld [vmem:[%s666 + $0x28] sm:$0xf]
      %v678 = vld [vmem:[%s666 + $0x2c] sm:$0xf]
      %v679 = vld [vmem:[%s666 + $0x30] sm:$0xf]
      %v680 = vld [vmem:[%s666 + $0x34] sm:$0xf]
      %v681 = vld [vmem:[%s666 + $0x38] sm:$0xf]
      %v682 = vld [vmem:[%s666 + $0x3c] sm:$0xf]
      %v683 = vunpack.c.l.b16 %v567
      %v684 = vunpack.c.l.b16 %v581
      %v685 = vunpack.c.l.b16 %v595
      %v686 = vunpack.c.l.b16 %v609
      %v687 = vunpack.c.l.b16 %v623
      %v688 = vunpack.c.l.b16 %v637
      %v689 = vunpack.c.l.b16 %v651
      %v690 = vunpack.c.l.b16 %v665
      %v691 = vpack.c.b16 %v684, %v683
      %v692 = vpack.c.b16 %v686, %v685
      %v693 = vpack.c.b16 %v688, %v687
      %v694 = vpack.c.b16 %v690, %v689
      %v715 = vunpack.c.l.b16 %v667
      %v716 = vunpack.c.l.b16 %v668
      %v717 = vunpack.c.l.b16 %v669
      %v718 = vunpack.c.l.b16 %v670
      %v719 = vunpack.c.l.b16 %v671
      %v720 = vunpack.c.l.b16 %v672
      %v721 = vunpack.c.l.b16 %v673
      %v722 = vunpack.c.l.b16 %v674
      %v723 = vunpack.c.l.b16 %v675
      %v724 = vunpack.c.l.b16 %v676
      %v725 = vunpack.c.l.b16 %v677
      %v726 = vunpack.c.l.b16 %v678
      %v727 = vunpack.c.l.b16 %v679
      %v728 = vunpack.c.l.b16 %v680
      %v729 = vunpack.c.l.b16 %v681
      %v730 = vunpack.c.l.b16 %v682
      %v731 = vpack.c.b16 %v716, %v715
      %v732 = vpack.c.b16 %v718, %v717
      %v733 = vpack.c.b16 %v720, %v719
      %v734 = vpack.c.b16 %v722, %v721
      %v735 = vpack.c.b16 %v724, %v723
      %v736 = vpack.c.b16 %v726, %v725
      %v737 = vpack.c.b16 %v728, %v727
      %v738 = vpack.c.b16 %v730, %v729
      %747 = vmatprep.subr.bf16.mxu0 0
      %748 = vmatpush1.bf16.msra.mxu0 %v731
      %749 = vmatprep.subr.bf16.mxu0 0
      %750 = vmatpush1.bf16.msra.mxu0 %v732
      %751 = vmatprep.subr.bf16.mxu0 0
      %752 = vmatpush1.bf16.msra.mxu0 %v733
      %753 = vmatprep.subr.bf16.mxu0 0
      %754 = vmatpush1.bf16.msra.mxu0 %v734
      %755 = vmatprep.subr.bf16.mxu0 0
      %756 = vmatpush1.bf16.msra.mxu0 %v735
      %757 = vmatprep.subr.bf16.mxu0 0
      %758 = vmatpush1.bf16.msra.mxu0 %v736
      %759 = vmatprep.subr.bf16.mxu0 0
      %760 = vmatpush1.bf16.msra.mxu0 %v737
      %761 = vmatprep.subr.bf16.mxu0 0
      %762 = vmatpush1.bf16.msra.mxu0 %v738
      %763 = vmatprep.subr.bf16.mxu0 0
      %764 = vmatpush1.bf16.msra.mxu0 0
      %765 = vmatprep.subr.bf16.mxu0 0
      %766 = vmatpush1.bf16.msra.mxu0 0
      %767 = vmatprep.subr.bf16.mxu0 0
      %768 = vmatpush1.bf16.msra.mxu0 0
      %769 = vmatprep.subr.bf16.mxu0 0
      %770 = vmatpush1.bf16.msra.mxu0 0
      %771 = vmatprep.subr.bf16.mxu0 0
      %772 = vmatpush1.bf16.msra.mxu0 0
      %773 = vmatprep.subr.bf16.mxu0 0
      %774 = vmatpush1.bf16.msra.mxu0 0
      %775 = vmatprep.subr.bf16.mxu0 0
      %776 = vmatpush1.bf16.msra.mxu0 0
      %777 = vmatprep.subr.bf16.mxu0 0
      %778 = vmatpush1.bf16.msra.mxu0 0
      %779 = vmatprep.mubr.bf16.mxu0 0
      %780 = vmatmul.mubr.bf16.gmra.mrb[0].mxu0 %v691
      %v781 = vpop.f32.mrb[0].mxu0
      %v782 = vadd.f32 0.0, %v781
      %v783 = vpop.f32.mrb[0].mxu0
      %v784 = vpop.f32.mrb[0].mxu0
      %v785 = vadd.f32 0.0, %v784
      %v786 = vpop.f32.mrb[0].mxu0
      %787 = vmatprep.mubr.bf16.mxu0 0
      %788 = vmatmul.mubr.bf16.gmra.mrb[0].mxu0 %v692
      %v789 = vpop.f32.mrb[0].mxu0
      %v790 = vadd.f32 0.0, %v789
      %v791 = vpop.f32.mrb[0].mxu0
      %v792 = vpop.f32.mrb[0].mxu0
      %v793 = vadd.f32 0.0, %v792
      %v794 = vpop.f32.mrb[0].mxu0
      %795 = vmatprep.mubr.bf16.mxu0 0
      %796 = vmatmul.mubr.bf16.gmra.mrb[0].mxu0 %v693
      %v797 = vpop.f32.mrb[0].mxu0
      %v798 = vadd.f32 0.0, %v797
      %v799 = vpop.f32.mrb[0].mxu0
      %v800 = vpop.f32.mrb[0].mxu0
      %v801 = vadd.f32 0.0, %v800
      %v802 = vpop.f32.mrb[0].mxu0
      %803 = vmatprep.mubr.bf16.mxu0 0
      %804 = vmatmul.mubr.bf16.gmra.mrb[0].mxu0 %v694
      %v805 = vpop.f32.mrb[0].mxu0
      %v806 = vadd.f32 0.0, %v805
      %v807 = vpop.f32.mrb[0].mxu0
      %v808 = vpop.f32.mrb[0].mxu0
      %v809 = vadd.f32 0.0, %v808
      %v810 = vpop.f32.mrb[0].mxu0
      %811 = vdwg.mxu0
      %v820 = vunpack.c.l.b16 %v519
      %v821 = vunpack.c.l.b16 %v520
      %v822 = vunpack.c.l.b16 %v521
      %v823 = vunpack.c.l.b16 %v522
      %v824 = vunpack.c.l.b16 %v523
      %v825 = vunpack.c.l.b16 %v524
      %v826 = vunpack.c.l.b16 %v525
      %v827 = vunpack.c.l.b16 %v526
      %v828 = vpack.c.b16 %v821, %v820
      %v829 = vpack.c.b16 %v823, %v822
      %v830 = vpack.c.b16 %v825, %v824
      %v831 = vpack.c.b16 %v827, %v826
      %v852 = vunpack.c.l.b16 %v527
      %v853 = vunpack.c.l.b16 %v528
      %v854 = vunpack.c.l.b16 %v529
      %v855 = vunpack.c.l.b16 %v530
      %v856 = vunpack.c.l.b16 %v531
      %v857 = vunpack.c.l.b16 %v532
      %v858 = vunpack.c.l.b16 %v533
      %v859 = vunpack.c.l.b16 %v534
      %v860 = vunpack.c.l.b16 %v535
      %v861 = vunpack.c.l.b16 %v536
      %v862 = vunpack.c.l.b16 %v537
      %v863 = vunpack.c.l.b16 %v538
      %v864 = vunpack.c.l.b16 %v539
      %v865 = vunpack.c.l.b16 %v540
      %v866 = vunpack.c.l.b16 %v541
      %v867 = vunpack.c.l.b16 %v542
      %v868 = vpack.c.b16 %v853, %v852
      %v869 = vpack.c.b16 %v855, %v854
      %v870 = vpack.c.b16 %v857, %v856
      %v871 = vpack.c.b16 %v859, %v858
      %v872 = vpack.c.b16 %v861, %v860
      %v873 = vpack.c.b16 %v863, %v862
      %v874 = vpack.c.b16 %v865, %v864
      %v875 = vpack.c.b16 %v867, %v866
      %884 = vmatprep.subr.bf16.mxu0 0
      %885 = vmatpush1.bf16.msra.mxu0 %v868
      %886 = vmatprep.subr.bf16.mxu0 0
      %887 = vmatpush1.bf16.msra.mxu0 %v869
      %888 = vmatprep.subr.bf16.mxu0 0
      %889 = vmatpush1.bf16.msra.mxu0 %v870
      %890 = vmatprep.subr.bf16.mxu0 0
      %891 = vmatpush1.bf16.msra.mxu0 %v871
      %892 = vmatprep.subr.bf16.mxu0 0
      %893 = vmatpush1.bf16.msra.mxu0 %v872
      %894 = vmatprep.subr.bf16.mxu0 0
      %895 = vmatpush1.bf16.msra.mxu0 %v873
      %896 = vmatprep.subr.bf16.mxu0 0
      %897 = vmatpush1.bf16.msra.mxu0 %v874
      %898 = vmatprep.subr.bf16.mxu0 0
      %899 = vmatpush1.bf16.msra.mxu0 %v875
      %900 = vmatprep.subr.bf16.mxu0 0
      %901 = vmatpush1.bf16.msra.mxu0 0
      %902 = vmatprep.subr.bf16.mxu0 0
      %903 = vmatpush1.bf16.msra.mxu0 0
      %904 = vmatprep.subr.bf16.mxu0 0
      %905 = vmatpush1.bf16.msra.mxu0 0
      %906 = vmatprep.subr.bf16.mxu0 0
      %907 = vmatpush1.bf16.msra.mxu0 0
      %908 = vmatprep.subr.bf16.mxu0 0
      %909 = vmatpush1.bf16.msra.mxu0 0
      %910 = vmatprep.subr.bf16.mxu0 0
      %911 = vmatpush1.bf16.msra.mxu0 0
      %912 = vmatprep.subr.bf16.mxu0 0
      %913 = vmatpush1.bf16.msra.mxu0 0
      %914 = vmatprep.subr.bf16.mxu0 0
      %915 = vmatpush1.bf16.msra.mxu0 0
      %916 = vmatprep.mubr.bf16.mxu0 0
      %917 = vmatmul.mubr.bf16.gmra.mrb[0].mxu0 %v828
      %v918 = vpop.f32.mrb[0].mxu0
      %v919 = vadd.f32 %v782, %v918
      %v920 = vpop.f32.mrb[0].mxu0
      %v921 = vpop.f32.mrb[0].mxu0
      %v922 = vadd.f32 %v785, %v921
      %v923 = vpop.f32.mrb[0].mxu0
      %924 = vmatprep.mubr.bf16.mxu0 0
      %925 = vmatmul.mubr.bf16.gmra.mrb[0].mxu0 %v829
      %v926 = vpop.f32.mrb[0].mxu0
      %v927 = vadd.f32 %v790, %v926
      %v928 = vpop.f32.mrb[0].mxu0
      %v929 = vpop.f32.mrb[0].mxu0
      %v930 = vadd.f32 %v793, %v929
      %v931 = vpop.f32.mrb[0].mxu0
      %932 = vmatprep.mubr.bf16.mxu0 0
      %933 = vmatmul.mubr.bf16.gmra.mrb[0].mxu0 %v830
      %v934 = vpop.f32.mrb[0].mxu0
      %v935 = vadd.f32 %v798, %v934
      %v936 = vpop.f32.mrb[0].mxu0
      %v937 = vpop.f32.mrb[0].mxu0
      %v938 = vadd.f32 %v801, %v937
      %v939 = vpop.f32.mrb[0].mxu0
      %940 = vmatprep.mubr.bf16.mxu0 0
      %941 = vmatmul.mubr.bf16.gmra.mrb[0].mxu0 %v831
      %v942 = vpop.f32.mrb[0].mxu0
      %v943 = vadd.f32 %v806, %v942
      %v944 = vpop.f32.mrb[0].mxu0
      %v945 = vpop.f32.mrb[0].mxu0
      %v946 = vadd.f32 %v809, %v945
      %v947 = vpop.f32.mrb[0].mxu0
      %948 = vdwg.mxu0
      %v949 = vld [vmem:[#allocation2] sm:$0xe]
      %v950 = vld [vmem:[#allocation2 + $0x8] sm:$0xe]
      %v951 = vld [vmem:[#allocation2 + $0x10] sm:$0xe]
      %v952 = vld [vmem:[#allocation2 + $0x18] sm:$0xe]
      %v953 = vld [vmem:[#allocation2 + $0x20] sm:$0xe]
      %v954 = vld [vmem:[#allocation2 + $0x28] sm:$0xe]
      %v955 = vld [vmem:[#allocation2 + $0x30] sm:$0xe]
      %v956 = vld [vmem:[#allocation2 + $0x38] sm:$0xe]
      %vm973 = vcmask 1042432
      %vm974 = vcmask 1046532
      %vm975 = vmor %vm973, %vm974
      %v976 = vrot.slane %v949, 5
      %v977 = vrot.slane %v976, 4
      %v978 = vrot.slane %v543, 5
      %v979 = vsel %vm975, %v977, %v978
      %v980 = vrot.slane %v950, 5
      %v981 = vrot.slane %v980, 4
      %v982 = vrot.slane %v544, 5
      %v983 = vsel %vm975, %v981, %v982
      %v984 = vrot.slane %v951, 5
      %v985 = vrot.slane %v984, 4
      %v986 = vrot.slane %v545, 5
      %v987 = vsel %vm975, %v985, %v986
      %v988 = vrot.slane %v952, 5
      %v989 = vrot.slane %v988, 4
      %v990 = vrot.slane %v546, 5
      %v991 = vsel %vm975, %v989, %v990
      %v992 = vrot.slane %v953, 5
      %v993 = vrot.slane %v992, 4
      %v994 = vrot.slane %v547, 5
      %v995 = vsel %vm975, %v993, %v994
      %v996 = vrot.slane %v954, 5
      %v997 = vrot.slane %v996, 4
      %v998 = vrot.slane %v548, 5
      %v999 = vsel %vm975, %v997, %v998
      %v1000 = vrot.slane %v955, 5
      %v1001 = vrot.slane %v1000, 4
      %v1002 = vrot.slane %v549, 5
      %v1003 = vsel %vm975, %v1001, %v1002
      %v1004 = vrot.slane %v956, 5
      %v1005 = vrot.slane %v1004, 4
      %v1006 = vrot.slane %v550, 5
      %v1007 = vsel %vm975, %v1005, %v1006
      %s1008 = scalar_lea.vmem %s260, 128
      %v1009 = vld [vmem:[%s1008] sm:$0xf]
      %v1010 = vld [vmem:[%s1008 + $0x4] sm:$0xf]
      %v1011 = vld [vmem:[%s1008 + $0x8] sm:$0xf]
      %v1012 = vld [vmem:[%s1008 + $0xc] sm:$0xf]
      %v1013 = vld [vmem:[%s1008 + $0x10] sm:$0xf]
      %v1014 = vld [vmem:[%s1008 + $0x14] sm:$0xf]
      %v1015 = vld [vmem:[%s1008 + $0x18] sm:$0xf]
      %v1016 = vld [vmem:[%s1008 + $0x1c] sm:$0xf]
      %v1017 = vld [vmem:[%s1008 + $0x20] sm:$0xf]
      %v1018 = vld [vmem:[%s1008 + $0x24] sm:$0xf]
      %v1019 = vld [vmem:[%s1008 + $0x28] sm:$0xf]
      %v1020 = vld [vmem:[%s1008 + $0x2c] sm:$0xf]
      %v1021 = vld [vmem:[%s1008 + $0x30] sm:$0xf]
      %v1022 = vld [vmem:[%s1008 + $0x34] sm:$0xf]
      %v1023 = vld [vmem:[%s1008 + $0x38] sm:$0xf]
      %v1024 = vld [vmem:[%s1008 + $0x3c] sm:$0xf]
      %v1025 = vunpack.c.l.b16 %v979
      %v1026 = vunpack.c.l.b16 %v983
      %v1027 = vunpack.c.l.b16 %v987
      %v1028 = vunpack.c.l.b16 %v991
      %v1029 = vunpack.c.l.b16 %v995
      %v1030 = vunpack.c.l.b16 %v999
      %v1031 = vunpack.c.l.b16 %v1003
      %v1032 = vunpack.c.l.b16 %v1007
      %v1033 = vpack.c.b16 %v1026, %v1025
      %v1034 = vpack.c.b16 %v1028, %v1027
      %v1035 = vpack.c.b16 %v1030, %v1029
      %v1036 = vpack.c.b16 %v1032, %v1031
      %v1057 = vunpack.c.l.b16 %v1009
      %v1058 = vunpack.c.l.b16 %v1010
      %v1059 = vunpack.c.l.b16 %v1011
      %v1060 = vunpack.c.l.b16 %v1012
      %v1061 = vunpack.c.l.b16 %v1013
      %v1062 = vunpack.c.l.b16 %v1014
      %v1063 = vunpack.c.l.b16 %v1015
      %v1064 = vunpack.c.l.b16 %v1016
      %v1065 = vunpack.c.l.b16 %v1017
      %v1066 = vunpack.c.l.b16 %v1018
      %v1067 = vunpack.c.l.b16 %v1019
      %v1068 = vunpack.c.l.b16 %v1020
      %v1069 = vunpack.c.l.b16 %v1021
      %v1070 = vunpack.c.l.b16 %v1022
      %v1071 = vunpack.c.l.b16 %v1023
      %v1072 = vunpack.c.l.b16 %v1024
      %v1073 = vpack.c.b16 %v1058, %v1057
      %v1074 = vpack.c.b16 %v1060, %v1059
      %v1075 = vpack.c.b16 %v1062, %v1061
      %v1076 = vpack.c.b16 %v1064, %v1063
      %v1077 = vpack.c.b16 %v1066, %v1065
      %v1078 = vpack.c.b16 %v1068, %v1067
      %v1079 = vpack.c.b16 %v1070, %v1069
      %v1080 = vpack.c.b16 %v1072, %v1071
      %1089 = vmatprep.subr.bf16.mxu0 0
      %1090 = vmatpush1.bf16.msra.mxu0 %v1073
      %1091 = vmatprep.subr.bf16.mxu0 0
      %1092 = vmatpush1.bf16.msra.mxu0 %v1074
      %1093 = vmatprep.subr.bf16.mxu0 0
      %1094 = vmatpush1.bf16.msra.mxu0 %v1075
      %1095 = vmatprep.subr.bf16.mxu0 0
      %1096 = vmatpush1.bf16.msra.mxu0 %v1076
      %1097 = vmatprep.subr.bf16.mxu0 0
      %1098 = vmatpush1.bf16.msra.mxu0 %v1077
      %1099 = vmatprep.subr.bf16.mxu0 0
      %1100 = vmatpush1.bf16.msra.mxu0 %v1078
      %1101 = vmatprep.subr.bf16.mxu0 0
      %1102 = vmatpush1.bf16.msra.mxu0 %v1079
      %1103 = vmatprep.subr.bf16.mxu0 0
      %1104 = vmatpush1.bf16.msra.mxu0 %v1080
      %1105 = vmatprep.subr.bf16.mxu0 0
      %1106 = vmatpush1.bf16.msra.mxu0 0
      %1107 = vmatprep.subr.bf16.mxu0 0
      %1108 = vmatpush1.bf16.msra.mxu0 0
      %1109 = vmatprep.subr.bf16.mxu0 0
      %1110 = vmatpush1.bf16.msra.mxu0 0
      %1111 = vmatprep.subr.bf16.mxu0 0
      %1112 = vmatpush1.bf16.msra.mxu0 0
      %1113 = vmatprep.subr.bf16.mxu0 0
      %1114 = vmatpush1.bf16.msra.mxu0 0
      %1115 = vmatprep.subr.bf16.mxu0 0
      %1116 = vmatpush1.bf16.msra.mxu0 0
      %1117 = vmatprep.subr.bf16.mxu0 0
      %1118 = vmatpush1.bf16.msra.mxu0 0
      %1119 = vmatprep.subr.bf16.mxu0 0
      %1120 = vmatpush1.bf16.msra.mxu0 0
      %1121 = vmatprep.mubr.bf16.mxu0 0
      %1122 = vmatmul.mubr.bf16.gmra.mrb[0].mxu0 %v1033
      %v1123 = vpop.f32.mrb[0].mxu0
      %v1124 = vadd.f32 0.0, %v1123
      %v1125 = vpop.f32.mrb[0].mxu0
      %v1126 = vpop.f32.mrb[0].mxu0
      %v1127 = vadd.f32 0.0, %v1126
      %v1128 = vpop.f32.mrb[0].mxu0
      %1129 = vmatprep.mubr.bf16.mxu0 0
      %1130 = vmatmul.mubr.bf16.gmra.mrb[0].mxu0 %v1034
      %v1131 = vpop.f32.mrb[0].mxu0
      %v1132 = vadd.f32 0.0, %v1131
      %v1133 = vpop.f32.mrb[0].mxu0
      %v1134 = vpop.f32.mrb[0].mxu0
      %v1135 = vadd.f32 0.0, %v1134
      %v1136 = vpop.f32.mrb[0].mxu0
      %1137 = vmatprep.mubr.bf16.mxu0 0
      %1138 = vmatmul.mubr.bf16.gmra.mrb[0].mxu0 %v1035
      %v1139 = vpop.f32.mrb[0].mxu0
      %v1140 = vadd.f32 0.0, %v1139
      %v1141 = vpop.f32.mrb[0].mxu0
      %v1142 = vpop.f32.mrb[0].mxu0
      %v1143 = vadd.f32 0.0, %v1142
      %v1144 = vpop.f32.mrb[0].mxu0
      %1145 = vmatprep.mubr.bf16.mxu0 0
      %1146 = vmatmul.mubr.bf16.gmra.mrb[0].mxu0 %v1036
      %v1147 = vpop.f32.mrb[0].mxu0
      %v1148 = vadd.f32 0.0, %v1147
      %v1149 = vpop.f32.mrb[0].mxu0
      %v1150 = vpop.f32.mrb[0].mxu0
      %v1151 = vadd.f32 0.0, %v1150
      %v1152 = vpop.f32.mrb[0].mxu0
      %1153 = vdwg.mxu0
      %v1154 = vadd.f32 %v919, %v1124
      %v1155 = vadd.f32 %v922, %v1127
      %v1156 = vadd.f32 %v927, %v1132
      %v1157 = vadd.f32 %v930, %v1135
      %v1158 = vadd.f32 %v935, %v1140
      %v1159 = vadd.f32 %v938, %v1143
      %v1160 = vadd.f32 %v943, %v1148
      %v1161 = vadd.f32 %v946, %v1151
      %v1162 = vld [vmem:[%s464] sm:$0xf]
      %v1163 = vld [vmem:[%s464 + $0x8] sm:$0xf]
      %v1164 = vld [vmem:[%s464 + $0x10] sm:$0xf]
      %v1165 = vld [vmem:[%s464 + $0x18] sm:$0xf]
      %v1166 = vld [vmem:[%s464 + $0x20] sm:$0xf]
      %v1167 = vld [vmem:[%s464 + $0x28] sm:$0xf]
      %v1168 = vld [vmem:[%s464 + $0x30] sm:$0xf]
      %v1169 = vld [vmem:[%s464 + $0x38] sm:$0xf]
      %s1170 = scalar_lea.vmem %s260, 192
      %v1171 = vld [vmem:[%s1170] sm:$0xf]
      %v1172 = vld [vmem:[%s1170 + $0x4] sm:$0xf]
      %v1173 = vld [vmem:[%s1170 + $0x8] sm:$0xf]
      %v1174 = vld [vmem:[%s1170 + $0xc] sm:$0xf]
      %v1175 = vld [vmem:[%s1170 + $0x10] sm:$0xf]
      %v1176 = vld [vmem:[%s1170 + $0x14] sm:$0xf]
      %v1177 = vld [vmem:[%s1170 + $0x18] sm:$0xf]
      %v1178 = vld [vmem:[%s1170 + $0x1c] sm:$0xf]
      %v1179 = vld [vmem:[%s1170 + $0x20] sm:$0xf]
      %v1180 = vld [vmem:[%s1170 + $0x24] sm:$0xf]
      %v1181 = vld [vmem:[%s1170 + $0x28] sm:$0xf]
      %v1182 = vld [vmem:[%s1170 + $0x2c] sm:$0xf]
      %v1183 = vld [vmem:[%s1170 + $0x30] sm:$0xf]
      %v1184 = vld [vmem:[%s1170 + $0x34] sm:$0xf]
      %v1185 = vld [vmem:[%s1170 + $0x38] sm:$0xf]
      %v1186 = vld [vmem:[%s1170 + $0x3c] sm:$0xf]
      %v1195 = vunpack.c.l.b16 %v1162
      %v1196 = vunpack.c.l.b16 %v1163
      %v1197 = vunpack.c.l.b16 %v1164
      %v1198 = vunpack.c.l.b16 %v1165
      %v1199 = vunpack.c.l.b16 %v1166
      %v1200 = vunpack.c.l.b16 %v1167
      %v1201 = vunpack.c.l.b16 %v1168
      %v1202 = vunpack.c.l.b16 %v1169
      %v1203 = vpack.c.b16 %v1196, %v1195
      %v1204 = vpack.c.b16 %v1198, %v1197
      %v1205 = vpack.c.b16 %v1200, %v1199
      %v1206 = vpack.c.b16 %v1202, %v1201
      %v1227 = vunpack.c.l.b16 %v1171
      %v1228 = vunpack.c.l.b16 %v1172
      %v1229 = vunpack.c.l.b16 %v1173
      %v1230 = vunpack.c.l.b16 %v1174
      %v1231 = vunpack.c.l.b16 %v1175
      %v1232 = vunpack.c.l.b16 %v1176
      %v1233 = vunpack.c.l.b16 %v1177
      %v1234 = vunpack.c.l.b16 %v1178
      %v1235 = vunpack.c.l.b16 %v1179
      %v1236 = vunpack.c.l.b16 %v1180
      %v1237 = vunpack.c.l.b16 %v1181
      %v1238 = vunpack.c.l.b16 %v1182
      %v1239 = vunpack.c.l.b16 %v1183
      %v1240 = vunpack.c.l.b16 %v1184
      %v1241 = vunpack.c.l.b16 %v1185
      %v1242 = vunpack.c.l.b16 %v1186
      %v1243 = vpack.c.b16 %v1228, %v1227
      %v1244 = vpack.c.b16 %v1230, %v1229
      %v1245 = vpack.c.b16 %v1232, %v1231
      %v1246 = vpack.c.b16 %v1234, %v1233
      %v1247 = vpack.c.b16 %v1236, %v1235
      %v1248 = vpack.c.b16 %v1238, %v1237
      %v1249 = vpack.c.b16 %v1240, %v1239
      %v1250 = vpack.c.b16 %v1242, %v1241
      %1259 = vmatprep.subr.bf16.mxu0 0
      %1260 = vmatpush1.bf16.msra.mxu0 %v1243
      %1261 = vmatprep.subr.bf16.mxu0 0
      %1262 = vmatpush1.bf16.msra.mxu0 %v1244
      %1263 = vmatprep.subr.bf16.mxu0 0
      %1264 = vmatpush1.bf16.msra.mxu0 %v1245
      %1265 = vmatprep.subr.bf16.mxu0 0
      %1266 = vmatpush1.bf16.msra.mxu0 %v1246
      %1267 = vmatprep.subr.bf16.mxu0 0
      %1268 = vmatpush1.bf16.msra.mxu0 %v1247
      %1269 = vmatprep.subr.bf16.mxu0 0
      %1270 = vmatpush1.bf16.msra.mxu0 %v1248
      %1271 = vmatprep.subr.bf16.mxu0 0
      %1272 = vmatpush1.bf16.msra.mxu0 %v1249
      %1273 = vmatprep.subr.bf16.mxu0 0
      %1274 = vmatpush1.bf16.msra.mxu0 %v1250
      %1275 = vmatprep.subr.bf16.mxu0 0
      %1276 = vmatpush1.bf16.msra.mxu0 0
      %1277 = vmatprep.subr.bf16.mxu0 0
      %1278 = vmatpush1.bf16.msra.mxu0 0
      %1279 = vmatprep.subr.bf16.mxu0 0
      %1280 = vmatpush1.bf16.msra.mxu0 0
      %1281 = vmatprep.subr.bf16.mxu0 0
      %1282 = vmatpush1.bf16.msra.mxu0 0
      %1283 = vmatprep.subr.bf16.mxu0 0
      %1284 = vmatpush1.bf16.msra.mxu0 0
      %1285 = vmatprep.subr.bf16.mxu0 0
      %1286 = vmatpush1.bf16.msra.mxu0 0
      %1287 = vmatprep.subr.bf16.mxu0 0
      %1288 = vmatpush1.bf16.msra.mxu0 0
      %1289 = vmatprep.subr.bf16.mxu0 0
      %1290 = vmatpush1.bf16.msra.mxu0 0
      %1291 = vmatprep.mubr.bf16.mxu0 0
      %1292 = vmatmul.mubr.bf16.gmra.mrb[0].mxu0 %v1203
      %v1293 = vpop.f32.mrb[0].mxu0
      %v1294 = vadd.f32 0.0, %v1293
      %v1295 = vpop.f32.mrb[0].mxu0
      %v1296 = vpop.f32.mrb[0].mxu0
      %v1297 = vadd.f32 0.0, %v1296
      %v1298 = vpop.f32.mrb[0].mxu0
      %1299 = vmatprep.mubr.bf16.mxu0 0
      %1300 = vmatmul.mubr.bf16.gmra.mrb[0].mxu0 %v1204
      %v1301 = vpop.f32.mrb[0].mxu0
      %v1302 = vadd.f32 0.0, %v1301
      %v1303 = vpop.f32.mrb[0].mxu0
      %v1304 = vpop.f32.mrb[0].mxu0
      %v1305 = vadd.f32 0.0, %v1304
      %v1306 = vpop.f32.mrb[0].mxu0
      %1307 = vmatprep.mubr.bf16.mxu0 0
      %1308 = vmatmul.mubr.bf16.gmra.mrb[0].mxu0 %v1205
      %v1309 = vpop.f32.mrb[0].mxu0
      %v1310 = vadd.f32 0.0, %v1309
      %v1311 = vpop.f32.mrb[0].mxu0
      %v1312 = vpop.f32.mrb[0].mxu0
      %v1313 = vadd.f32 0.0, %v1312
      %v1314 = vpop.f32.mrb[0].mxu0
      %1315 = vmatprep.mubr.bf16.mxu0 0
      %1316 = vmatmul.mubr.bf16.gmra.mrb[0].mxu0 %v1206
      %v1317 = vpop.f32.mrb[0].mxu0
      %v1318 = vadd.f32 0.0, %v1317
      %v1319 = vpop.f32.mrb[0].mxu0
      %v1320 = vpop.f32.mrb[0].mxu0
      %v1321 = vadd.f32 0.0, %v1320
      %v1322 = vpop.f32.mrb[0].mxu0
      %1323 = vdwg.mxu0
      %v1324 = vadd.f32 %v1154, %v1294
      %v1325 = vadd.f32 %v1155, %v1297
      %v1326 = vadd.f32 %v1156, %v1302
      %v1327 = vadd.f32 %v1157, %v1305
      %v1328 = vadd.f32 %v1158, %v1310
      %v1329 = vadd.f32 %v1159, %v1313
      %v1330 = vadd.f32 %v1160, %v1318
      %v1331 = vadd.f32 %v1161, %v1321
      %v1332 = vld [vmem:[%s464] sm:$0xf]
      %v1333 = vld [vmem:[%s464 + $0x4] sm:$0x1]
      %v1334 = vld [vmem:[%s464 + $0x8] sm:$0xf]
      %v1335 = vld [vmem:[%s464 + $0xc] sm:$0x1]
      %v1336 = vld [vmem:[%s464 + $0x10] sm:$0xf]
      %v1337 = vld [vmem:[%s464 + $0x14] sm:$0x1]
      %v1338 = vld [vmem:[%s464 + $0x18] sm:$0xf]
      %v1339 = vld [vmem:[%s464 + $0x1c] sm:$0x1]
      %v1340 = vld [vmem:[%s464 + $0x20] sm:$0xf]
      %v1341 = vld [vmem:[%s464 + $0x24] sm:$0x1]
      %v1342 = vld [vmem:[%s464 + $0x28] sm:$0xf]
      %v1343 = vld [vmem:[%s464 + $0x2c] sm:$0x1]
      %v1344 = vld [vmem:[%s464 + $0x30] sm:$0xf]
      %v1345 = vld [vmem:[%s464 + $0x34] sm:$0x1]
      %v1346 = vld [vmem:[%s464 + $0x38] sm:$0xf]
      %v1347 = vld [vmem:[%s464 + $0x3c] sm:$0x1]
      %v1349 = vshrl.u32 %v1332, 16
      %v1351 = vrot.slane %v1349, 4
      %v1352 = vshll.u32 %v1332, 16
      %v1354 = vrot.slane %v1352, 5
      %v1355 = vor.u32 %v1351, %v1354
      %v1356 = vrot.slane %v1355, 4
      %v1358 = vshll.u32 %v1333, 16
      %v1360 = vrot.slane %v1358, 5
      %v1361 = vsel %vm553, %v1356, %v1360
      %v1363 = vshrl.u32 %v1334, 16
      %v1365 = vrot.slane %v1363, 4
      %v1366 = vshll.u32 %v1334, 16
      %v1368 = vrot.slane %v1366, 5
      %v1369 = vor.u32 %v1365, %v1368
      %v1370 = vrot.slane %v1369, 4
      %v1372 = vshll.u32 %v1335, 16
      %v1374 = vrot.slane %v1372, 5
      %v1375 = vsel %vm553, %v1370, %v1374
      %v1377 = vshrl.u32 %v1336, 16
      %v1379 = vrot.slane %v1377, 4
      %v1380 = vshll.u32 %v1336, 16
      %v1382 = vrot.slane %v1380, 5
      %v1383 = vor.u32 %v1379, %v1382
      %v1384 = vrot.slane %v1383, 4
      %v1386 = vshll.u32 %v1337, 16
      %v1388 = vrot.slane %v1386, 5
      %v1389 = vsel %vm553, %v1384, %v1388
      %v1391 = vshrl.u32 %v1338, 16
      %v1393 = vrot.slane %v1391, 4
      %v1394 = vshll.u32 %v1338, 16
      %v1396 = vrot.slane %v1394, 5
      %v1397 = vor.u32 %v1393, %v1396
      %v1398 = vrot.slane %v1397, 4
      %v1400 = vshll.u32 %v1339, 16
      %v1402 = vrot.slane %v1400, 5
      %v1403 = vsel %vm553, %v1398, %v1402
      %v1405 = vshrl.u32 %v1340, 16
      %v1407 = vrot.slane %v1405, 4
      %v1408 = vshll.u32 %v1340, 16
      %v1410 = vrot.slane %v1408, 5
      %v1411 = vor.u32 %v1407, %v1410
      %v1412 = vrot.slane %v1411, 4
      %v1414 = vshll.u32 %v1341, 16
      %v1416 = vrot.slane %v1414, 5
      %v1417 = vsel %vm553, %v1412, %v1416
      %v1419 = vshrl.u32 %v1342, 16
      %v1421 = vrot.slane %v1419, 4
      %v1422 = vshll.u32 %v1342, 16
      %v1424 = vrot.slane %v1422, 5
      %v1425 = vor.u32 %v1421, %v1424
      %v1426 = vrot.slane %v1425, 4
      %v1428 = vshll.u32 %v1343, 16
      %v1430 = vrot.slane %v1428, 5
      %v1431 = vsel %vm553, %v1426, %v1430
      %v1433 = vshrl.u32 %v1344, 16
      %v1435 = vrot.slane %v1433, 4
      %v1436 = vshll.u32 %v1344, 16
      %v1438 = vrot.slane %v1436, 5
      %v1439 = vor.u32 %v1435, %v1438
      %v1440 = vrot.slane %v1439, 4
      %v1442 = vshll.u32 %v1345, 16
      %v1444 = vrot.slane %v1442, 5
      %v1445 = vsel %vm553, %v1440, %v1444
      %v1447 = vshrl.u32 %v1346, 16
      %v1449 = vrot.slane %v1447, 4
      %v1450 = vshll.u32 %v1346, 16
      %v1452 = vrot.slane %v1450, 5
      %v1453 = vor.u32 %v1449, %v1452
      %v1454 = vrot.slane %v1453, 4
      %v1456 = vshll.u32 %v1347, 16
      %v1458 = vrot.slane %v1456, 5
      %v1459 = vsel %vm553, %v1454, %v1458
      %s1460 = scalar_lea.vmem %s260, 256
      %v1461 = vld [vmem:[%s1460] sm:$0xf]
      %v1462 = vld [vmem:[%s1460 + $0x4] sm:$0xf]
      %v1463 = vld [vmem:[%s1460 + $0x8] sm:$0xf]
      %v1464 = vld [vmem:[%s1460 + $0xc] sm:$0xf]
      %v1465 = vld [vmem:[%s1460 + $0x10] sm:$0xf]
      %v1466 = vld [vmem:[%s1460 + $0x14] sm:$0xf]
      %v1467 = vld [vmem:[%s1460 + $0x18] sm:$0xf]
      %v1468 = vld [vmem:[%s1460 + $0x1c] sm:$0xf]
      %v1469 = vld [vmem:[%s1460 + $0x20] sm:$0xf]
      %v1470 = vld [vmem:[%s1460 + $0x24] sm:$0xf]
      %v1471 = vld [vmem:[%s1460 + $0x28] sm:$0xf]
      %v1472 = vld [vmem:[%s1460 + $0x2c] sm:$0xf]
      %v1473 = vld [vmem:[%s1460 + $0x30] sm:$0xf]
      %v1474 = vld [vmem:[%s1460 + $0x34] sm:$0xf]
      %v1475 = vld [vmem:[%s1460 + $0x38] sm:$0xf]
      %v1476 = vld [vmem:[%s1460 + $0x3c] sm:$0xf]
      %v1477 = vunpack.c.l.b16 %v1361
      %v1478 = vunpack.c.l.b16 %v1375
      %v1479 = vunpack.c.l.b16 %v1389
      %v1480 = vunpack.c.l.b16 %v1403
      %v1481 = vunpack.c.l.b16 %v1417
      %v1482 = vunpack.c.l.b16 %v1431
      %v1483 = vunpack.c.l.b16 %v1445
      %v1484 = vunpack.c.l.b16 %v1459
      %v1485 = vpack.c.b16 %v1478, %v1477
      %v1486 = vpack.c.b16 %v1480, %v1479
      %v1487 = vpack.c.b16 %v1482, %v1481
      %v1488 = vpack.c.b16 %v1484, %v1483
      %v1509 = vunpack.c.l.b16 %v1461
      %v1510 = vunpack.c.l.b16 %v1462
      %v1511 = vunpack.c.l.b16 %v1463
      %v1512 = vunpack.c.l.b16 %v1464
      %v1513 = vunpack.c.l.b16 %v1465
      %v1514 = vunpack.c.l.b16 %v1466
      %v1515 = vunpack.c.l.b16 %v1467
      %v1516 = vunpack.c.l.b16 %v1468
      %v1517 = vunpack.c.l.b16 %v1469
      %v1518 = vunpack.c.l.b16 %v1470
      %v1519 = vunpack.c.l.b16 %v1471
      %v1520 = vunpack.c.l.b16 %v1472
      %v1521 = vunpack.c.l.b16 %v1473
      %v1522 = vunpack.c.l.b16 %v1474
      %v1523 = vunpack.c.l.b16 %v1475
      %v1524 = vunpack.c.l.b16 %v1476
      %v1525 = vpack.c.b16 %v1510, %v1509
      %v1526 = vpack.c.b16 %v1512, %v1511
      %v1527 = vpack.c.b16 %v1514, %v1513
      %v1528 = vpack.c.b16 %v1516, %v1515
      %v1529 = vpack.c.b16 %v1518, %v1517
      %v1530 = vpack.c.b16 %v1520, %v1519
      %v1531 = vpack.c.b16 %v1522, %v1521
      %v1532 = vpack.c.b16 %v1524, %v1523
      %1541 = vmatprep.subr.bf16.mxu0 0
      %1542 = vmatpush1.bf16.msra.mxu0 %v1525
      %1543 = vmatprep.subr.bf16.mxu0 0
      %1544 = vmatpush1.bf16.msra.mxu0 %v1526
      %1545 = vmatprep.subr.bf16.mxu0 0
      %1546 = vmatpush1.bf16.msra.mxu0 %v1527
      %1547 = vmatprep.subr.bf16.mxu0 0
      %1548 = vmatpush1.bf16.msra.mxu0 %v1528
      %1549 = vmatprep.subr.bf16.mxu0 0
      %1550 = vmatpush1.bf16.msra.mxu0 %v1529
      %1551 = vmatprep.subr.bf16.mxu0 0
      %1552 = vmatpush1.bf16.msra.mxu0 %v1530
      %1553 = vmatprep.subr.bf16.mxu0 0
      %1554 = vmatpush1.bf16.msra.mxu0 %v1531
      %1555 = vmatprep.subr.bf16.mxu0 0
      %1556 = vmatpush1.bf16.msra.mxu0 %v1532
      %1557 = vmatprep.subr.bf16.mxu0 0
      %1558 = vmatpush1.bf16.msra.mxu0 0
      %1559 = vmatprep.subr.bf16.mxu0 0
      %1560 = vmatpush1.bf16.msra.mxu0 0
      %1561 = vmatprep.subr.bf16.mxu0 0
      %1562 = vmatpush1.bf16.msra.mxu0 0
      %1563 = vmatprep.subr.bf16.mxu0 0
      %1564 = vmatpush1.bf16.msra.mxu0 0
      %1565 = vmatprep.subr.bf16.mxu0 0
      %1566 = vmatpush1.bf16.msra.mxu0 0
      %1567 = vmatprep.subr.bf16.mxu0 0
      %1568 = vmatpush1.bf16.msra.mxu0 0
      %1569 = vmatprep.subr.bf16.mxu0 0
      %1570 = vmatpush1.bf16.msra.mxu0 0
      %1571 = vmatprep.subr.bf16.mxu0 0
      %1572 = vmatpush1.bf16.msra.mxu0 0
      %1573 = vmatprep.mubr.bf16.mxu0 0
      %1574 = vmatmul.mubr.bf16.gmra.mrb[0].mxu0 %v1485
      %v1575 = vpop.f32.mrb[0].mxu0
      %v1576 = vadd.f32 0.0, %v1575
      %v1577 = vpop.f32.mrb[0].mxu0
      %v1578 = vpop.f32.mrb[0].mxu0
      %v1579 = vadd.f32 0.0, %v1578
      %v1580 = vpop.f32.mrb[0].mxu0
      %1581 = vmatprep.mubr.bf16.mxu0 0
      %1582 = vmatmul.mubr.bf16.gmra.mrb[0].mxu0 %v1486
      %v1583 = vpop.f32.mrb[0].mxu0
      %v1584 = vadd.f32 0.0, %v1583
      %v1585 = vpop.f32.mrb[0].mxu0
      %v1586 = vpop.f32.mrb[0].mxu0
      %v1587 = vadd.f32 0.0, %v1586
      %v1588 = vpop.f32.mrb[0].mxu0
      %1589 = vmatprep.mubr.bf16.mxu0 0
      %1590 = vmatmul.mubr.bf16.gmra.mrb[0].mxu0 %v1487
      %v1591 = vpop.f32.mrb[0].mxu0
      %v1592 = vadd.f32 0.0, %v1591
      %v1593 = vpop.f32.mrb[0].mxu0
      %v1594 = vpop.f32.mrb[0].mxu0
      %v1595 = vadd.f32 0.0, %v1594
      %v1596 = vpop.f32.mrb[0].mxu0
      %1597 = vmatprep.mubr.bf16.mxu0 0
      %1598 = vmatmul.mubr.bf16.gmra.mrb[0].mxu0 %v1488
      %v1599 = vpop.f32.mrb[0].mxu0
      %v1600 = vadd.f32 0.0, %v1599
      %v1601 = vpop.f32.mrb[0].mxu0
      %v1602 = vpop.f32.mrb[0].mxu0
      %v1603 = vadd.f32 0.0, %v1602
      %v1604 = vpop.f32.mrb[0].mxu0
      %1605 = vdwg.mxu0
      %v1606 = vadd.f32 %v1324, %v1576
      %v1607 = vadd.f32 %v1325, %v1579
      %v1608 = vadd.f32 %v1326, %v1584
      %v1609 = vadd.f32 %v1327, %v1587
      %v1610 = vadd.f32 %v1328, %v1592
      %v1611 = vadd.f32 %v1329, %v1595
      %v1612 = vadd.f32 %v1330, %v1600
      %v1613 = vadd.f32 %v1331, %v1603
      %v1614 = vld [vmem:[%s464] sm:$0xe]
      %v1615 = vld [vmem:[%s464 + $0x8] sm:$0xe]
      %v1616 = vld [vmem:[%s464 + $0x10] sm:$0xe]
      %v1617 = vld [vmem:[%s464 + $0x18] sm:$0xe]
      %v1618 = vld [vmem:[%s464 + $0x20] sm:$0xe]
      %v1619 = vld [vmem:[%s464 + $0x28] sm:$0xe]
      %v1620 = vld [vmem:[%s464 + $0x30] sm:$0xe]
      %v1621 = vld [vmem:[%s464 + $0x38] sm:$0xe]
      %v1638 = vrot.slane %v1614, 5
      %v1639 = vrot.slane %v1638, 4
      %v1640 = vrot.slane %v1333, 5
      %v1641 = vsel %vm975, %v1639, %v1640
      %v1642 = vrot.slane %v1615, 5
      %v1643 = vrot.slane %v1642, 4
      %v1644 = vrot.slane %v1335, 5
      %v1645 = vsel %vm975, %v1643, %v1644
      %v1646 = vrot.slane %v1616, 5
      %v1647 = vrot.slane %v1646, 4
      %v1648 = vrot.slane %v1337, 5
      %v1649 = vsel %vm975, %v1647, %v1648
      %v1650 = vrot.slane %v1617, 5
      %v1651 = vrot.slane %v1650, 4
      %v1652 = vrot.slane %v1339, 5
      %v1653 = vsel %vm975, %v1651, %v1652
      %v1654 = vrot.slane %v1618, 5
      %v1655 = vrot.slane %v1654, 4
      %v1656 = vrot.slane %v1341, 5
      %v1657 = vsel %vm975, %v1655, %v1656
      %v1658 = vrot.slane %v1619, 5
      %v1659 = vrot.slane %v1658, 4
      %v1660 = vrot.slane %v1343, 5
      %v1661 = vsel %vm975, %v1659, %v1660
      %v1662 = vrot.slane %v1620, 5
      %v1663 = vrot.slane %v1662, 4
      %v1664 = vrot.slane %v1345, 5
      %v1665 = vsel %vm975, %v1663, %v1664
      %v1666 = vrot.slane %v1621, 5
      %v1667 = vrot.slane %v1666, 4
      %v1668 = vrot.slane %v1347, 5
      %v1669 = vsel %vm975, %v1667, %v1668
      %s1670 = scalar_lea.vmem %s260, 320
      %v1671 = vld [vmem:[%s1670] sm:$0xf]
      %v1672 = vld [vmem:[%s1670 + $0x4] sm:$0xf]
      %v1673 = vld [vmem:[%s1670 + $0x8] sm:$0xf]
      %v1674 = vld [vmem:[%s1670 + $0xc] sm:$0xf]
      %v1675 = vld [vmem:[%s1670 + $0x10] sm:$0xf]
      %v1676 = vld [vmem:[%s1670 + $0x14] sm:$0xf]
      %v1677 = vld [vmem:[%s1670 + $0x18] sm:$0xf]
      %v1678 = vld [vmem:[%s1670 + $0x1c] sm:$0xf]
      %v1679 = vld [vmem:[%s1670 + $0x20] sm:$0xf]
      %v1680 = vld [vmem:[%s1670 + $0x24] sm:$0xf]
      %v1681 = vld [vmem:[%s1670 + $0x28] sm:$0xf]
      %v1682 = vld [vmem:[%s1670 + $0x2c] sm:$0xf]
      %v1683 = vld [vmem:[%s1670 + $0x30] sm:$0xf]
      %v1684 = vld [vmem:[%s1670 + $0x34] sm:$0xf]
      %v1685 = vld [vmem:[%s1670 + $0x38] sm:$0xf]
      %v1686 = vld [vmem:[%s1670 + $0x3c] sm:$0xf]
      %v1687 = vunpack.c.l.b16 %v1641
      %v1688 = vunpack.c.l.b16 %v1645
      %v1689 = vunpack.c.l.b16 %v1649
      %v1690 = vunpack.c.l.b16 %v1653
      %v1691 = vunpack.c.l.b16 %v1657
      %v1692 = vunpack.c.l.b16 %v1661
      %v1693 = vunpack.c.l.b16 %v1665
      %v1694 = vunpack.c.l.b16 %v1669
      %v1695 = vpack.c.b16 %v1688, %v1687
      %v1696 = vpack.c.b16 %v1690, %v1689
      %v1697 = vpack.c.b16 %v1692, %v1691
      %v1698 = vpack.c.b16 %v1694, %v1693
      %v1719 = vunpack.c.l.b16 %v1671
      %v1720 = vunpack.c.l.b16 %v1672
      %v1721 = vunpack.c.l.b16 %v1673
      %v1722 = vunpack.c.l.b16 %v1674
      %v1723 = vunpack.c.l.b16 %v1675
      %v1724 = vunpack.c.l.b16 %v1676
      %v1725 = vunpack.c.l.b16 %v1677
      %v1726 = vunpack.c.l.b16 %v1678
      %v1727 = vunpack.c.l.b16 %v1679
      %v1728 = vunpack.c.l.b16 %v1680
      %v1729 = vunpack.c.l.b16 %v1681
      %v1730 = vunpack.c.l.b16 %v1682
      %v1731 = vunpack.c.l.b16 %v1683
      %v1732 = vunpack.c.l.b16 %v1684
      %v1733 = vunpack.c.l.b16 %v1685
      %v1734 = vunpack.c.l.b16 %v1686
      %v1735 = vpack.c.b16 %v1720, %v1719
      %v1736 = vpack.c.b16 %v1722, %v1721
      %v1737 = vpack.c.b16 %v1724, %v1723
      %v1738 = vpack.c.b16 %v1726, %v1725
      %v1739 = vpack.c.b16 %v1728, %v1727
      %v1740 = vpack.c.b16 %v1730, %v1729
      %v1741 = vpack.c.b16 %v1732, %v1731
      %v1742 = vpack.c.b16 %v1734, %v1733
      %1751 = vmatprep.subr.bf16.mxu0 0
      %1752 = vmatpush1.bf16.msra.mxu0 %v1735
      %1753 = vmatprep.subr.bf16.mxu0 0
      %1754 = vmatpush1.bf16.msra.mxu0 %v1736
      %1755 = vmatprep.subr.bf16.mxu0 0
      %1756 = vmatpush1.bf16.msra.mxu0 %v1737
      %1757 = vmatprep.subr.bf16.mxu0 0
      %1758 = vmatpush1.bf16.msra.mxu0 %v1738
      %1759 = vmatprep.subr.bf16.mxu0 0
      %1760 = vmatpush1.bf16.msra.mxu0 %v1739
      %1761 = vmatprep.subr.bf16.mxu0 0
      %1762 = vmatpush1.bf16.msra.mxu0 %v1740
      %1763 = vmatprep.subr.bf16.mxu0 0
      %1764 = vmatpush1.bf16.msra.mxu0 %v1741
      %1765 = vmatprep.subr.bf16.mxu0 0
      %1766 = vmatpush1.bf16.msra.mxu0 %v1742
      %1767 = vmatprep.subr.bf16.mxu0 0
      %1768 = vmatpush1.bf16.msra.mxu0 0
      %1769 = vmatprep.subr.bf16.mxu0 0
      %1770 = vmatpush1.bf16.msra.mxu0 0
      %1771 = vmatprep.subr.bf16.mxu0 0
      %1772 = vmatpush1.bf16.msra.mxu0 0
      %1773 = vmatprep.subr.bf16.mxu0 0
      %1774 = vmatpush1.bf16.msra.mxu0 0
      %1775 = vmatprep.subr.bf16.mxu0 0
      %1776 = vmatpush1.bf16.msra.mxu0 0
      %1777 = vmatprep.subr.bf16.mxu0 0
      %1778 = vmatpush1.bf16.msra.mxu0 0
      %1779 = vmatprep.subr.bf16.mxu0 0
      %1780 = vmatpush1.bf16.msra.mxu0 0
      %1781 = vmatprep.subr.bf16.mxu0 0
      %1782 = vmatpush1.bf16.msra.mxu0 0
      %1783 = vmatprep.mubr.bf16.mxu0 0
      %1784 = vmatmul.mubr.bf16.gmra.mrb[0].mxu0 %v1695
      %v1785 = vpop.f32.mrb[0].mxu0
      %v1786 = vadd.f32 0.0, %v1785
      %v1787 = vpop.f32.mrb[0].mxu0
      %v1788 = vpop.f32.mrb[0].mxu0
      %v1789 = vadd.f32 0.0, %v1788
      %v1790 = vpop.f32.mrb[0].mxu0
      %1791 = vmatprep.mubr.bf16.mxu0 0
      %1792 = vmatmul.mubr.bf16.gmra.mrb[0].mxu0 %v1696
      %v1793 = vpop.f32.mrb[0].mxu0
      %v1794 = vadd.f32 0.0, %v1793
      %v1795 = vpop.f32.mrb[0].mxu0
      %v1796 = vpop.f32.mrb[0].mxu0
      %v1797 = vadd.f32 0.0, %v1796
      %v1798 = vpop.f32.mrb[0].mxu0
      %1799 = vmatprep.mubr.bf16.mxu0 0
      %1800 = vmatmul.mubr.bf16.gmra.mrb[0].mxu0 %v1697
      %v1801 = vpop.f32.mrb[0].mxu0
      %v1802 = vadd.f32 0.0, %v1801
      %v1803 = vpop.f32.mrb[0].mxu0
      %v1804 = vpop.f32.mrb[0].mxu0
      %v1805 = vadd.f32 0.0, %v1804
      %v1806 = vpop.f32.mrb[0].mxu0
      %1807 = vmatprep.mubr.bf16.mxu0 0
      %1808 = vmatmul.mubr.bf16.gmra.mrb[0].mxu0 %v1698
      %v1809 = vpop.f32.mrb[0].mxu0
      %v1810 = vadd.f32 0.0, %v1809
      %v1811 = vpop.f32.mrb[0].mxu0
      %v1812 = vpop.f32.mrb[0].mxu0
      %v1813 = vadd.f32 0.0, %v1812
      %v1814 = vpop.f32.mrb[0].mxu0
      %1815 = vdwg.mxu0
      %v1816 = vadd.f32 %v1606, %v1786
      %v1817 = vadd.f32 %v1607, %v1789
      %v1818 = vadd.f32 %v1608, %v1794
      %v1819 = vadd.f32 %v1609, %v1797
      %v1820 = vadd.f32 %v1610, %v1802
      %v1821 = vadd.f32 %v1611, %v1805
      %v1822 = vadd.f32 %v1612, %v1810
      %v1823 = vadd.f32 %v1613, %v1813
      %s1824 = scalar_lea.vmem [#allocation2], 16
      %v1825 = vld [vmem:[%s1824] sm:$0xf]
      %v1826 = vld [vmem:[%s1824 + $0x8] sm:$0xf]
      %v1827 = vld [vmem:[%s1824 + $0x10] sm:$0xf]
      %v1828 = vld [vmem:[%s1824 + $0x18] sm:$0xf]
      %v1829 = vld [vmem:[%s1824 + $0x20] sm:$0xf]
      %v1830 = vld [vmem:[%s1824 + $0x28] sm:$0xf]
      %v1831 = vld [vmem:[%s1824 + $0x30] sm:$0xf]
      %v1832 = vld [vmem:[%s1824 + $0x38] sm:$0xf]
      %s1833 = scalar_lea.vmem %s260, 384
      %v1834 = vld [vmem:[%s1833] sm:$0xf]
      %v1835 = vld [vmem:[%s1833 + $0x4] sm:$0xf]
      %v1836 = vld [vmem:[%s1833 + $0x8] sm:$0xf]
      %v1837 = vld [vmem:[%s1833 + $0xc] sm:$0xf]
      %v1838 = vld [vmem:[%s1833 + $0x10] sm:$0xf]
      %v1839 = vld [vmem:[%s1833 + $0x14] sm:$0xf]
      %v1840 = vld [vmem:[%s1833 + $0x18] sm:$0xf]
      %v1841 = vld [vmem:[%s1833 + $0x1c] sm:$0xf]
      %v1842 = vld [vmem:[%s1833 + $0x20] sm:$0xf]
      %v1843 = vld [vmem:[%s1833 + $0x24] sm:$0xf]
      %v1844 = vld [vmem:[%s1833 + $0x28] sm:$0xf]
      %v1845 = vld [vmem:[%s1833 + $0x2c] sm:$0xf]
      %v1846 = vld [vmem:[%s1833 + $0x30] sm:$0xf]
      %v1847 = vld [vmem:[%s1833 + $0x34] sm:$0xf]
      %v1848 = vld [vmem:[%s1833 + $0x38] sm:$0xf]
      %v1849 = vld [vmem:[%s1833 + $0x3c] sm:$0xf]
      %v1858 = vunpack.c.l.b16 %v1825
      %v1859 = vunpack.c.l.b16 %v1826
      %v1860 = vunpack.c.l.b16 %v1827
      %v1861 = vunpack.c.l.b16 %v1828
      %v1862 = vunpack.c.l.b16 %v1829
      %v1863 = vunpack.c.l.b16 %v1830
      %v1864 = vunpack.c.l.b16 %v1831
      %v1865 = vunpack.c.l.b16 %v1832
      %v1866 = vpack.c.b16 %v1859, %v1858
      %v1867 = vpack.c.b16 %v1861, %v1860
      %v1868 = vpack.c.b16 %v1863, %v1862
      %v1869 = vpack.c.b16 %v1865, %v1864
      %v1890 = vunpack.c.l.b16 %v1834
      %v1891 = vunpack.c.l.b16 %v1835
      %v1892 = vunpack.c.l.b16 %v1836
      %v1893 = vunpack.c.l.b16 %v1837
      %v1894 = vunpack.c.l.b16 %v1838
      %v1895 = vunpack.c.l.b16 %v1839
      %v1896 = vunpack.c.l.b16 %v1840
      %v1897 = vunpack.c.l.b16 %v1841
      %v1898 = vunpack.c.l.b16 %v1842
      %v1899 = vunpack.c.l.b16 %v1843
      %v1900 = vunpack.c.l.b16 %v1844
      %v1901 = vunpack.c.l.b16 %v1845
      %v1902 = vunpack.c.l.b16 %v1846
      %v1903 = vunpack.c.l.b16 %v1847
      %v1904 = vunpack.c.l.b16 %v1848
      %v1905 = vunpack.c.l.b16 %v1849
      %v1906 = vpack.c.b16 %v1891, %v1890
      %v1907 = vpack.c.b16 %v1893, %v1892
      %v1908 = vpack.c.b16 %v1895, %v1894
      %v1909 = vpack.c.b16 %v1897, %v1896
      %v1910 = vpack.c.b16 %v1899, %v1898
      %v1911 = vpack.c.b16 %v1901, %v1900
      %v1912 = vpack.c.b16 %v1903, %v1902
      %v1913 = vpack.c.b16 %v1905, %v1904
      %1922 = vmatprep.subr.bf16.mxu0 0
      %1923 = vmatpush1.bf16.msra.mxu0 %v1906
      %1924 = vmatprep.subr.bf16.mxu0 0
      %1925 = vmatpush1.bf16.msra.mxu0 %v1907
      %1926 = vmatprep.subr.bf16.mxu0 0
      %1927 = vmatpush1.bf16.msra.mxu0 %v1908
      %1928 = vmatprep.subr.bf16.mxu0 0
      %1929 = vmatpush1.bf16.msra.mxu0 %v1909
      %1930 = vmatprep.subr.bf16.mxu0 0
      %1931 = vmatpush1.bf16.msra.mxu0 %v1910
      %1932 = vmatprep.subr.bf16.mxu0 0
      %1933 = vmatpush1.bf16.msra.mxu0 %v1911
      %1934 = vmatprep.subr.bf16.mxu0 0
      %1935 = vmatpush1.bf16.msra.mxu0 %v1912
      %1936 = vmatprep.subr.bf16.mxu0 0
      %1937 = vmatpush1.bf16.msra.mxu0 %v1913
      %1938 = vmatprep.subr.bf16.mxu0 0
      %1939 = vmatpush1.bf16.msra.mxu0 0
      %1940 = vmatprep.subr.bf16.mxu0 0
      %1941 = vmatpush1.bf16.msra.mxu0 0
      %1942 = vmatprep.subr.bf16.mxu0 0
      %1943 = vmatpush1.bf16.msra.mxu0 0
      %1944 = vmatprep.subr.bf16.mxu0 0
      %1945 = vmatpush1.bf16.msra.mxu0 0
      %1946 = vmatprep.subr.bf16.mxu0 0
      %1947 = vmatpush1.bf16.msra.mxu0 0
      %1948 = vmatprep.subr.bf16.mxu0 0
      %1949 = vmatpush1.bf16.msra.mxu0 0
      %1950 = vmatprep.subr.bf16.mxu0 0
      %1951 = vmatpush1.bf16.msra.mxu0 0
      %1952 = vmatprep.subr.bf16.mxu0 0
      %1953 = vmatpush1.bf16.msra.mxu0 0
      %1954 = vmatprep.mubr.bf16.mxu0 0
      %1955 = vmatmul.mubr.bf16.gmra.mrb[0].mxu0 %v1866
      %v1956 = vpop.f32.mrb[0].mxu0
      %v1957 = vadd.f32 0.0, %v1956
      %v1958 = vpop.f32.mrb[0].mxu0
      %v1959 = vpop.f32.mrb[0].mxu0
      %v1960 = vadd.f32 0.0, %v1959
      %v1961 = vpop.f32.mrb[0].mxu0
      %1962 = vmatprep.mubr.bf16.mxu0 0
      %1963 = vmatmul.mubr.bf16.gmra.mrb[0].mxu0 %v1867
      %v1964 = vpop.f32.mrb[0].mxu0
      %v1965 = vadd.f32 0.0, %v1964
      %v1966 = vpop.f32.mrb[0].mxu0
      %v1967 = vpop.f32.mrb[0].mxu0
      %v1968 = vadd.f32 0.0, %v1967
      %v1969 = vpop.f32.mrb[0].mxu0
      %1970 = vmatprep.mubr.bf16.mxu0 0
      %1971 = vmatmul.mubr.bf16.gmra.mrb[0].mxu0 %v1868
      %v1972 = vpop.f32.mrb[0].mxu0
      %v1973 = vadd.f32 0.0, %v1972
      %v1974 = vpop.f32.mrb[0].mxu0
      %v1975 = vpop.f32.mrb[0].mxu0
      %v1976 = vadd.f32 0.0, %v1975
      %v1977 = vpop.f32.mrb[0].mxu0
      %1978 = vmatprep.mubr.bf16.mxu0 0
      %1979 = vmatmul.mubr.bf16.gmra.mrb[0].mxu0 %v1869
      %v1980 = vpop.f32.mrb[0].mxu0
      %v1981 = vadd.f32 0.0, %v1980
      %v1982 = vpop.f32.mrb[0].mxu0
      %v1983 = vpop.f32.mrb[0].mxu0
      %v1984 = vadd.f32 0.0, %v1983
      %v1985 = vpop.f32.mrb[0].mxu0
      %1986 = vdwg.mxu0
      %v1987 = vadd.f32 %v1816, %v1957
      %v1988 = vadd.f32 %v1817, %v1960
      %v1989 = vadd.f32 %v1818, %v1965
      %v1990 = vadd.f32 %v1819, %v1968
      %v1991 = vadd.f32 %v1820, %v1973
      %v1992 = vadd.f32 %v1821, %v1976
      %v1993 = vadd.f32 %v1822, %v1981
      %v1994 = vadd.f32 %v1823, %v1984
      %v1995 = vld [vmem:[%s1824] sm:$0xf]
      %v1996 = vld [vmem:[%s1824 + $0x4] sm:$0x1]
      %v1997 = vld [vmem:[%s1824 + $0x8] sm:$0xf]
      %v1998 = vld [vmem:[%s1824 + $0xc] sm:$0x1]
      %v1999 = vld [vmem:[%s1824 + $0x10] sm:$0xf]
      %v2000 = vld [vmem:[%s1824 + $0x14] sm:$0x1]
      %v2001 = vld [vmem:[%s1824 + $0x18] sm:$0xf]
      %v2002 = vld [vmem:[%s1824 + $0x1c] sm:$0x1]
      %v2003 = vld [vmem:[%s1824 + $0x20] sm:$0xf]
      %v2004 = vld [vmem:[%s1824 + $0x24] sm:$0x1]
      %v2005 = vld [vmem:[%s1824 + $0x28] sm:$0xf]
      %v2006 = vld [vmem:[%s1824 + $0x2c] sm:$0x1]
      %v2007 = vld [vmem:[%s1824 + $0x30] sm:$0xf]
      %v2008 = vld [vmem:[%s1824 + $0x34] sm:$0x1]
      %v2009 = vld [vmem:[%s1824 + $0x38] sm:$0xf]
      %v2010 = vld [vmem:[%s1824 + $0x3c] sm:$0x1]
      %v2012 = vshrl.u32 %v1995, 16
      %v2014 = vrot.slane %v2012, 4
      %v2015 = vshll.u32 %v1995, 16
      %v2017 = vrot.slane %v2015, 5
      %v2018 = vor.u32 %v2014, %v2017
      %v2019 = vrot.slane %v2018, 4
      %v2021 = vshll.u32 %v1996, 16
      %v2023 = vrot.slane %v2021, 5
      %v2024 = vsel %vm553, %v2019, %v2023
      %v2026 = vshrl.u32 %v1997, 16
      %v2028 = vrot.slane %v2026, 4
      %v2029 = vshll.u32 %v1997, 16
      %v2031 = vrot.slane %v2029, 5
      %v2032 = vor.u32 %v2028, %v2031
      %v2033 = vrot.slane %v2032, 4
      %v2035 = vshll.u32 %v1998, 16
      %v2037 = vrot.slane %v2035, 5
      %v2038 = vsel %vm553, %v2033, %v2037
      %v2040 = vshrl.u32 %v1999, 16
      %v2042 = vrot.slane %v2040, 4
      %v2043 = vshll.u32 %v1999, 16
      %v2045 = vrot.slane %v2043, 5
      %v2046 = vor.u32 %v2042, %v2045
      %v2047 = vrot.slane %v2046, 4
      %v2049 = vshll.u32 %v2000, 16
      %v2051 = vrot.slane %v2049, 5
      %v2052 = vsel %vm553, %v2047, %v2051
      %v2054 = vshrl.u32 %v2001, 16
      %v2056 = vrot.slane %v2054, 4
      %v2057 = vshll.u32 %v2001, 16
      %v2059 = vrot.slane %v2057, 5
      %v2060 = vor.u32 %v2056, %v2059
      %v2061 = vrot.slane %v2060, 4
      %v2063 = vshll.u32 %v2002, 16
      %v2065 = vrot.slane %v2063, 5
      %v2066 = vsel %vm553, %v2061, %v2065
      %v2068 = vshrl.u32 %v2003, 16
      %v2070 = vrot.slane %v2068, 4
      %v2071 = vshll.u32 %v2003, 16
      %v2073 = vrot.slane %v2071, 5
      %v2074 = vor.u32 %v2070, %v2073
      %v2075 = vrot.slane %v2074, 4
      %v2077 = vshll.u32 %v2004, 16
      %v2079 = vrot.slane %v2077, 5
      %v2080 = vsel %vm553, %v2075, %v2079
      %v2082 = vshrl.u32 %v2005, 16
      %v2084 = vrot.slane %v2082, 4
      %v2085 = vshll.u32 %v2005, 16
      %v2087 = vrot.slane %v2085, 5
      %v2088 = vor.u32 %v2084, %v2087
      %v2089 = vrot.slane %v2088, 4
      %v2091 = vshll.u32 %v2006, 16
      %v2093 = vrot.slane %v2091, 5
      %v2094 = vsel %vm553, %v2089, %v2093
      %v2096 = vshrl.u32 %v2007, 16
      %v2098 = vrot.slane %v2096, 4
      %v2099 = vshll.u32 %v2007, 16
      %v2101 = vrot.slane %v2099, 5
      %v2102 = vor.u32 %v2098, %v2101
      %v2103 = vrot.slane %v2102, 4
      %v2105 = vshll.u32 %v2008, 16
      %v2107 = vrot.slane %v2105, 5
      %v2108 = vsel %vm553, %v2103, %v2107
      %v2110 = vshrl.u32 %v2009, 16
      %v2112 = vrot.slane %v2110, 4
      %v2113 = vshll.u32 %v2009, 16
      %v2115 = vrot.slane %v2113, 5
      %v2116 = vor.u32 %v2112, %v2115
      %v2117 = vrot.slane %v2116, 4
      %v2119 = vshll.u32 %v2010, 16
      %v2121 = vrot.slane %v2119, 5
      %v2122 = vsel %vm553, %v2117, %v2121
      %s2123 = scalar_lea.vmem %s260, 448
      %v2124 = vld [vmem:[%s2123] sm:$0xf]
      %v2125 = vld [vmem:[%s2123 + $0x4] sm:$0xf]
      %v2126 = vld [vmem:[%s2123 + $0x8] sm:$0xf]
      %v2127 = vld [vmem:[%s2123 + $0xc] sm:$0xf]
      %v2128 = vld [vmem:[%s2123 + $0x10] sm:$0xf]
      %v2129 = vld [vmem:[%s2123 + $0x14] sm:$0xf]
      %v2130 = vld [vmem:[%s2123 + $0x18] sm:$0xf]
      %v2131 = vld [vmem:[%s2123 + $0x1c] sm:$0xf]
      %v2132 = vld [vmem:[%s2123 + $0x20] sm:$0xf]
      %v2133 = vld [vmem:[%s2123 + $0x24] sm:$0xf]
      %v2134 = vld [vmem:[%s2123 + $0x28] sm:$0xf]
      %v2135 = vld [vmem:[%s2123 + $0x2c] sm:$0xf]
      %v2136 = vld [vmem:[%s2123 + $0x30] sm:$0xf]
      %v2137 = vld [vmem:[%s2123 + $0x34] sm:$0xf]
      %v2138 = vld [vmem:[%s2123 + $0x38] sm:$0xf]
      %v2139 = vld [vmem:[%s2123 + $0x3c] sm:$0xf]
      %v2140 = vunpack.c.l.b16 %v2024
      %v2141 = vunpack.c.l.b16 %v2038
      %v2142 = vunpack.c.l.b16 %v2052
      %v2143 = vunpack.c.l.b16 %v2066
      %v2144 = vunpack.c.l.b16 %v2080
      %v2145 = vunpack.c.l.b16 %v2094
      %v2146 = vunpack.c.l.b16 %v2108
      %v2147 = vunpack.c.l.b16 %v2122
      %v2148 = vpack.c.b16 %v2141, %v2140
      %v2149 = vpack.c.b16 %v2143, %v2142
      %v2150 = vpack.c.b16 %v2145, %v2144
      %v2151 = vpack.c.b16 %v2147, %v2146
      %v2172 = vunpack.c.l.b16 %v2124
      %v2173 = vunpack.c.l.b16 %v2125
      %v2174 = vunpack.c.l.b16 %v2126
      %v2175 = vunpack.c.l.b16 %v2127
      %v2176 = vunpack.c.l.b16 %v2128
      %v2177 = vunpack.c.l.b16 %v2129
      %v2178 = vunpack.c.l.b16 %v2130
      %v2179 = vunpack.c.l.b16 %v2131
      %v2180 = vunpack.c.l.b16 %v2132
      %v2181 = vunpack.c.l.b16 %v2133
      %v2182 = vunpack.c.l.b16 %v2134
      %v2183 = vunpack.c.l.b16 %v2135
      %v2184 = vunpack.c.l.b16 %v2136
      %v2185 = vunpack.c.l.b16 %v2137
      %v2186 = vunpack.c.l.b16 %v2138
      %v2187 = vunpack.c.l.b16 %v2139
      %v2188 = vpack.c.b16 %v2173, %v2172
      %v2189 = vpack.c.b16 %v2175, %v2174
      %v2190 = vpack.c.b16 %v2177, %v2176
      %v2191 = vpack.c.b16 %v2179, %v2178
      %v2192 = vpack.c.b16 %v2181, %v2180
      %v2193 = vpack.c.b16 %v2183, %v2182
      %v2194 = vpack.c.b16 %v2185, %v2184
      %v2195 = vpack.c.b16 %v2187, %v2186
      %2204 = vmatprep.subr.bf16.mxu0 0
      %2205 = vmatpush1.bf16.msra.mxu0 %v2188
      %2206 = vmatprep.subr.bf16.mxu0 0
      %2207 = vmatpush1.bf16.msra.mxu0 %v2189
      %2208 = vmatprep.subr.bf16.mxu0 0
      %2209 = vmatpush1.bf16.msra.mxu0 %v2190
      %2210 = vmatprep.subr.bf16.mxu0 0
      %2211 = vmatpush1.bf16.msra.mxu0 %v2191
      %2212 = vmatprep.subr.bf16.mxu0 0
      %2213 = vmatpush1.bf16.msra.mxu0 %v2192
      %2214 = vmatprep.subr.bf16.mxu0 0
      %2215 = vmatpush1.bf16.msra.mxu0 %v2193
      %2216 = vmatprep.subr.bf16.mxu0 0
      %2217 = vmatpush1.bf16.msra.mxu0 %v2194
      %2218 = vmatprep.subr.bf16.mxu0 0
      %2219 = vmatpush1.bf16.msra.mxu0 %v2195
      %2220 = vmatprep.subr.bf16.mxu0 0
      %2221 = vmatpush1.bf16.msra.mxu0 0
      %2222 = vmatprep.subr.bf16.mxu0 0
      %2223 = vmatpush1.bf16.msra.mxu0 0
      %2224 = vmatprep.subr.bf16.mxu0 0
      %2225 = vmatpush1.bf16.msra.mxu0 0
      %2226 = vmatprep.subr.bf16.mxu0 0
      %2227 = vmatpush1.bf16.msra.mxu0 0
      %2228 = vmatprep.subr.bf16.mxu0 0
      %2229 = vmatpush1.bf16.msra.mxu0 0
      %2230 = vmatprep.subr.bf16.mxu0 0
      %2231 = vmatpush1.bf16.msra.mxu0 0
      %2232 = vmatprep.subr.bf16.mxu0 0
      %2233 = vmatpush1.bf16.msra.mxu0 0
      %2234 = vmatprep.subr.bf16.mxu0 0
      %2235 = vmatpush1.bf16.msra.mxu0 0
      %2236 = vmatprep.mubr.bf16.mxu0 0
      %2237 = vmatmul.mubr.bf16.gmra.mrb[0].mxu0 %v2148
      %v2238 = vpop.f32.mrb[0].mxu0
      %v2239 = vadd.f32 0.0, %v2238
      %v2240 = vpop.f32.mrb[0].mxu0
      %v2241 = vpop.f32.mrb[0].mxu0
      %v2242 = vadd.f32 0.0, %v2241
      %v2243 = vpop.f32.mrb[0].mxu0
      %2244 = vmatprep.mubr.bf16.mxu0 0
      %2245 = vmatmul.mubr.bf16.gmra.mrb[0].mxu0 %v2149
      %v2246 = vpop.f32.mrb[0].mxu0
      %v2247 = vadd.f32 0.0, %v2246
      %v2248 = vpop.f32.mrb[0].mxu0
      %v2249 = vpop.f32.mrb[0].mxu0
      %v2250 = vadd.f32 0.0, %v2249
      %v2251 = vpop.f32.mrb[0].mxu0
      %2252 = vmatprep.mubr.bf16.mxu0 0
      %2253 = vmatmul.mubr.bf16.gmra.mrb[0].mxu0 %v2150
      %v2254 = vpop.f32.mrb[0].mxu0
      %v2255 = vadd.f32 0.0, %v2254
      %v2256 = vpop.f32.mrb[0].mxu0
      %v2257 = vpop.f32.mrb[0].mxu0
      %v2258 = vadd.f32 0.0, %v2257
      %v2259 = vpop.f32.mrb[0].mxu0
      %2260 = vmatprep.mubr.bf16.mxu0 0
      %2261 = vmatmul.mubr.bf16.gmra.mrb[0].mxu0 %v2151
      %v2262 = vpop.f32.mrb[0].mxu0
      %v2263 = vadd.f32 0.0, %v2262
      %v2264 = vpop.f32.mrb[0].mxu0
      %v2265 = vpop.f32.mrb[0].mxu0
      %v2266 = vadd.f32 0.0, %v2265
      %v2267 = vpop.f32.mrb[0].mxu0
      %2268 = vdwg.mxu0
      %v2269 = vadd.f32 %v1987, %v2239
      %v2270 = vadd.f32 %v1988, %v2242
      %v2271 = vadd.f32 %v1989, %v2247
      %v2272 = vadd.f32 %v1990, %v2250
      %v2273 = vadd.f32 %v1991, %v2255
      %v2274 = vadd.f32 %v1992, %v2258
      %v2275 = vadd.f32 %v1993, %v2263
      %v2276 = vadd.f32 %v1994, %v2266
      %v2277 = vld [vmem:[%s1824] sm:$0xe]
      %v2278 = vld [vmem:[%s1824 + $0x8] sm:$0xe]
      %v2279 = vld [vmem:[%s1824 + $0x10] sm:$0xe]
      %v2280 = vld [vmem:[%s1824 + $0x18] sm:$0xe]
      %v2281 = vld [vmem:[%s1824 + $0x20] sm:$0xe]
      %v2282 = vld [vmem:[%s1824 + $0x28] sm:$0xe]
      %v2283 = vld [vmem:[%s1824 + $0x30] sm:$0xe]
      %v2284 = vld [vmem:[%s1824 + $0x38] sm:$0xe]
      %v2301 = vrot.slane %v2277, 5
      %v2302 = vrot.slane %v2301, 4
      %v2303 = vrot.slane %v1996, 5
      %v2304 = vsel %vm975, %v2302, %v2303
      %v2305 = vrot.slane %v2278, 5
      %v2306 = vrot.slane %v2305, 4
      %v2307 = vrot.slane %v1998, 5
      %v2308 = vsel %vm975, %v2306, %v2307
      %v2309 = vrot.slane %v2279, 5
      %v2310 = vrot.slane %v2309, 4
      %v2311 = vrot.slane %v2000, 5
      %v2312 = vsel %vm975, %v2310, %v2311
      %v2313 = vrot.slane %v2280, 5
      %v2314 = vrot.slane %v2313, 4
      %v2315 = vrot.slane %v2002, 5
      %v2316 = vsel %vm975, %v2314, %v2315
      %v2317 = vrot.slane %v2281, 5
      %v2318 = vrot.slane %v2317, 4
      %v2319 = vrot.slane %v2004, 5
      %v2320 = vsel %vm975, %v2318, %v2319
      %v2321 = vrot.slane %v2282, 5
      %v2322 = vrot.slane %v2321, 4
      %v2323 = vrot.slane %v2006, 5
      %v2324 = vsel %vm975, %v2322, %v2323
      %v2325 = vrot.slane %v2283, 5
      %v2326 = vrot.slane %v2325, 4
      %v2327 = vrot.slane %v2008, 5
      %v2328 = vsel %vm975, %v2326, %v2327
      %v2329 = vrot.slane %v2284, 5
      %v2330 = vrot.slane %v2329, 4
      %v2331 = vrot.slane %v2010, 5
      %v2332 = vsel %vm975, %v2330, %v2331
      %s2333 = scalar_lea.vmem %s260, 512
      %v2334 = vld [vmem:[%s2333] sm:$0xf]
      %v2335 = vld [vmem:[%s2333 + $0x4] sm:$0xf]
      %v2336 = vld [vmem:[%s2333 + $0x8] sm:$0xf]
      %v2337 = vld [vmem:[%s2333 + $0xc] sm:$0xf]
      %v2338 = vld [vmem:[%s2333 + $0x10] sm:$0xf]
      %v2339 = vld [vmem:[%s2333 + $0x14] sm:$0xf]
      %v2340 = vld [vmem:[%s2333 + $0x18] sm:$0xf]
      %v2341 = vld [vmem:[%s2333 + $0x1c] sm:$0xf]
      %v2342 = vld [vmem:[%s2333 + $0x20] sm:$0xf]
      %v2343 = vld [vmem:[%s2333 + $0x24] sm:$0xf]
      %v2344 = vld [vmem:[%s2333 + $0x28] sm:$0xf]
      %v2345 = vld [vmem:[%s2333 + $0x2c] sm:$0xf]
      %v2346 = vld [vmem:[%s2333 + $0x30] sm:$0xf]
      %v2347 = vld [vmem:[%s2333 + $0x34] sm:$0xf]
      %v2348 = vld [vmem:[%s2333 + $0x38] sm:$0xf]
      %v2349 = vld [vmem:[%s2333 + $0x3c] sm:$0xf]
      %v2350 = vunpack.c.l.b16 %v2304
      %v2351 = vunpack.c.l.b16 %v2308
      %v2352 = vunpack.c.l.b16 %v2312
      %v2353 = vunpack.c.l.b16 %v2316
      %v2354 = vunpack.c.l.b16 %v2320
      %v2355 = vunpack.c.l.b16 %v2324
      %v2356 = vunpack.c.l.b16 %v2328
      %v2357 = vunpack.c.l.b16 %v2332
      %v2358 = vpack.c.b16 %v2351, %v2350
      %v2359 = vpack.c.b16 %v2353, %v2352
      %v2360 = vpack.c.b16 %v2355, %v2354
      %v2361 = vpack.c.b16 %v2357, %v2356
      %v2382 = vunpack.c.l.b16 %v2334
      %v2383 = vunpack.c.l.b16 %v2335
      %v2384 = vunpack.c.l.b16 %v2336
      %v2385 = vunpack.c.l.b16 %v2337
      %v2386 = vunpack.c.l.b16 %v2338
      %v2387 = vunpack.c.l.b16 %v2339
      %v2388 = vunpack.c.l.b16 %v2340
      %v2389 = vunpack.c.l.b16 %v2341
      %v2390 = vunpack.c.l.b16 %v2342
      %v2391 = vunpack.c.l.b16 %v2343
      %v2392 = vunpack.c.l.b16 %v2344
      %v2393 = vunpack.c.l.b16 %v2345
      %v2394 = vunpack.c.l.b16 %v2346
      %v2395 = vunpack.c.l.b16 %v2347
      %v2396 = vunpack.c.l.b16 %v2348
      %v2397 = vunpack.c.l.b16 %v2349
      %v2398 = vpack.c.b16 %v2383, %v2382
      %v2399 = vpack.c.b16 %v2385, %v2384
      %v2400 = vpack.c.b16 %v2387, %v2386
      %v2401 = vpack.c.b16 %v2389, %v2388
      %v2402 = vpack.c.b16 %v2391, %v2390
      %v2403 = vpack.c.b16 %v2393, %v2392
      %v2404 = vpack.c.b16 %v2395, %v2394
      %v2405 = vpack.c.b16 %v2397, %v2396
      %2414 = vmatprep.subr.bf16.mxu0 0
      %2415 = vmatpush1.bf16.msra.mxu0 %v2398
      %2416 = vmatprep.subr.bf16.mxu0 0
      %2417 = vmatpush1.bf16.msra.mxu0 %v2399
      %2418 = vmatprep.subr.bf16.mxu0 0
      %2419 = vmatpush1.bf16.msra.mxu0 %v2400
      %2420 = vmatprep.subr.bf16.mxu0 0
      %2421 = vmatpush1.bf16.msra.mxu0 %v2401
      %2422 = vmatprep.subr.bf16.mxu0 0
      %2423 = vmatpush1.bf16.msra.mxu0 %v2402
      %2424 = vmatprep.subr.bf16.mxu0 0
      %2425 = vmatpush1.bf16.msra.mxu0 %v2403
      %2426 = vmatprep.subr.bf16.mxu0 0
      %2427 = vmatpush1.bf16.msra.mxu0 %v2404
      %2428 = vmatprep.subr.bf16.mxu0 0
      %2429 = vmatpush1.bf16.msra.mxu0 %v2405
      %2430 = vmatprep.subr.bf16.mxu0 0
      %2431 = vmatpush1.bf16.msra.mxu0 0
      %2432 = vmatprep.subr.bf16.mxu0 0
      %2433 = vmatpush1.bf16.msra.mxu0 0
      %2434 = vmatprep.subr.bf16.mxu0 0
      %2435 = vmatpush1.bf16.msra.mxu0 0
      %2436 = vmatprep.subr.bf16.mxu0 0
      %2437 = vmatpush1.bf16.msra.mxu0 0
      %2438 = vmatprep.subr.bf16.mxu0 0
      %2439 = vmatpush1.bf16.msra.mxu0 0
      %2440 = vmatprep.subr.bf16.mxu0 0
      %2441 = vmatpush1.bf16.msra.mxu0 0
      %2442 = vmatprep.subr.bf16.mxu0 0
      %2443 = vmatpush1.bf16.msra.mxu0 0
      %2444 = vmatprep.subr.bf16.mxu0 0
      %2445 = vmatpush1.bf16.msra.mxu0 0
      %2446 = vmatprep.mubr.bf16.mxu0 0
      %2447 = vmatmul.mubr.bf16.gmra.mrb[0].mxu0 %v2358
      %v2448 = vpop.f32.mrb[0].mxu0
      %v2449 = vadd.f32 0.0, %v2448
      %v2450 = vpop.f32.mrb[0].mxu0
      %v2451 = vpop.f32.mrb[0].mxu0
      %v2452 = vadd.f32 0.0, %v2451
      %v2453 = vpop.f32.mrb[0].mxu0
      %2454 = vmatprep.mubr.bf16.mxu0 0
      %2455 = vmatmul.mubr.bf16.gmra.mrb[0].mxu0 %v2359
      %v2456 = vpop.f32.mrb[0].mxu0
      %v2457 = vadd.f32 0.0, %v2456
      %v2458 = vpop.f32.mrb[0].mxu0
      %v2459 = vpop.f32.mrb[0].mxu0
      %v2460 = vadd.f32 0.0, %v2459
      %v2461 = vpop.f32.mrb[0].mxu0
      %2462 = vmatprep.mubr.bf16.mxu0 0
      %2463 = vmatmul.mubr.bf16.gmra.mrb[0].mxu0 %v2360
      %v2464 = vpop.f32.mrb[0].mxu0
      %v2465 = vadd.f32 0.0, %v2464
      %v2466 = vpop.f32.mrb[0].mxu0
      %v2467 = vpop.f32.mrb[0].mxu0
      %v2468 = vadd.f32 0.0, %v2467
      %v2469 = vpop.f32.mrb[0].mxu0
      %2470 = vmatprep.mubr.bf16.mxu0 0
      %2471 = vmatmul.mubr.bf16.gmra.mrb[0].mxu0 %v2361
      %v2472 = vpop.f32.mrb[0].mxu0
      %v2473 = vadd.f32 0.0, %v2472
      %v2474 = vpop.f32.mrb[0].mxu0
      %v2475 = vpop.f32.mrb[0].mxu0
      %v2476 = vadd.f32 0.0, %v2475
      %v2477 = vpop.f32.mrb[0].mxu0
      %2478 = vdwg.mxu0
      %v2479 = vadd.f32 %v2269, %v2449
      %v2480 = vadd.f32 %v2270, %v2452
      %v2481 = vadd.f32 %v2271, %v2457
      %v2482 = vadd.f32 %v2272, %v2460
      %v2483 = vadd.f32 %v2273, %v2465
      %v2484 = vadd.f32 %v2274, %v2468
      %v2485 = vadd.f32 %v2275, %v2473
      %v2486 = vadd.f32 %v2276, %v2476
      %v2487 = vpack.c.bf16 %v2479, %v2479
      %v2488 = vpack.c.bf16 %v2480, %v2480
      %v2489 = vpack.c.bf16 %v2481, %v2481
      %v2490 = vpack.c.bf16 %v2482, %v2482
      %v2491 = vpack.c.bf16 %v2483, %v2483
      %v2492 = vpack.c.bf16 %v2484, %v2484
      %v2493 = vpack.c.bf16 %v2485, %v2485
      %v2494 = vpack.c.bf16 %v2486, %v2486
      %2495 = vst [vmem:[%s268] sm:$0xf] %v2487
      %2496 = vst [vmem:[%s268 + $0x4] sm:$0xf] %v2488
      %2497 = vst [vmem:[%s268 + $0x8] sm:$0xf] %v2489
      %2498 = vst [vmem:[%s268 + $0xc] sm:$0xf] %v2490
      %2499 = vst [vmem:[%s268 + $0x10] sm:$0xf] %v2491
      %2500 = vst [vmem:[%s268 + $0x14] sm:$0xf] %v2492
      %2501 = vst [vmem:[%s268 + $0x18] sm:$0xf] %v2493
      %2502 = vst [vmem:[%s268 + $0x1c] sm:$0xf] %v2494
      // Predicated region
      $region41: #{down_forward.4} parent=35 // pred_check
        %p2503 = pneg %p274
      $region42: #{down_forward.4} parent=35 // pred_check_branch
        %2505 = sbr.rel (%p2503) target = $region44
      $region43: #{down_forward.4} parent=35 // pred_region
        %2506 = vst [vmem:[%s272] sm:$0x3] 0.0
      $region44: #{down_forward.4} parent=35 // pred_fallthru
        _
      %v2507 = vld [vmem:[%s272] sm:$0x1]
      %v2508 = vadd.f32 %v2479, %v2480
      %v2509 = vadd.f32 %v2508, %v2481
      %v2510 = vadd.f32 %v2509, %v2482
      %v2511 = vadd.f32 %v2510, %v2483
      %v2512 = vadd.f32 %v2511, %v2484
      %v2513 = vadd.f32 %v2512, %v2485
      %v2514 = vadd.f32 %v2513, %v2486
      %v2515 = vrot.slane %v2514, 4
      %v2516 = vadd.f32 %v2514, %v2515
      %v2517 = vrot.slane %v2516, 2
      %v2518 = vadd.f32 %v2516, %v2517
      %v2519 = vrot.slane %v2518, 1
      %v2520 = vadd.f32 %v2518, %v2519
      %v2521 = vadd.f32 %v2507, %v2520
      %2522 = vst [vmem:[%s272] sm:$0x1] %v2521
      %v2523 = vld [vmem:[%s272 + $0x1] sm:$0x1]
      %v2524 = vmul.f32 %v2479, %v2479
      %v2525 = vmul.f32 %v2480, %v2480
      %v2526 = vmul.f32 %v2481, %v2481
      %v2527 = vmul.f32 %v2482, %v2482
      %v2528 = vmul.f32 %v2483, %v2483
      %v2529 = vmul.f32 %v2484, %v2484
      %v2530 = vmul.f32 %v2485, %v2485
      %v2531 = vmul.f32 %v2486, %v2486
      %v2532 = vadd.f32 %v2524, %v2525
      %v2533 = vadd.f32 %v2532, %v2526
      %v2534 = vadd.f32 %v2533, %v2527
      %v2535 = vadd.f32 %v2534, %v2528
      %v2536 = vadd.f32 %v2535, %v2529
      %v2537 = vadd.f32 %v2536, %v2530
      %v2538 = vadd.f32 %v2537, %v2531
      %v2539 = vrot.slane %v2538, 4
      %v2540 = vadd.f32 %v2538, %v2539
      %v2541 = vrot.slane %v2540, 2
      %v2542 = vadd.f32 %v2540, %v2541
      %v2543 = vrot.slane %v2542, 1
      %v2544 = vadd.f32 %v2542, %v2543
      %v2545 = vadd.f32 %v2523, %v2544
      %2546 = vst [vmem:[%s272 + $0x1] sm:$0x1] %v2545
      %p2547 = scmp.lt.s32.totalorder %s22, 1
      %s2548 = scalar_select %p2547, %s22, 1
      %p2549 = scmp.lt.s32.totalorder %s21, 0
      %s2550 = scalar_select %p2549, %s21, 0
      %s2551 = smul.addr %s2548, 8
      %s2552 = sadd.s32 %s2550, %s2551
      %s2553 = smul.addr %s2552, 4
      %s2554 = scalar_lea.vmem %s4, %s2553
      %p2555 = scmp.lt.s32.totalorder %s21, 0
      %s2556 = scalar_select %p2555, %s21, 0
      %s2557 = smul.addr %s2556, 2
      %s2558 = scalar_lea.vmem %s5, %s2557
      // Predicated region
      $region45: #{down_forward.4} parent=35 // pred_check
        %p2559 = pneg %p143
      $region46: #{down_forward.4} parent=35 // pred_check_branch
        %2561 = sbr.rel (%p2559) target = $region48
      $region47: #{down_forward.4} parent=35 // pred_region
        _
      $region48: #{down_forward.4} parent=35 // pred_fallthru
        _
      // Predicated region
      $region49: #{down_forward.4} parent=35 // pred_check
        %p2562 = pneg %p169
      $region50: #{down_forward.4} parent=35 // pred_check_branch
        %2564 = sbr.rel (%p2562) target = $region52
      $region51: #{down_forward.4} parent=35 // pred_region
        _
      $region52: #{down_forward.4} parent=35 // pred_fallthru
        _
      // Predicated region
      $region53: #{down_forward.4} parent=35 // pred_check
        %p2565 = pneg %p169
      $region54: #{down_forward.4} parent=35 // pred_check_branch
        %2567 = sbr.rel (%p2565) target = $region56
      $region55: #{down_forward.4} parent=35 // pred_region
        %p2568 = scmp.lt.s32.totalorder %s21, 0
        %s2569 = scalar_select %p2568, %s21, 0
        %s2570 = smul.addr %s2569, 2
        %s2571 = scalar_lea.vmem %s5, %s2570
      $region56: #{down_forward.4} parent=35 // pred_fallthru
        _
    $region36: #{down_forward.4} parent=5 // pred_fallthru
      _
    %p2572 = scmp.le.s32.totalorder 2, %s12
    // Predicated region
    $region57: #{down_forward.4} parent=5 // pred_check
      %p2573 = pneg %p2572
    $region58: #{down_forward.4} parent=5 // pred_check_branch
      %2575 = sbr.rel (%p2573) target = $region60
    $region59: #{down_forward.4} parent=5 // pred_region
      %s2576 = ssub.s32 %s12, 2
      // Predicated region
      $region61: #{down_forward.4} parent=59 // pred_check
        %p2577 = pneg %p149
      $region62: #{down_forward.4} parent=59 // pred_check_branch
        %2579 = sbr.rel (%p2577) target = $region64
      $region63: #{down_forward.4} parent=59 // pred_region
        %p2580 = scmp.lt.s32.totalorder %s24, 1
        %s2581 = scalar_select %p2580, %s24, 1
        %p2582 = scmp.lt.s32.totalorder %s23, 0
        %s2583 = scalar_select %p2582, %s23, 0
        %s2584 = smul.addr %s2581, 8
        %s2585 = sadd.s32 %s2583, %s2584
        %s2586 = smul.addr %s2585, 4
        %s2587 = scalar_lea.vmem %s4, %s2586
      $region64: #{down_forward.4} parent=59 // pred_fallthru
        _
    $region60: #{down_forward.4} parent=5 // pred_fallthru
      _
  $region6: #{down_forward.4} parent=0 // loop_footer
    %s16 = sadd.s32 1, %s12
  $region7: #{down_forward.4} parent=0 // loop_footer_branch
    %11 = sbr.rel target = $region3
  $region8: #{down_forward.4} parent=0 // loop_exit
    _

</llo_original>
